<compile_context>
chip_gen: v7x
topology: tpu7x:2x2x1
jax: 0.10.0
libtpu: 0.0.40
codegen_flags: <defaults>
</compile_context>

<pallas_src>
import jax
import jax.numpy as jnp
from jax import lax
from jax.experimental import pallas as pl
from jax.experimental.pallas import tpu as pltpu

EPS = 1e-5
MXU_DTYPE = jnp.bfloat16      # set to jnp.float32 for exact f32-conv semantics
LANE = 128
TARGET_M_ROWS = 512           # target matmul M rows per grid step (conv stages)
TARGET_BN_ROWS = 1024         # target row-tile for the final elementwise BN pass


def _round_up(n, m):
    return ((n + m - 1) // m) * m


def _nbytes(shape, dtype):
    n = 1
    for s in shape:
        n *= int(s)
    return n * jnp.dtype(dtype).itemsize


def _compiler_params(est_vmem_bytes):
    # Explicit scoped-VMEM limit (review item): generous 3x margin over the static
    # estimate, clamped to [32 MiB, 64 MiB] so it is valid on v5e/v6e/v7x alike.
    limit = min(64 * 1024 * 1024, max(32 * 1024 * 1024, 3 * int(est_vmem_bytes)))
    return pltpu.CompilerParams(dimension_semantics=("parallel",),
                                vmem_limit_bytes=limit)


def _pick_batch_block(batch, rows_per_image, target_rows=TARGET_M_ROWS):
    """Largest divisor of `batch` whose M = d*rows_per_image first reaches target_rows."""
    best = 1
    for d in range(1, batch + 1):
        if batch % d != 0:
            continue
        best = d
        if d * rows_per_image >= target_rows:
            break
    return best


def _pick_row_tile(total_rows, target=TARGET_BN_ROWS):
    """Largest divisor of total_rows <= target that is sublane-aligned (or the full extent)."""
    cap = min(total_rows, target)
    best = None
    for cand in range(1, cap + 1):
        if total_rows % cand == 0 and (cand % 8 == 0 or cand == total_rows):
            best = cand
    return best if best is not None else total_rows


# --------------------------------------------------------------------------
# In-kernel helpers (traced inside Pallas kernel bodies)
# --------------------------------------------------------------------------

def _zero_halo(pad_ref, bblk, hp, wp, c):
    # Zero ONLY the 1-pixel border strips; the interior is fully overwritten every step.
    # (Never gate this on program_id(0)==0: under v7x megacore sharding the second
    #  TensorCore never executes step 0 and its scratch halo would stay garbage.)
    dt = pad_ref.dtype
    pad_ref[:, 0:1, :, :] = jnp.zeros((bblk, 1, wp + 2, c), dt)
    pad_ref[:, hp + 1:hp + 2, :, :] = jnp.zeros((bblk, 1, wp + 2, c), dt)
    pad_ref[:, :, 0:1, :] = jnp.zeros((bblk, hp + 2, 1, c), dt)
    pad_ref[:, :, wp + 1:wp + 2, :] = jnp.zeros((bblk, hp + 2, 1, c), dt)


def _build_im2col(pad_ref, col_ref, bblk, hp, wp, c):
    # Each of the 9 shifted windows is read and written exactly once per step.
    # im2col column order: k = (3*dy + dx) * c + ci  (matches _to_im2col_weights).
    m = bblk * hp * wp
    k_used = 9 * c
    k_pad = col_ref.shape[1]
    for dy in range(3):
        for dx in range(3):
            t = 3 * dy + dx
            patch = pad_ref[:, dy:dy + hp, dx:dx + wp, :]          # (Bblk, Hp, Wp, C)
            col_ref[:, t * c:(t + 1) * c] = patch.reshape(m, c)
    if k_used < k_pad:
        # K-padding columns must be finite: stale VMEM can hold NaN/Inf bit patterns and
        # NaN * 0-weight = NaN in the f32 accumulator.  Only the narrow strip is zeroed.
        col_ref[:, k_used:] = jnp.zeros((m, k_pad - k_used), col_ref.dtype)


def _conv_out_and_stats(col_ref, w_ref, y_ref, sum_ref, m2_ref, bblk, hp, wp):
    # One lane-dense MXU matmul: (M, Kpad) x (Kpad, Npad) -> f32 accumulator.
    acc = jnp.dot(col_ref[...], w_ref[...], preferred_element_type=jnp.float32)
    # BN partials (per grid step) from the f32 accumulator: channel sum + centered M2.
    count = float(bblk * hp * wp)
    s = jnp.sum(acc, axis=0, keepdims=True)                        # (1, Npad)
    mean = s * (1.0 / count)
    centered = acc - mean
    m2 = jnp.sum(centered * centered, axis=0, keepdims=True)       # (1, Npad)
    sum_ref[0] = s
    m2_ref[0] = m2
    y_ref[...] = acc.reshape(bblk, hp, wp, acc.shape[-1]).astype(y_ref.dtype)


# --------------------------------------------------------------------------
# Pallas kernels
# --------------------------------------------------------------------------

def _pool_conv_stats_kernel(x_ref, w_ref, y_ref, sum_ref, m2_ref, pad_ref, col_ref):
    # x_ref:   (Bblk, Hp, 2, Wp, 2*Cin) bf16 input, pool pairs pre-split by a free reshape
    # w_ref:   (Kpad, Npad)             conv1 im2col weights (bf16, zero-padded rows/cols)
    # y_ref:   (Bblk, Hp, Wp, Npad)     raw conv1 output (bf16 HBM intermediate)
    # sum/m2:  (1, 1, Npad)             per-step BN1 partial stats (f32)
    # pad_ref: VMEM (Bblk, Hp+2, Wp+2, Cin) bf16 zero-padded pooled activations (scratch)
    # col_ref: VMEM (Bblk*Hp*Wp, Kpad)  bf16 im2col tile (scratch)
    bblk, hp, wp = y_ref.shape[0], y_ref.shape[1], y_ref.shape[2]
    cin = pad_ref.shape[3]

    # 2x2 max-pool: row pairs are in axis 2, column pairs in the doubled channel axis.
    x = x_ref[...]
    xr = jnp.maximum(x[:, :, 0], x[:, :, 1])                       # (Bblk, Hp, Wp, 2*Cin)
    pooled = jnp.maximum(xr[..., :cin], xr[..., cin:])             # (Bblk, Hp, Wp, Cin)

    _zero_halo(pad_ref, bblk, hp, wp, cin)
    pad_ref[:, 1:hp + 1, 1:wp + 1, :] = pooled.astype(pad_ref.dtype)

    _build_im2col(pad_ref, col_ref, bblk, hp, wp, cin)
    _conv_out_and_stats(col_ref, w_ref, y_ref, sum_ref, m2_ref, bblk, hp, wp)


def _bnrelu_conv_stats_kernel(y_in_ref, scale_ref, bias_ref, w_ref,
                              y_ref, sum_ref, m2_ref, pad_ref, col_ref):
    # y_in_ref: (Bblk, Hp, Wp, Cmid_pad) bf16 raw conv1 output
    # scale/bias_ref: (1, 1, Cmid_pad)   folded BN1 affine (f32, padded lanes are 0)
    # w_ref: (Kpad, Npad)                conv2 im2col weights (bf16)
    bblk, hp, wp = y_ref.shape[0], y_ref.shape[1], y_ref.shape[2]
    c = pad_ref.shape[3]

    # BN1 + ReLU fused into the conv2 input load (f32 math, bf16 MXU operand).
    a = jnp.maximum(y_in_ref[...].astype(jnp.float32) * scale_ref[...] + bias_ref[...], 0.0)

    _zero_halo(pad_ref, bblk, hp, wp, c)
    pad_ref[:, 1:hp + 1, 1:wp + 1, :] = a.astype(pad_ref.dtype)

    _build_im2col(pad_ref, col_ref, bblk, hp, wp, c)
    _conv_out_and_stats(col_ref, w_ref, y_ref, sum_ref, m2_ref, bblk, hp, wp)


def _bn_relu_kernel(y_ref, scale_ref, bias_ref, o_ref):
    # (Trow, Npad) bf16 * (1, Npad) f32 -> lane-dense BN2 + ReLU, f32 output.
    o_ref[...] = jnp.maximum(
        y_ref[...].astype(jnp.float32) * scale_ref[...] + bias_ref[...], 0.0)


# --------------------------------------------------------------------------
# pallas_call wrappers
# --------------------------------------------------------------------------

def pool_conv1(x_nhwc, w_cols, bblk):
    B, H, W, cin = x_nhwc.shape
    Hp, Wp = H // 2, W // 2
    k_pad, n_pad = w_cols.shape
    nsteps = B // bblk
    m = bblk * Hp * Wp
    x5 = x_nhwc.reshape(B, Hp, 2, Wp, 2 * cin)          # free reshape (pure axis relabel)

    est = (2 * _nbytes((bblk, Hp, 2, Wp, 2 * cin), x_nhwc.dtype)
           + 2 * _nbytes((k_pad, n_pad), w_cols.dtype)
           + 2 * _nbytes((bblk, Hp, Wp, n_pad), MXU_DTYPE)
           + _nbytes((bblk, Hp + 2, Wp + 2, cin), MXU_DTYPE)
           + _nbytes((m, k_pad), MXU_DTYPE)
           + _nbytes((m, n_pad), jnp.float32))

    return pl.pallas_call(
        _pool_conv_stats_kernel,
        out_shape=(jax.ShapeDtypeStruct((B, Hp, Wp, n_pad), MXU_DTYPE),
                   jax.ShapeDtypeStruct((nsteps, 1, n_pad), jnp.float32),
                   jax.ShapeDtypeStruct((nsteps, 1, n_pad), jnp.float32)),
        grid=(nsteps,),
        in_specs=[pl.BlockSpec((bblk, Hp, 2, Wp, 2 * cin), lambda b: (b, 0, 0, 0, 0)),
                  pl.BlockSpec((k_pad, n_pad), lambda b: (0, 0))],
        out_specs=(pl.BlockSpec((bblk, Hp, Wp, n_pad), lambda b: (b, 0, 0, 0)),
                   pl.BlockSpec((1, 1, n_pad), lambda b: (b, 0, 0)),
                   pl.BlockSpec((1, 1, n_pad), lambda b: (b, 0, 0))),
        scratch_shapes=[pltpu.VMEM((bblk, Hp + 2, Wp + 2, cin), MXU_DTYPE),
                        pltpu.VMEM((m, k_pad), MXU_DTYPE)],
        compiler_params=_compiler_params(est),
    )(x5, w_cols)


def conv2_fused_bn1(y1, scale1, bias1, w_cols, bblk):
    B, Hp, Wp, c_in = y1.shape
    k_pad, n_pad = w_cols.shape
    nsteps = B // bblk
    m = bblk * Hp * Wp
    scale1 = scale1.reshape(1, 1, c_in)
    bias1 = bias1.reshape(1, 1, c_in)

    est = (2 * _nbytes((bblk, Hp, Wp, c_in), y1.dtype)
           + 2 * _nbytes((k_pad, n_pad), w_cols.dtype)
           + 2 * _nbytes((bblk, Hp, Wp, n_pad), MXU_DTYPE)
           + _nbytes((bblk, Hp + 2, Wp + 2, c_in), MXU_DTYPE)
           + _nbytes((m, k_pad), MXU_DTYPE)
           + _nbytes((m, n_pad), jnp.float32))

    return pl.pallas_call(
        _bnrelu_conv_stats_kernel,
        out_shape=(jax.ShapeDtypeStruct((B, Hp, Wp, n_pad), MXU_DTYPE),
                   jax.ShapeDtypeStruct((nsteps, 1, n_pad), jnp.float32),
                   jax.ShapeDtypeStruct((nsteps, 1, n_pad), jnp.float32)),
        grid=(nsteps,),
        in_specs=[pl.BlockSpec((bblk, Hp, Wp, c_in), lambda b: (b, 0, 0, 0)),
                  pl.BlockSpec((1, 1, c_in), lambda b: (0, 0, 0)),
                  pl.BlockSpec((1, 1, c_in), lambda b: (0, 0, 0)),
                  pl.BlockSpec((k_pad, n_pad), lambda b: (0, 0))],
        out_specs=(pl.BlockSpec((bblk, Hp, Wp, n_pad), lambda b: (b, 0, 0, 0)),
                   pl.BlockSpec((1, 1, n_pad), lambda b: (b, 0, 0)),
                   pl.BlockSpec((1, 1, n_pad), lambda b: (b, 0, 0))),
        scratch_shapes=[pltpu.VMEM((bblk, Hp + 2, Wp + 2, c_in), MXU_DTYPE),
                        pltpu.VMEM((m, k_pad), MXU_DTYPE)],
        compiler_params=_compiler_params(est),
    )(y1, scale1, bias1, w_cols)


def bn_relu_final(y2, scale, bias):
    # Final BN2 + ReLU: flatten to (B*Hp*Wp, Npad) and use large lane-dense row tiles.
    B, Hp, Wp, n_pad = y2.shape
    rows = B * Hp * Wp
    trow = _pick_row_tile(rows)
    yf = y2.reshape(rows, n_pad)                        # free reshape (trailing dim untouched)
    scale2 = scale.reshape(1, n_pad)
    bias2 = bias.reshape(1, n_pad)

    est = (2 * _nbytes((trow, n_pad), y2.dtype)
           + 2 * _nbytes((trow, n_pad), jnp.float32)
           + 4 * _nbytes((1, n_pad), jnp.float32))

    return pl.pallas_call(
        _bn_relu_kernel,
        out_shape=jax.ShapeDtypeStruct((rows, n_pad), jnp.float32),
        grid=(rows // trow,),
        in_specs=[pl.BlockSpec((trow, n_pad), lambda r: (r, 0)),
                  pl.BlockSpec((1, n_pad), lambda r: (0, 0)),
                  pl.BlockSpec((1, n_pad), lambda r: (0, 0))],
        out_specs=pl.BlockSpec((trow, n_pad), lambda r: (r, 0)),
        compiler_params=_compiler_params(est),
    )(yf, scale2, bias2)


# --------------------------------------------------------------------------
# BN statistics fold (tiny JAX: combine per-step partials, fold affine)
# --------------------------------------------------------------------------

def _fold_bn(psum, pm2, count, gamma, beta):
    # psum, pm2: (nsteps, 1, Npad) per-step partials; count = pixels per step.
    n_pad = psum.shape[-1]
    n_real = gamma.shape[0]
    psum = psum.reshape(-1, n_pad)
    pm2 = pm2.reshape(-1, n_pad)
    n_steps = psum.shape[0]
    total = count * n_steps

    mean_i = psum / count
    mean = jnp.sum(psum, axis=0) / total
    # Chan's parallel variance combine (stable, per-step centered M2).
    m2 = jnp.sum(pm2 + count * (mean_i - mean[None, :]) ** 2, axis=0)
    var = m2 / total                      # biased variance, matches BatchNorm2d forward

    gamma_p = jnp.pad(gamma, (0, n_pad - n_real))
    beta_p = jnp.pad(beta, (0, n_pad - n_real))
    scale = gamma_p * lax.rsqrt(var + EPS)
    lane_ok = jnp.arange(n_pad) < n_real  # keep padded channels at exact zero
    scale = jnp.where(lane_ok, scale, 0.0)
    bias = jnp.where(lane_ok, beta_p - mean * scale, 0.0)
    return scale, bias                    # (Npad,), (Npad,)


# --------------------------------------------------------------------------
# Down.forward
# --------------------------------------------------------------------------

def down_forward(x_nchw, p):
    B, _, H, W = x_nchw.shape
    Hp, Wp = H // 2, W // 2
    cout = p["gamma2"].shape[0]
    bblk = _pick_batch_block(B, Hp * Wp)          # images flattened into the matmul M dim
    count = float(bblk * Hp * Wp)

    # NCHW -> NHWC + cast to the MXU operand dtype at the boundary (max-pool commutes with
    # monotone rounding, so pooling in bf16 equals pooling in f32 then casting).
    x = jnp.transpose(x_nchw, (0, 2, 3, 1)).astype(MXU_DTYPE)

    # stage 1: fused maxpool(2) + conv1 (single im2col matmul) + BN1 partial stats
    y1, s1, m21 = pool_conv1(x, p["w1_cols"], bblk)
    scale1, bias1 = _fold_bn(s1, m21, count, p["gamma1"], p["beta1"])

    # stage 2: (BN1 + ReLU fused into the load) + conv2 + BN2 partial stats
    y2, s2, m22 = conv2_fused_bn1(y1, scale1, bias1, p["w2_cols"], bblk)
    scale2, bias2 = _fold_bn(s2, m22, count, p["gamma2"], p["beta2"])

    # stage 3: BN2 + ReLU over the flattened activation (large lane-dense tiles)
    out = bn_relu_final(y2, scale2, bias2)                         # (B*Hp*Wp, Npad) f32

    out = out.reshape(B, Hp, Wp, -1)[..., :cout]                   # drop channel padding
    return jnp.transpose(out, (0, 3, 1, 2))                        # NHWC -> NCHW (boundary)


# --------------------------------------------------------------------------
# Params
# --------------------------------------------------------------------------

def _to_im2col_weights(w, cin_padded, k_pad, cout_padded):
    # PyTorch conv weight (O, I, 3, 3) -> (Kpad, Npad) im2col matrix; row index
    # k = (3*ky + kx) * cin_padded + ci (zero rows/cols for channel and K padding).
    o, i = w.shape[0], w.shape[1]
    t = jnp.transpose(w, (2, 3, 1, 0))                                 # (3, 3, I, O)
    t = jnp.pad(t, ((0, 0), (0, 0), (0, cin_padded - i), (0, cout_padded - o)))
    t = t.reshape(9 * cin_padded, cout_padded)
    t = jnp.pad(t, ((0, k_pad - 9 * cin_padded), (0, 0)))
    return t.astype(MXU_DTYPE)


def init_params(key, cin, cout):
    mid = cout
    k1, k2, k3, k4, k5, k6 = jax.random.split(key, 6)
    w1 = jax.random.normal(k1, (mid, cin, 3, 3), jnp.float32) * 0.2
    w2 = jax.random.normal(k2, (cout, mid, 3, 3), jnp.float32) * 0.2
    gamma1 = 1.0 + 0.1 * jax.random.normal(k3, (mid,), jnp.float32)
    beta1 = 0.1 * jax.random.normal(k4, (mid,), jnp.float32)
    gamma2 = 1.0 + 0.1 * jax.random.normal(k5, (cout,), jnp.float32)
    beta2 = 0.1 * jax.random.normal(k6, (cout,), jnp.float32)
    mid_pad = _round_up(mid, LANE)
    out_pad = _round_up(cout, LANE)
    k1_pad = _round_up(9 * cin, LANE)       # conv1 contraction: 9 taps x Cin (unpadded)
    k2_pad = _round_up(9 * mid_pad, LANE)   # conv2 contraction: 9 taps x padded mid channels
    return dict(
        w1=w1, w2=w2,
        w1_cols=_to_im2col_weights(w1, cin, k1_pad, mid_pad),
        w2_cols=_to_im2col_weights(w2, mid_pad, k2_pad, out_pad),
        gamma1=gamma1, beta1=beta1, gamma2=gamma2, beta2=beta2)


# --------------------------------------------------------------------------
# Pure-JAX reference (mirrors the kernel's bf16 quantization points so the check is tight)
# --------------------------------------------------------------------------

def ref_down(x_nchw, p):
    x = jnp.transpose(x_nchw, (0, 2, 3, 1)).astype(jnp.float32)
    x = lax.reduce_window(x, -jnp.inf, lax.max, (1, 2, 2, 1), (1, 2, 2, 1), "VALID")
    x = x.astype(MXU_DTYPE)   # kernel pools in MXU_DTYPE (identical: max commutes with rounding)

    def conv(a, w):
        w_hwio = jnp.transpose(w, (2, 3, 1, 0)).astype(MXU_DTYPE)
        return lax.conv_general_dilated(
            a, w_hwio, (1, 1), "SAME",
            dimension_numbers=("NHWC", "HWIO", "NHWC"),
            preferred_element_type=jnp.float32)

    def bn_affine(y, gamma, beta):
        mean = jnp.mean(y, axis=(0, 1, 2))
        var = jnp.mean((y - mean) ** 2, axis=(0, 1, 2))
        scale = gamma * lax.rsqrt(var + EPS)
        return scale, beta - mean * scale

    y1 = conv(x, p["w1"])                                   # f32 (BN1 stats source)
    s1, b1 = bn_affine(y1, p["gamma1"], p["beta1"])
    y1q = y1.astype(MXU_DTYPE)                              # mirrors bf16 HBM round-trip of y1
    a1 = jnp.maximum(y1q.astype(jnp.float32) * s1 + b1, 0.0).astype(MXU_DTYPE)

    y2 = conv(a1, p["w2"])                                  # f32 (BN2 stats source)
    s2, b2 = bn_affine(y2, p["gamma2"], p["beta2"])
    y2q = y2.astype(MXU_DTYPE)                              # mirrors bf16 HBM round-trip of y2
    out = jnp.maximum(y2q.astype(jnp.float32) * s2 + b2, 0.0)
    return jnp.transpose(out, (0, 3, 1, 2))


if __name__ == "__main__":
    key = jax.random.PRNGKey(0)
    kx, kp = jax.random.split(key)

    in_channels, out_channels = 4, 8
    x = jax.random.normal(kx, (2, in_channels, 16, 16), jnp.float32)   # NCHW, like PyTorch
    params = init_params(kp, in_channels, out_channels)

    down = jax.jit(down_forward)
    out = jax.block_until_ready(down(x, params))
    assert out.shape == (2, out_channels, 8, 8), out.shape

    ref = jax.block_until_ready(ref_down(x, params))
    err = float(jnp.max(jnp.abs(out - ref)))
    # Tolerance note: the kernel and reference quantize the y1/y2 intermediates to bf16 at
    # the same points, but their f32 accumulations differ by a few ulps, so an element that
    # straddles a bf16 rounding boundary can differ by one bf16 ulp.  Typical error is
    # ~1e-5; 2e-2 leaves headroom for such rare flips while still catching real layout /
    # statistics bugs (which produce O(0.1-1) errors).
    assert jnp.allclose(out, ref, atol=2e-2, rtol=2e-2), err

    print("KERNEL_OK")
</pallas_src>

<mosaic_0001>
module attributes {stable_mosaic.version = 11 : i64} {
  func.func @_pool_conv_stats_kernel(%arg0: i32, %arg1: memref<2x8x2x8x8xbf16, #tpu.memory_space<vmem>>, %arg2: memref<128x128xbf16, #tpu.memory_space<vmem>>, %arg3: memref<2x8x8x128xbf16, #tpu.memory_space<vmem>>, %arg4: memref<1x1x128xf32, #tpu.memory_space<vmem>>, %arg5: memref<1x1x128xf32, #tpu.memory_space<vmem>>, %arg6: memref<2x10x10x4xbf16, #tpu.memory_space<vmem>>, %arg7: memref<128x128xbf16, #tpu.memory_space<vmem>>) attributes {dimension_semantics = [#tpu.dimension_semantics<parallel>], iteration_bounds = array<i64: 1>, scalar_prefetch = 0 : i64, scratch_operands = 2 : i64, tpu.core_type = #tpu.core_type<tc>, window_params = [{transform_indices = @transform_0, window_bounds = array<i64: 2, 8, 2, 8, 8>}, {pipeline_mode = #tpu.pipeline_mode<synchronous>, transform_indices = @transform_1, window_bounds = array<i64: 128, 128>}, {transform_indices = @transform_2, window_bounds = array<i64: 2, 8, 8, 128>}, {transform_indices = @transform_3, window_bounds = array<i64: 1, 1, 128>}, {transform_indices = @transform_4, window_bounds = array<i64: 1, 1, 128>}]} {
    %c0 = arith.constant 0 : index
    %c0_0 = arith.constant 0 : index
    %c0_1 = arith.constant 0 : index
    %c0_2 = arith.constant 0 : index
    %c0_3 = arith.constant 0 : index
    %0 = vector.load %arg1[%c0, %c0_0, %c0_1, %c0_2, %c0_3] : memref<2x8x2x8x8xbf16, #tpu.memory_space<vmem>>, vector<2x8x2x8x8xbf16>
    %1 = vector.extract_strided_slice %0 {offsets = [0, 0, 0, 0, 0], sizes = [2, 8, 1, 8, 8], strides = [1, 1, 1, 1, 1]} : vector<2x8x2x8x8xbf16> to vector<2x8x1x8x8xbf16>
    %2 = vector.shape_cast %1 : vector<2x8x1x8x8xbf16> to vector<2x8x8x8xbf16>
    %3 = vector.extract_strided_slice %0 {offsets = [0, 0, 1, 0, 0], sizes = [2, 8, 1, 8, 8], strides = [1, 1, 1, 1, 1]} : vector<2x8x2x8x8xbf16> to vector<2x8x1x8x8xbf16>
    %4 = vector.shape_cast %3 : vector<2x8x1x8x8xbf16> to vector<2x8x8x8xbf16>
    %5 = arith.maximumf %2, %4 : vector<2x8x8x8xbf16>
    %6 = vector.extract_strided_slice %5 {offsets = [0, 0, 0, 0], sizes = [2, 8, 8, 4], strides = [1, 1, 1, 1]} : vector<2x8x8x8xbf16> to vector<2x8x8x4xbf16>
    %7 = vector.extract_strided_slice %5 {offsets = [0, 0, 0, 4], sizes = [2, 8, 8, 4], strides = [1, 1, 1, 1]} : vector<2x8x8x8xbf16> to vector<2x8x8x4xbf16>
    %8 = arith.maximumf %6, %7 : vector<2x8x8x4xbf16>
    %cst = arith.constant 0.000000e+00 : bf16
    %9 = vector.broadcast %cst : bf16 to vector<2x1x10x4xbf16>
    %c0_4 = arith.constant 0 : index
    %c0_5 = arith.constant 0 : index
    %c0_6 = arith.constant 0 : index
    %c0_7 = arith.constant 0 : index
    %10 = vector.load %arg6[%c0_4, %c0_5, %c0_6, %c0_7] : memref<2x10x10x4xbf16, #tpu.memory_space<vmem>>, vector<2x1x10x4xbf16>
    tpu.vector_store %arg6[%c0_4, %c0_5, %c0_6, %c0_7], %9 {strides = array<i32>} : memref<2x10x10x4xbf16, #tpu.memory_space<vmem>>, vector<2x1x10x4xbf16>,
    %cst_8 = arith.constant 0.000000e+00 : bf16
    %11 = vector.broadcast %cst_8 : bf16 to vector<2x1x10x4xbf16>
    %c0_9 = arith.constant 0 : index
    %c9 = arith.constant 9 : index
    %c0_10 = arith.constant 0 : index
    %c0_11 = arith.constant 0 : index
    %12 = vector.load %arg6[%c0_9, %c9, %c0_10, %c0_11] : memref<2x10x10x4xbf16, #tpu.memory_space<vmem>>, vector<2x1x10x4xbf16>
    tpu.vector_store %arg6[%c0_9, %c9, %c0_10, %c0_11], %11 {strides = array<i32>} : memref<2x10x10x4xbf16, #tpu.memory_space<vmem>>, vector<2x1x10x4xbf16>,
    %cst_12 = arith.constant 0.000000e+00 : bf16
    %13 = vector.broadcast %cst_12 : bf16 to vector<2x10x1x4xbf16>
    %c0_13 = arith.constant 0 : index
    %c0_14 = arith.constant 0 : index
    %c0_15 = arith.constant 0 : index
    %c0_16 = arith.constant 0 : index
    %14 = vector.load %arg6[%c0_13, %c0_14, %c0_15, %c0_16] : memref<2x10x10x4xbf16, #tpu.memory_space<vmem>>, vector<2x10x1x4xbf16>
    tpu.vector_store %arg6[%c0_13, %c0_14, %c0_15, %c0_16], %13 {strides = array<i32>} : memref<2x10x10x4xbf16, #tpu.memory_space<vmem>>, vector<2x10x1x4xbf16>,
    %cst_17 = arith.constant 0.000000e+00 : bf16
    %15 = vector.broadcast %cst_17 : bf16 to vector<2x10x1x4xbf16>
    %c0_18 = arith.constant 0 : index
    %c0_19 = arith.constant 0 : index
    %c9_20 = arith.constant 9 : index
    %c0_21 = arith.constant 0 : index
    %16 = vector.load %arg6[%c0_18, %c0_19, %c9_20, %c0_21] : memref<2x10x10x4xbf16, #tpu.memory_space<vmem>>, vector<2x10x1x4xbf16>
    tpu.vector_store %arg6[%c0_18, %c0_19, %c9_20, %c0_21], %15 {strides = array<i32>} : memref<2x10x10x4xbf16, #tpu.memory_space<vmem>>, vector<2x10x1x4xbf16>,
    %c0_22 = arith.constant 0 : index
    %c1 = arith.constant 1 : index
    %c1_23 = arith.constant 1 : index
    %c0_24 = arith.constant 0 : index
    %17 = vector.load %arg6[%c0_22, %c1, %c1_23, %c0_24] : memref<2x10x10x4xbf16, #tpu.memory_space<vmem>>, vector<2x8x8x4xbf16>
    tpu.vector_store %arg6[%c0_22, %c1, %c1_23, %c0_24], %8 {strides = array<i32>} : memref<2x10x10x4xbf16, #tpu.memory_space<vmem>>, vector<2x8x8x4xbf16>,
    %c0_25 = arith.constant 0 : index
    %c0_26 = arith.constant 0 : index
    %c0_27 = arith.constant 0 : index
    %c0_28 = arith.constant 0 : index
    %18 = vector.load %arg6[%c0_25, %c0_26, %c0_27, %c0_28] : memref<2x10x10x4xbf16, #tpu.memory_space<vmem>>, vector<2x8x8x4xbf16>
    %19 = vector.shape_cast %18 : vector<2x8x8x4xbf16> to vector<128x4xbf16>
    %c0_29 = arith.constant 0 : index
    %c0_30 = arith.constant 0 : index
    %20 = vector.load %arg7[%c0_29, %c0_30] : memref<128x128xbf16, #tpu.memory_space<vmem>>, vector<128x4xbf16>
    tpu.vector_store %arg7[%c0_29, %c0_30], %19 {strides = array<i32>} : memref<128x128xbf16, #tpu.memory_space<vmem>>, vector<128x4xbf16>,
    %c0_31 = arith.constant 0 : index
    %c0_32 = arith.constant 0 : index
    %c1_33 = arith.constant 1 : index
    %c0_34 = arith.constant 0 : index
    %21 = vector.load %arg6[%c0_31, %c0_32, %c1_33, %c0_34] : memref<2x10x10x4xbf16, #tpu.memory_space<vmem>>, vector<2x8x8x4xbf16>
    %22 = vector.shape_cast %21 : vector<2x8x8x4xbf16> to vector<128x4xbf16>
    %c0_35 = arith.constant 0 : index
    %c4 = arith.constant 4 : index
    %23 = vector.load %arg7[%c0_35, %c4] : memref<128x128xbf16, #tpu.memory_space<vmem>>, vector<128x4xbf16>
    tpu.vector_store %arg7[%c0_35, %c4], %22 {strides = array<i32>} : memref<128x128xbf16, #tpu.memory_space<vmem>>, vector<128x4xbf16>,
    %c0_36 = arith.constant 0 : index
    %c0_37 = arith.constant 0 : index
    %c2 = arith.constant 2 : index
    %c0_38 = arith.constant 0 : index
    %24 = vector.load %arg6[%c0_36, %c0_37, %c2, %c0_38] : memref<2x10x10x4xbf16, #tpu.memory_space<vmem>>, vector<2x8x8x4xbf16>
    %25 = vector.shape_cast %24 : vector<2x8x8x4xbf16> to vector<128x4xbf16>
    %c0_39 = arith.constant 0 : index
    %c8 = arith.constant 8 : index
    %26 = vector.load %arg7[%c0_39, %c8] : memref<128x128xbf16, #tpu.memory_space<vmem>>, vector<128x4xbf16>
    tpu.vector_store %arg7[%c0_39, %c8], %25 {strides = array<i32>} : memref<128x128xbf16, #tpu.memory_space<vmem>>, vector<128x4xbf16>,
    %c0_40 = arith.constant 0 : index
    %c1_41 = arith.constant 1 : index
    %c0_42 = arith.constant 0 : index
    %c0_43 = arith.constant 0 : index
    %27 = vector.load %arg6[%c0_40, %c1_41, %c0_42, %c0_43] : memref<2x10x10x4xbf16, #tpu.memory_space<vmem>>, vector<2x8x8x4xbf16>
    %28 = vector.shape_cast %27 : vector<2x8x8x4xbf16> to vector<128x4xbf16>
    %c0_44 = arith.constant 0 : index
    %c12 = arith.constant 12 : index
    %29 = vector.load %arg7[%c0_44, %c12] : memref<128x128xbf16, #tpu.memory_space<vmem>>, vector<128x4xbf16>
    tpu.vector_store %arg7[%c0_44, %c12], %28 {strides = array<i32>} : memref<128x128xbf16, #tpu.memory_space<vmem>>, vector<128x4xbf16>,
    %c0_45 = arith.constant 0 : index
    %c1_46 = arith.constant 1 : index
    %c1_47 = arith.constant 1 : index
    %c0_48 = arith.constant 0 : index
    %30 = vector.load %arg6[%c0_45, %c1_46, %c1_47, %c0_48] : memref<2x10x10x4xbf16, #tpu.memory_space<vmem>>, vector<2x8x8x4xbf16>
    %31 = vector.shape_cast %30 : vector<2x8x8x4xbf16> to vector<128x4xbf16>
    %c0_49 = arith.constant 0 : index
    %c16 = arith.constant 16 : index
    %32 = vector.load %arg7[%c0_49, %c16] : memref<128x128xbf16, #tpu.memory_space<vmem>>, vector<128x4xbf16>
    tpu.vector_store %arg7[%c0_49, %c16], %31 {strides = array<i32>} : memref<128x128xbf16, #tpu.memory_space<vmem>>, vector<128x4xbf16>,
    %c0_50 = arith.constant 0 : index
    %c1_51 = arith.constant 1 : index
    %c2_52 = arith.constant 2 : index
    %c0_53 = arith.constant 0 : index
    %33 = vector.load %arg6[%c0_50, %c1_51, %c2_52, %c0_53] : memref<2x10x10x4xbf16, #tpu.memory_space<vmem>>, vector<2x8x8x4xbf16>
    %34 = vector.shape_cast %33 : vector<2x8x8x4xbf16> to vector<128x4xbf16>
    %c0_54 = arith.constant 0 : index
    %c20 = arith.constant 20 : index
    %35 = vector.load %arg7[%c0_54, %c20] : memref<128x128xbf16, #tpu.memory_space<vmem>>, vector<128x4xbf16>
    tpu.vector_store %arg7[%c0_54, %c20], %34 {strides = array<i32>} : memref<128x128xbf16, #tpu.memory_space<vmem>>, vector<128x4xbf16>,
    %c0_55 = arith.constant 0 : index
    %c2_56 = arith.constant 2 : index
    %c0_57 = arith.constant 0 : index
    %c0_58 = arith.constant 0 : index
    %36 = vector.load %arg6[%c0_55, %c2_56, %c0_57, %c0_58] : memref<2x10x10x4xbf16, #tpu.memory_space<vmem>>, vector<2x8x8x4xbf16>
    %37 = vector.shape_cast %36 : vector<2x8x8x4xbf16> to vector<128x4xbf16>
    %c0_59 = arith.constant 0 : index
    %c24 = arith.constant 24 : index
    %38 = vector.load %arg7[%c0_59, %c24] : memref<128x128xbf16, #tpu.memory_space<vmem>>, vector<128x4xbf16>
    tpu.vector_store %arg7[%c0_59, %c24], %37 {strides = array<i32>} : memref<128x128xbf16, #tpu.memory_space<vmem>>, vector<128x4xbf16>,
    %c0_60 = arith.constant 0 : index
    %c2_61 = arith.constant 2 : index
    %c1_62 = arith.constant 1 : index
    %c0_63 = arith.constant 0 : index
    %39 = vector.load %arg6[%c0_60, %c2_61, %c1_62, %c0_63] : memref<2x10x10x4xbf16, #tpu.memory_space<vmem>>, vector<2x8x8x4xbf16>
    %40 = vector.shape_cast %39 : vector<2x8x8x4xbf16> to vector<128x4xbf16>
    %c0_64 = arith.constant 0 : index
    %c28 = arith.constant 28 : index
    %41 = vector.load %arg7[%c0_64, %c28] : memref<128x128xbf16, #tpu.memory_space<vmem>>, vector<128x4xbf16>
    tpu.vector_store %arg7[%c0_64, %c28], %40 {strides = array<i32>} : memref<128x128xbf16, #tpu.memory_space<vmem>>, vector<128x4xbf16>,
    %c0_65 = arith.constant 0 : index
    %c2_66 = arith.constant 2 : index
    %c2_67 = arith.constant 2 : index
    %c0_68 = arith.constant 0 : index
    %42 = vector.load %arg6[%c0_65, %c2_66, %c2_67, %c0_68] : memref<2x10x10x4xbf16, #tpu.memory_space<vmem>>, vector<2x8x8x4xbf16>
    %43 = vector.shape_cast %42 : vector<2x8x8x4xbf16> to vector<128x4xbf16>
    %c0_69 = arith.constant 0 : index
    %c32 = arith.constant 32 : index
    %44 = vector.load %arg7[%c0_69, %c32] : memref<128x128xbf16, #tpu.memory_space<vmem>>, vector<128x4xbf16>
    tpu.vector_store %arg7[%c0_69, %c32], %43 {strides = array<i32>} : memref<128x128xbf16, #tpu.memory_space<vmem>>, vector<128x4xbf16>,
    %cst_70 = arith.constant 0.000000e+00 : bf16
    %45 = vector.broadcast %cst_70 : bf16 to vector<128x92xbf16>
    %c0_71 = arith.constant 0 : index
    %c36 = arith.constant 36 : index
    %46 = vector.load %arg7[%c0_71, %c36] : memref<128x128xbf16, #tpu.memory_space<vmem>>, vector<128x92xbf16>
    tpu.vector_store %arg7[%c0_71, %c36], %45 {strides = array<i32>} : memref<128x128xbf16, #tpu.memory_space<vmem>>, vector<128x92xbf16>,
    %c0_72 = arith.constant 0 : index
    %c0_73 = arith.constant 0 : index
    %47 = vector.load %arg7[%c0_72, %c0_73] : memref<128x128xbf16, #tpu.memory_space<vmem>>, vector<128x128xbf16>
    %c0_74 = arith.constant 0 : index
    %c0_75 = arith.constant 0 : index
    %48 = vector.load %arg2[%c0_74, %c0_75] : memref<128x128xbf16, #tpu.memory_space<vmem>>, vector<128x128xbf16>
    %cst_76 = arith.constant dense<0.000000e+00> : vector<128x128xf32>
    %49 = tpu.matmul %47, %48, %cst_76 {dimension_numbers = #tpu.dot_dimension_numbers<[1], [0], [0], [1], [0, 0, 1, 1], [], []>} : vector<128x128xbf16>, vector<128x128xbf16>, vector<128x128xf32> -> vector<128x128xf32>
    %cst_77 = arith.constant dense<0.000000e+00> : vector<128xf32>
    %50 = vector.multi_reduction <add>, %49, %cst_77 [0] : vector<128x128xf32> to vector<128xf32>
    %51 = vector.shape_cast %50 : vector<128xf32> to vector<1x128xf32>
    %cst_78 = arith.constant 7.812500e-03 : f32
    %52 = vector.broadcast %cst_78 : f32 to vector<1x128xf32>
    %53 = arith.mulf %51, %52 : vector<1x128xf32>
    %54 = vector.broadcast %53 : vector<1x128xf32> to vector<128x128xf32>
    %55 = arith.subf %49, %54 : vector<128x128xf32>
    %56 = arith.mulf %55, %55 : vector<128x128xf32>
    %cst_79 = arith.constant dense<0.000000e+00> : vector<128xf32>
    %57 = vector.multi_reduction <add>, %56, %cst_79 [0] : vector<128x128xf32> to vector<128xf32>
    %58 = vector.shape_cast %57 : vector<128xf32> to vector<1x128xf32>
    %c0_80 = arith.constant 0 : index
    %c0_81 = arith.constant 0 : index
    %c0_82 = arith.constant 0 : index
    %59 = vector.load %arg4[%c0_80, %c0_81, %c0_82] : memref<1x1x128xf32, #tpu.memory_space<vmem>>, vector<1x1x128xf32>
    %60 = vector.shape_cast %59 : vector<1x1x128xf32> to vector<1x128xf32>
    %61 = vector.shape_cast %51 : vector<1x128xf32> to vector<1x1x128xf32>
    tpu.vector_store %arg4[%c0_80, %c0_81, %c0_82], %61 {strides = array<i32>} : memref<1x1x128xf32, #tpu.memory_space<vmem>>, vector<1x1x128xf32>,
    %c0_83 = arith.constant 0 : index
    %c0_84 = arith.constant 0 : index
    %c0_85 = arith.constant 0 : index
    %62 = vector.load %arg5[%c0_83, %c0_84, %c0_85] : memref<1x1x128xf32, #tpu.memory_space<vmem>>, vector<1x1x128xf32>
    %63 = vector.shape_cast %62 : vector<1x1x128xf32> to vector<1x128xf32>
    %64 = vector.shape_cast %58 : vector<1x128xf32> to vector<1x1x128xf32>
    tpu.vector_store %arg5[%c0_83, %c0_84, %c0_85], %64 {strides = array<i32>} : memref<1x1x128xf32, #tpu.memory_space<vmem>>, vector<1x1x128xf32>,
    %65 = vector.shape_cast %49 : vector<128x128xf32> to vector<2x8x8x128xf32>
    %66 = arith.truncf %65 : vector<2x8x8x128xf32> to vector<2x8x8x128xbf16>
    %c0_86 = arith.constant 0 : index
    %c0_87 = arith.constant 0 : index
    %c0_88 = arith.constant 0 : index
    %c0_89 = arith.constant 0 : index
    %67 = vector.load %arg3[%c0_86, %c0_87, %c0_88, %c0_89] : memref<2x8x8x128xbf16, #tpu.memory_space<vmem>>, vector<2x8x8x128xbf16>
    tpu.vector_store %arg3[%c0_86, %c0_87, %c0_88, %c0_89], %66 {strides = array<i32>} : memref<2x8x8x128xbf16, #tpu.memory_space<vmem>>, vector<2x8x8x128xbf16>,
    return
  }
  func.func @transform_0(%arg0: i32) -> (i32, i32, i32, i32, i32) {
    %c0_i32 = arith.constant 0 : i32
    %c0_i32_0 = arith.constant 0 : i32
    %c0_i32_1 = arith.constant 0 : i32
    %c0_i32_2 = arith.constant 0 : i32
    %c0_i32_3 = arith.constant 0 : i32
    return %arg0, %c0_i32, %c0_i32_0, %c0_i32_1, %c0_i32_2 : i32, i32, i32, i32, i32
  }
  func.func @transform_1(%arg0: i32) -> (i32, i32) {
    %c0_i32 = arith.constant 0 : i32
    %c0_i32_0 = arith.constant 0 : i32
    %c0_i32_1 = arith.constant 0 : i32
    return %c0_i32, %c0_i32_0 : i32, i32
  }
  func.func @transform_2(%arg0: i32) -> (i32, i32, i32, i32) {
    %c0_i32 = arith.constant 0 : i32
    %c0_i32_0 = arith.constant 0 : i32
    %c0_i32_1 = arith.constant 0 : i32
    %c0_i32_2 = arith.constant 0 : i32
    return %arg0, %c0_i32, %c0_i32_0, %c0_i32_1 : i32, i32, i32, i32
  }
  func.func @transform_3(%arg0: i32) -> (i32, i32, i32) {
    %c0_i32 = arith.constant 0 : i32
    %c0_i32_0 = arith.constant 0 : i32
    %c0_i32_1 = arith.constant 0 : i32
    return %arg0, %c0_i32, %c0_i32_0 : i32, i32, i32
  }
  func.func @transform_4(%arg0: i32) -> (i32, i32, i32) {
    %c0_i32 = arith.constant 0 : i32
    %c0_i32_0 = arith.constant 0 : i32
    %c0_i32_1 = arith.constant 0 : i32
    return %arg0, %c0_i32, %c0_i32_0 : i32, i32, i32
  }
}

module attributes {stable_mosaic.version = 11 : i64} {
  func.func @_bn_relu_kernel(%arg0: i32, %arg1: memref<128x128xbf16, #tpu.memory_space<vmem>>, %arg2: memref<1x128xf32, #tpu.memory_space<vmem>>, %arg3: memref<1x128xf32, #tpu.memory_space<vmem>>, %arg4: memref<128x128xf32, #tpu.memory_space<vmem>>) attributes {dimension_semantics = [#tpu.dimension_semantics<parallel>], iteration_bounds = array<i64: 1>, scalar_prefetch = 0 : i64, scratch_operands = 0 : i64, tpu.core_type = #tpu.core_type<tc>, window_params = [{transform_indices = @transform_0, window_bounds = array<i64: 128, 128>}, {pipeline_mode = #tpu.pipeline_mode<synchronous>, transform_indices = @transform_1, window_bounds = array<i64: 1, 128>}, {pipeline_mode = #tpu.pipeline_mode<synchronous>, transform_indices = @transform_2, window_bounds = array<i64: 1, 128>}, {transform_indices = @transform_3, window_bounds = array<i64: 128, 128>}]} {
    %c0 = arith.constant 0 : index
    %c0_0 = arith.constant 0 : index
    %0 = vector.load %arg1[%c0, %c0_0] : memref<128x128xbf16, #tpu.memory_space<vmem>>, vector<128x128xbf16>
    %1 = arith.extf %0 : vector<128x128xbf16> to vector<128x128xf32>
    %c0_1 = arith.constant 0 : index
    %c0_2 = arith.constant 0 : index
    %2 = vector.load %arg2[%c0_1, %c0_2] : memref<1x128xf32, #tpu.memory_space<vmem>>, vector<1x128xf32>
    %3 = vector.broadcast %2 : vector<1x128xf32> to vector<128x128xf32>
    %4 = arith.mulf %1, %3 : vector<128x128xf32>
    %c0_3 = arith.constant 0 : index
    %c0_4 = arith.constant 0 : index
    %5 = vector.load %arg3[%c0_3, %c0_4] : memref<1x128xf32, #tpu.memory_space<vmem>>, vector<1x128xf32>
    %6 = vector.broadcast %5 : vector<1x128xf32> to vector<128x128xf32>
    %7 = arith.addf %4, %6 : vector<128x128xf32>
    %cst = arith.constant 0.000000e+00 : f32
    %8 = vector.broadcast %cst : f32 to vector<128x128xf32>
    %9 = arith.maximumf %7, %8 : vector<128x128xf32>
    %c0_5 = arith.constant 0 : index
    %c0_6 = arith.constant 0 : index
    %10 = vector.load %arg4[%c0_5, %c0_6] : memref<128x128xf32, #tpu.memory_space<vmem>>, vector<128x128xf32>
    tpu.vector_store %arg4[%c0_5, %c0_6], %9 {strides = array<i32>} : memref<128x128xf32, #tpu.memory_space<vmem>>, vector<128x128xf32>,
    return
  }
  func.func @transform_0(%arg0: i32) -> (i32, i32) {
    %c0_i32 = arith.constant 0 : i32
    %c0_i32_0 = arith.constant 0 : i32
    return %arg0, %c0_i32 : i32, i32
  }
  func.func @transform_1(%arg0: i32) -> (i32, i32) {
    %c0_i32 = arith.constant 0 : i32
    %c0_i32_0 = arith.constant 0 : i32
    %c0_i32_1 = arith.constant 0 : i32
    return %c0_i32, %c0_i32_0 : i32, i32
  }
  func.func @transform_2(%arg0: i32) -> (i32, i32) {
    %c0_i32 = arith.constant 0 : i32
    %c0_i32_0 = arith.constant 0 : i32
    %c0_i32_1 = arith.constant 0 : i32
    return %c0_i32, %c0_i32_0 : i32, i32
  }
  func.func @transform_3(%arg0: i32) -> (i32, i32) {
    %c0_i32 = arith.constant 0 : i32
    %c0_i32_0 = arith.constant 0 : i32
    return %arg0, %c0_i32 : i32, i32
  }
}

module attributes {stable_mosaic.version = 11 : i64} {
  func.func @_bnrelu_conv_stats_kernel(%arg0: i32, %arg1: memref<2x8x8x128xbf16, #tpu.memory_space<vmem>>, %arg2: memref<1x1x128xf32, #tpu.memory_space<vmem>>, %arg3: memref<1x1x128xf32, #tpu.memory_space<vmem>>, %arg4: memref<1152x128xbf16, #tpu.memory_space<vmem>>, %arg5: memref<2x8x8x128xbf16, #tpu.memory_space<vmem>>, %arg6: memref<1x1x128xf32, #tpu.memory_space<vmem>>, %arg7: memref<1x1x128xf32, #tpu.memory_space<vmem>>, %arg8: memref<2x10x10x128xbf16, #tpu.memory_space<vmem>>, %arg9: memref<128x1152xbf16, #tpu.memory_space<vmem>>) attributes {dimension_semantics = [#tpu.dimension_semantics<parallel>], iteration_bounds = array<i64: 1>, scalar_prefetch = 0 : i64, scratch_operands = 2 : i64, tpu.core_type = #tpu.core_type<tc>, window_params = [{transform_indices = @transform_0, window_bounds = array<i64: 2, 8, 8, 128>}, {pipeline_mode = #tpu.pipeline_mode<synchronous>, transform_indices = @transform_1, window_bounds = array<i64: 1, 1, 128>}, {pipeline_mode = #tpu.pipeline_mode<synchronous>, transform_indices = @transform_2, window_bounds = array<i64: 1, 1, 128>}, {pipeline_mode = #tpu.pipeline_mode<synchronous>, transform_indices = @transform_3, window_bounds = array<i64: 1152, 128>}, {transform_indices = @transform_4, window_bounds = array<i64: 2, 8, 8, 128>}, {transform_indices = @transform_5, window_bounds = array<i64: 1, 1, 128>}, {transform_indices = @transform_6, window_bounds = array<i64: 1, 1, 128>}]} {
    %c0 = arith.constant 0 : index
    %c0_0 = arith.constant 0 : index
    %c0_1 = arith.constant 0 : index
    %c0_2 = arith.constant 0 : index
    %0 = vector.load %arg1[%c0, %c0_0, %c0_1, %c0_2] : memref<2x8x8x128xbf16, #tpu.memory_space<vmem>>, vector<2x8x8x128xbf16>
    %1 = arith.extf %0 : vector<2x8x8x128xbf16> to vector<2x8x8x128xf32>
    %c0_3 = arith.constant 0 : index
    %c0_4 = arith.constant 0 : index
    %c0_5 = arith.constant 0 : index
    %2 = vector.load %arg2[%c0_3, %c0_4, %c0_5] : memref<1x1x128xf32, #tpu.memory_space<vmem>>, vector<1x1x128xf32>
    %3 = vector.shape_cast %2 : vector<1x1x128xf32> to vector<1x1x1x128xf32>
    %4 = vector.broadcast %3 : vector<1x1x1x128xf32> to vector<2x8x8x128xf32>
    %5 = arith.mulf %1, %4 : vector<2x8x8x128xf32>
    %c0_6 = arith.constant 0 : index
    %c0_7 = arith.constant 0 : index
    %c0_8 = arith.constant 0 : index
    %6 = vector.load %arg3[%c0_6, %c0_7, %c0_8] : memref<1x1x128xf32, #tpu.memory_space<vmem>>, vector<1x1x128xf32>
    %7 = vector.shape_cast %6 : vector<1x1x128xf32> to vector<1x1x1x128xf32>
    %8 = vector.broadcast %7 : vector<1x1x1x128xf32> to vector<2x8x8x128xf32>
    %9 = arith.addf %5, %8 : vector<2x8x8x128xf32>
    %cst = arith.constant 0.000000e+00 : f32
    %10 = vector.broadcast %cst : f32 to vector<2x8x8x128xf32>
    %11 = arith.maximumf %9, %10 : vector<2x8x8x128xf32>
    %cst_9 = arith.constant 0.000000e+00 : bf16
    %12 = vector.broadcast %cst_9 : bf16 to vector<2x1x10x128xbf16>
    %c0_10 = arith.constant 0 : index
    %c0_11 = arith.constant 0 : index
    %c0_12 = arith.constant 0 : index
    %c0_13 = arith.constant 0 : index
    %13 = vector.load %arg8[%c0_10, %c0_11, %c0_12, %c0_13] : memref<2x10x10x128xbf16, #tpu.memory_space<vmem>>, vector<2x1x10x128xbf16>
    tpu.vector_store %arg8[%c0_10, %c0_11, %c0_12, %c0_13], %12 {strides = array<i32>} : memref<2x10x10x128xbf16, #tpu.memory_space<vmem>>, vector<2x1x10x128xbf16>,
    %cst_14 = arith.constant 0.000000e+00 : bf16
    %14 = vector.broadcast %cst_14 : bf16 to vector<2x1x10x128xbf16>
    %c0_15 = arith.constant 0 : index
    %c9 = arith.constant 9 : index
    %c0_16 = arith.constant 0 : index
    %c0_17 = arith.constant 0 : index
    %15 = vector.load %arg8[%c0_15, %c9, %c0_16, %c0_17] : memref<2x10x10x128xbf16, #tpu.memory_space<vmem>>, vector<2x1x10x128xbf16>
    tpu.vector_store %arg8[%c0_15, %c9, %c0_16, %c0_17], %14 {strides = array<i32>} : memref<2x10x10x128xbf16, #tpu.memory_space<vmem>>, vector<2x1x10x128xbf16>,
    %cst_18 = arith.constant 0.000000e+00 : bf16
    %16 = vector.broadcast %cst_18 : bf16 to vector<2x10x1x128xbf16>
    %c0_19 = arith.constant 0 : index
    %c0_20 = arith.constant 0 : index
    %c0_21 = arith.constant 0 : index
    %c0_22 = arith.constant 0 : index
    %17 = vector.load %arg8[%c0_19, %c0_20, %c0_21, %c0_22] : memref<2x10x10x128xbf16, #tpu.memory_space<vmem>>, vector<2x10x1x128xbf16>
    tpu.vector_store %arg8[%c0_19, %c0_20, %c0_21, %c0_22], %16 {strides = array<i32>} : memref<2x10x10x128xbf16, #tpu.memory_space<vmem>>, vector<2x10x1x128xbf16>,
    %cst_23 = arith.constant 0.000000e+00 : bf16
    %18 = vector.broadcast %cst_23 : bf16 to vector<2x10x1x128xbf16>
    %c0_24 = arith.constant 0 : index
    %c0_25 = arith.constant 0 : index
    %c9_26 = arith.constant 9 : index
    %c0_27 = arith.constant 0 : index
    %19 = vector.load %arg8[%c0_24, %c0_25, %c9_26, %c0_27] : memref<2x10x10x128xbf16, #tpu.memory_space<vmem>>, vector<2x10x1x128xbf16>
    tpu.vector_store %arg8[%c0_24, %c0_25, %c9_26, %c0_27], %18 {strides = array<i32>} : memref<2x10x10x128xbf16, #tpu.memory_space<vmem>>, vector<2x10x1x128xbf16>,
    %20 = arith.truncf %11 : vector<2x8x8x128xf32> to vector<2x8x8x128xbf16>
    %c0_28 = arith.constant 0 : index
    %c1 = arith.constant 1 : index
    %c1_29 = arith.constant 1 : index
    %c0_30 = arith.constant 0 : index
    %21 = vector.load %arg8[%c0_28, %c1, %c1_29, %c0_30] : memref<2x10x10x128xbf16, #tpu.memory_space<vmem>>, vector<2x8x8x128xbf16>
    tpu.vector_store %arg8[%c0_28, %c1, %c1_29, %c0_30], %20 {strides = array<i32>} : memref<2x10x10x128xbf16, #tpu.memory_space<vmem>>, vector<2x8x8x128xbf16>,
    %c0_31 = arith.constant 0 : index
    %c0_32 = arith.constant 0 : index
    %c0_33 = arith.constant 0 : index
    %c0_34 = arith.constant 0 : index
    %22 = vector.load %arg8[%c0_31, %c0_32, %c0_33, %c0_34] : memref<2x10x10x128xbf16, #tpu.memory_space<vmem>>, vector<2x8x8x128xbf16>
    %23 = vector.shape_cast %22 : vector<2x8x8x128xbf16> to vector<128x128xbf16>
    %c0_35 = arith.constant 0 : index
    %c0_36 = arith.constant 0 : index
    %24 = vector.load %arg9[%c0_35, %c0_36] : memref<128x1152xbf16, #tpu.memory_space<vmem>>, vector<128x128xbf16>
    tpu.vector_store %arg9[%c0_35, %c0_36], %23 {strides = array<i32>} : memref<128x1152xbf16, #tpu.memory_space<vmem>>, vector<128x128xbf16>,
    %c0_37 = arith.constant 0 : index
    %c0_38 = arith.constant 0 : index
    %c1_39 = arith.constant 1 : index
    %c0_40 = arith.constant 0 : index
    %25 = vector.load %arg8[%c0_37, %c0_38, %c1_39, %c0_40] : memref<2x10x10x128xbf16, #tpu.memory_space<vmem>>, vector<2x8x8x128xbf16>
    %26 = vector.shape_cast %25 : vector<2x8x8x128xbf16> to vector<128x128xbf16>
    %c0_41 = arith.constant 0 : index
    %c128 = arith.constant 128 : index
    %27 = vector.load %arg9[%c0_41, %c128] : memref<128x1152xbf16, #tpu.memory_space<vmem>>, vector<128x128xbf16>
    tpu.vector_store %arg9[%c0_41, %c128], %26 {strides = array<i32>} : memref<128x1152xbf16, #tpu.memory_space<vmem>>, vector<128x128xbf16>,
    %c0_42 = arith.constant 0 : index
    %c0_43 = arith.constant 0 : index
    %c2 = arith.constant 2 : index
    %c0_44 = arith.constant 0 : index
    %28 = vector.load %arg8[%c0_42, %c0_43, %c2, %c0_44] : memref<2x10x10x128xbf16, #tpu.memory_space<vmem>>, vector<2x8x8x128xbf16>
    %29 = vector.shape_cast %28 : vector<2x8x8x128xbf16> to vector<128x128xbf16>
    %c0_45 = arith.constant 0 : index
    %c256 = arith.constant 256 : index
    %30 = vector.load %arg9[%c0_45, %c256] : memref<128x1152xbf16, #tpu.memory_space<vmem>>, vector<128x128xbf16>
    tpu.vector_store %arg9[%c0_45, %c256], %29 {strides = array<i32>} : memref<128x1152xbf16, #tpu.memory_space<vmem>>, vector<128x128xbf16>,
    %c0_46 = arith.constant 0 : index
    %c1_47 = arith.constant 1 : index
    %c0_48 = arith.constant 0 : index
    %c0_49 = arith.constant 0 : index
    %31 = vector.load %arg8[%c0_46, %c1_47, %c0_48, %c0_49] : memref<2x10x10x128xbf16, #tpu.memory_space<vmem>>, vector<2x8x8x128xbf16>
    %32 = vector.shape_cast %31 : vector<2x8x8x128xbf16> to vector<128x128xbf16>
    %c0_50 = arith.constant 0 : index
    %c384 = arith.constant 384 : index
    %33 = vector.load %arg9[%c0_50, %c384] : memref<128x1152xbf16, #tpu.memory_space<vmem>>, vector<128x128xbf16>
    tpu.vector_store %arg9[%c0_50, %c384], %32 {strides = array<i32>} : memref<128x1152xbf16, #tpu.memory_space<vmem>>, vector<128x128xbf16>,
    %c0_51 = arith.constant 0 : index
    %c1_52 = arith.constant 1 : index
    %c1_53 = arith.constant 1 : index
    %c0_54 = arith.constant 0 : index
    %34 = vector.load %arg8[%c0_51, %c1_52, %c1_53, %c0_54] : memref<2x10x10x128xbf16, #tpu.memory_space<vmem>>, vector<2x8x8x128xbf16>
    %35 = vector.shape_cast %34 : vector<2x8x8x128xbf16> to vector<128x128xbf16>
    %c0_55 = arith.constant 0 : index
    %c512 = arith.constant 512 : index
    %36 = vector.load %arg9[%c0_55, %c512] : memref<128x1152xbf16, #tpu.memory_space<vmem>>, vector<128x128xbf16>
    tpu.vector_store %arg9[%c0_55, %c512], %35 {strides = array<i32>} : memref<128x1152xbf16, #tpu.memory_space<vmem>>, vector<128x128xbf16>,
    %c0_56 = arith.constant 0 : index
    %c1_57 = arith.constant 1 : index
    %c2_58 = arith.constant 2 : index
    %c0_59 = arith.constant 0 : index
    %37 = vector.load %arg8[%c0_56, %c1_57, %c2_58, %c0_59] : memref<2x10x10x128xbf16, #tpu.memory_space<vmem>>, vector<2x8x8x128xbf16>
    %38 = vector.shape_cast %37 : vector<2x8x8x128xbf16> to vector<128x128xbf16>
    %c0_60 = arith.constant 0 : index
    %c640 = arith.constant 640 : index
    %39 = vector.load %arg9[%c0_60, %c640] : memref<128x1152xbf16, #tpu.memory_space<vmem>>, vector<128x128xbf16>
    tpu.vector_store %arg9[%c0_60, %c640], %38 {strides = array<i32>} : memref<128x1152xbf16, #tpu.memory_space<vmem>>, vector<128x128xbf16>,
    %c0_61 = arith.constant 0 : index
    %c2_62 = arith.constant 2 : index
    %c0_63 = arith.constant 0 : index
    %c0_64 = arith.constant 0 : index
    %40 = vector.load %arg8[%c0_61, %c2_62, %c0_63, %c0_64] : memref<2x10x10x128xbf16, #tpu.memory_space<vmem>>, vector<2x8x8x128xbf16>
    %41 = vector.shape_cast %40 : vector<2x8x8x128xbf16> to vector<128x128xbf16>
    %c0_65 = arith.constant 0 : index
    %c768 = arith.constant 768 : index
    %42 = vector.load %arg9[%c0_65, %c768] : memref<128x1152xbf16, #tpu.memory_space<vmem>>, vector<128x128xbf16>
    tpu.vector_store %arg9[%c0_65, %c768], %41 {strides = array<i32>} : memref<128x1152xbf16, #tpu.memory_space<vmem>>, vector<128x128xbf16>,
    %c0_66 = arith.constant 0 : index
    %c2_67 = arith.constant 2 : index
    %c1_68 = arith.constant 1 : index
    %c0_69 = arith.constant 0 : index
    %43 = vector.load %arg8[%c0_66, %c2_67, %c1_68, %c0_69] : memref<2x10x10x128xbf16, #tpu.memory_space<vmem>>, vector<2x8x8x128xbf16>
    %44 = vector.shape_cast %43 : vector<2x8x8x128xbf16> to vector<128x128xbf16>
    %c0_70 = arith.constant 0 : index
    %c896 = arith.constant 896 : index
    %45 = vector.load %arg9[%c0_70, %c896] : memref<128x1152xbf16, #tpu.memory_space<vmem>>, vector<128x128xbf16>
    tpu.vector_store %arg9[%c0_70, %c896], %44 {strides = array<i32>} : memref<128x1152xbf16, #tpu.memory_space<vmem>>, vector<128x128xbf16>,
    %c0_71 = arith.constant 0 : index
    %c2_72 = arith.constant 2 : index
    %c2_73 = arith.constant 2 : index
    %c0_74 = arith.constant 0 : index
    %46 = vector.load %arg8[%c0_71, %c2_72, %c2_73, %c0_74] : memref<2x10x10x128xbf16, #tpu.memory_space<vmem>>, vector<2x8x8x128xbf16>
    %47 = vector.shape_cast %46 : vector<2x8x8x128xbf16> to vector<128x128xbf16>
    %c0_75 = arith.constant 0 : index
    %c1024 = arith.constant 1024 : index
    %48 = vector.load %arg9[%c0_75, %c1024] : memref<128x1152xbf16, #tpu.memory_space<vmem>>, vector<128x128xbf16>
    tpu.vector_store %arg9[%c0_75, %c1024], %47 {strides = array<i32>} : memref<128x1152xbf16, #tpu.memory_space<vmem>>, vector<128x128xbf16>,
    %c0_76 = arith.constant 0 : index
    %c0_77 = arith.constant 0 : index
    %49 = vector.load %arg9[%c0_76, %c0_77] : memref<128x1152xbf16, #tpu.memory_space<vmem>>, vector<128x1152xbf16>
    %c0_78 = arith.constant 0 : index
    %c0_79 = arith.constant 0 : index
    %50 = vector.load %arg4[%c0_78, %c0_79] : memref<1152x128xbf16, #tpu.memory_space<vmem>>, vector<1152x128xbf16>
    %cst_80 = arith.constant dense<0.000000e+00> : vector<128x128xf32>
    %51 = tpu.matmul %49, %50, %cst_80 {dimension_numbers = #tpu.dot_dimension_numbers<[1], [0], [0], [1], [0, 0, 1, 1], [], []>} : vector<128x1152xbf16>, vector<1152x128xbf16>, vector<128x128xf32> -> vector<128x128xf32>
    %cst_81 = arith.constant dense<0.000000e+00> : vector<128xf32>
    %52 = vector.multi_reduction <add>, %51, %cst_81 [0] : vector<128x128xf32> to vector<128xf32>
    %53 = vector.shape_cast %52 : vector<128xf32> to vector<1x128xf32>
    %cst_82 = arith.constant 7.812500e-03 : f32
    %54 = vector.broadcast %cst_82 : f32 to vector<1x128xf32>
    %55 = arith.mulf %53, %54 : vector<1x128xf32>
    %56 = vector.broadcast %55 : vector<1x128xf32> to vector<128x128xf32>
    %57 = arith.subf %51, %56 : vector<128x128xf32>
    %58 = arith.mulf %57, %57 : vector<128x128xf32>
    %cst_83 = arith.constant dense<0.000000e+00> : vector<128xf32>
    %59 = vector.multi_reduction <add>, %58, %cst_83 [0] : vector<128x128xf32> to vector<128xf32>
    %60 = vector.shape_cast %59 : vector<128xf32> to vector<1x128xf32>
    %c0_84 = arith.constant 0 : index
    %c0_85 = arith.constant 0 : index
    %c0_86 = arith.constant 0 : index
    %61 = vector.load %arg6[%c0_84, %c0_85, %c0_86] : memref<1x1x128xf32, #tpu.memory_space<vmem>>, vector<1x1x128xf32>
    %62 = vector.shape_cast %61 : vector<1x1x128xf32> to vector<1x128xf32>
    %63 = vector.shape_cast %53 : vector<1x128xf32> to vector<1x1x128xf32>
    tpu.vector_store %arg6[%c0_84, %c0_85, %c0_86], %63 {strides = array<i32>} : memref<1x1x128xf32, #tpu.memory_space<vmem>>, vector<1x1x128xf32>,
    %c0_87 = arith.constant 0 : index
    %c0_88 = arith.constant 0 : index
    %c0_89 = arith.constant 0 : index
    %64 = vector.load %arg7[%c0_87, %c0_88, %c0_89] : memref<1x1x128xf32, #tpu.memory_space<vmem>>, vector<1x1x128xf32>
    %65 = vector.shape_cast %64 : vector<1x1x128xf32> to vector<1x128xf32>
    %66 = vector.shape_cast %60 : vector<1x128xf32> to vector<1x1x128xf32>
    tpu.vector_store %arg7[%c0_87, %c0_88, %c0_89], %66 {strides = array<i32>} : memref<1x1x128xf32, #tpu.memory_space<vmem>>, vector<1x1x128xf32>,
    %67 = vector.shape_cast %51 : vector<128x128xf32> to vector<2x8x8x128xf32>
    %68 = arith.truncf %67 : vector<2x8x8x128xf32> to vector<2x8x8x128xbf16>
    %c0_90 = arith.constant 0 : index
    %c0_91 = arith.constant 0 : index
    %c0_92 = arith.constant 0 : index
    %c0_93 = arith.constant 0 : index
    %69 = vector.load %arg5[%c0_90, %c0_91, %c0_92, %c0_93] : memref<2x8x8x128xbf16, #tpu.memory_space<vmem>>, vector<2x8x8x128xbf16>
    tpu.vector_store %arg5[%c0_90, %c0_91, %c0_92, %c0_93], %68 {strides = array<i32>} : memref<2x8x8x128xbf16, #tpu.memory_space<vmem>>, vector<2x8x8x128xbf16>,
    return
  }
  func.func @transform_0(%arg0: i32) -> (i32, i32, i32, i32) {
    %c0_i32 = arith.constant 0 : i32
    %c0_i32_0 = arith.constant 0 : i32
    %c0_i32_1 = arith.constant 0 : i32
    %c0_i32_2 = arith.constant 0 : i32
    return %arg0, %c0_i32, %c0_i32_0, %c0_i32_1 : i32, i32, i32, i32
  }
  func.func @transform_1(%arg0: i32) -> (i32, i32, i32) {
    %c0_i32 = arith.constant 0 : i32
    %c0_i32_0 = arith.constant 0 : i32
    %c0_i32_1 = arith.constant 0 : i32
    %c0_i32_2 = arith.constant 0 : i32
    return %c0_i32, %c0_i32_0, %c0_i32_1 : i32, i32, i32
  }
  func.func @transform_2(%arg0: i32) -> (i32, i32, i32) {
    %c0_i32 = arith.constant 0 : i32
    %c0_i32_0 = arith.constant 0 : i32
    %c0_i32_1 = arith.constant 0 : i32
    %c0_i32_2 = arith.constant 0 : i32
    return %c0_i32, %c0_i32_0, %c0_i32_1 : i32, i32, i32
  }
  func.func @transform_3(%arg0: i32) -> (i32, i32) {
    %c0_i32 = arith.constant 0 : i32
    %c0_i32_0 = arith.constant 0 : i32
    %c0_i32_1 = arith.constant 0 : i32
    return %c0_i32, %c0_i32_0 : i32, i32
  }
  func.func @transform_4(%arg0: i32) -> (i32, i32, i32, i32) {
    %c0_i32 = arith.constant 0 : i32
    %c0_i32_0 = arith.constant 0 : i32
    %c0_i32_1 = arith.constant 0 : i32
    %c0_i32_2 = arith.constant 0 : i32
    return %arg0, %c0_i32, %c0_i32_0, %c0_i32_1 : i32, i32, i32, i32
  }
  func.func @transform_5(%arg0: i32) -> (i32, i32, i32) {
    %c0_i32 = arith.constant 0 : i32
    %c0_i32_0 = arith.constant 0 : i32
    %c0_i32_1 = arith.constant 0 : i32
    return %arg0, %c0_i32, %c0_i32_0 : i32, i32, i32
  }
  func.func @transform_6(%arg0: i32) -> (i32, i32, i32) {
    %c0_i32 = arith.constant 0 : i32
    %c0_i32_0 = arith.constant 0 : i32
    %c0_i32_1 = arith.constant 0 : i32
    return %arg0, %c0_i32, %c0_i32_0 : i32, i32, i32
  }
}

</mosaic_0001>

<llo_original>
// kernel: down_forward.5
$region0: #{down_forward.5}
  #allocation0 [shape = 'u32[]', space=smem, size = 0x4, offset = 0x4, fixed_abs, tag = 'smem constant byte address 0x4 - core index']
  #allocation1 [shape = 'u32[144,128]{1,0:T(1,128)}', space=vmem, size = 0x12000, scoped, tag = 'internal scratch']
  %s0 = inlined_call_operand.vmem [shape: bf16[128,128], index: 0, kind: input, shape index: {}]
  %s1 = inlined_call_operand.vmem [shape: f32[1,128], index: 1, kind: input, shape index: {}]
  %s2 = inlined_call_operand.vmem [shape: f32[1,128], index: 2, kind: input, shape index: {}]
  %s3 = inlined_call_operand.vmem [shape: f32[128,128], index: 3, kind: output, shape index: {}]
  %s4 = sld [smem:[#allocation0]]
  $region22: #{down_forward.5} parent=0
    _
  %s6 = ssub.s32 1, %s4
  %s7 = scalar_select 0, %s6, %s4
  // Predicated region
  $region2: #{down_forward.5} parent=0 // pred_check
    _
  $region3: #{down_forward.5} parent=0 // pred_check_branch
    %9 = sbr.rel (0) target = $region5
  $region4: #{down_forward.5} parent=0 // pred_region
    _
  $region5: #{down_forward.5} parent=0 // pred_fallthru
    _
  // Predicated region
  $region6: #{down_forward.5} parent=0 // pred_check
    _
  $region7: #{down_forward.5} parent=0 // pred_check_branch
    %11 = sbr.rel (0) target = $region9
  $region8: #{down_forward.5} parent=0 // pred_region
    _
  $region9: #{down_forward.5} parent=0 // pred_fallthru
    _
  // Predicated region
  $region10: #{down_forward.5} parent=0 // pred_check
    _
  $region11: #{down_forward.5} parent=0 // pred_check_branch
    %13 = sbr.rel (0) target = $region13
  $region12: #{down_forward.5} parent=0 // pred_region
    _
  $region13: #{down_forward.5} parent=0 // pred_fallthru
    _
  %v14 = vld [vmem:[%s0] sm:$0xf]
  %v15 = vld [vmem:[%s0 + $0x4] sm:$0xf]
  %v16 = vld [vmem:[%s0 + $0x8] sm:$0xf]
  %v17 = vld [vmem:[%s0 + $0xc] sm:$0xf]
  %v18 = vld [vmem:[%s0 + $0x10] sm:$0xf]
  %v19 = vld [vmem:[%s0 + $0x14] sm:$0xf]
  %v20 = vld [vmem:[%s0 + $0x18] sm:$0xf]
  %v21 = vld [vmem:[%s0 + $0x1c] sm:$0xf]
  %v22 = vld [vmem:[%s0 + $0x20] sm:$0xf]
  %v23 = vld [vmem:[%s0 + $0x24] sm:$0xf]
  %v24 = vld [vmem:[%s0 + $0x28] sm:$0xf]
  %v25 = vld [vmem:[%s0 + $0x2c] sm:$0xf]
  %v26 = vld [vmem:[%s0 + $0x30] sm:$0xf]
  %v27 = vld [vmem:[%s0 + $0x34] sm:$0xf]
  %v28 = vld [vmem:[%s0 + $0x38] sm:$0xf]
  %v29 = vld [vmem:[%s0 + $0x3c] sm:$0xf]
  %v30 = vunpack.c.l.bf16 %v14
  %v31 = vunpack.c.l.bf16 %v15
  %v32 = vunpack.c.l.bf16 %v16
  %v33 = vunpack.c.l.bf16 %v17
  %v34 = vunpack.c.l.bf16 %v18
  %v35 = vunpack.c.l.bf16 %v19
  %v36 = vunpack.c.l.bf16 %v20
  %v37 = vunpack.c.l.bf16 %v21
  %v38 = vunpack.c.l.bf16 %v22
  %v39 = vunpack.c.l.bf16 %v23
  %v40 = vunpack.c.l.bf16 %v24
  %v41 = vunpack.c.l.bf16 %v25
  %v42 = vunpack.c.l.bf16 %v26
  %v43 = vunpack.c.l.bf16 %v27
  %v44 = vunpack.c.l.bf16 %v28
  %v45 = vunpack.c.l.bf16 %v29
  %v46 = vld [vmem:[%s1] sm:$0x1]
  %v48 = vlaneseq
  %v49 = vshrl.u32 %v48, 7
  %v50 = vsub.s32 0, %v49
  %v51 = vrot.slane %v46, %v50
  %v53 = vmul.f32 %v30, %v51
  %v54 = vmul.f32 %v31, %v51
  %v55 = vmul.f32 %v32, %v51
  %v56 = vmul.f32 %v33, %v51
  %v57 = vmul.f32 %v34, %v51
  %v58 = vmul.f32 %v35, %v51
  %v59 = vmul.f32 %v36, %v51
  %v60 = vmul.f32 %v37, %v51
  %v61 = vmul.f32 %v38, %v51
  %v62 = vmul.f32 %v39, %v51
  %v63 = vmul.f32 %v40, %v51
  %v64 = vmul.f32 %v41, %v51
  %v65 = vmul.f32 %v42, %v51
  %v66 = vmul.f32 %v43, %v51
  %v67 = vmul.f32 %v44, %v51
  %v68 = vmul.f32 %v45, %v51
  %v69 = vld [vmem:[%s2] sm:$0x1]
  %v71 = vlaneseq
  %v72 = vshrl.u32 %v71, 7
  %v73 = vsub.s32 0, %v72
  %v74 = vrot.slane %v69, %v73
  %v76 = vadd.f32 %v53, %v74
  %v77 = vadd.f32 %v54, %v74
  %v78 = vadd.f32 %v55, %v74
  %v79 = vadd.f32 %v56, %v74
  %v80 = vadd.f32 %v57, %v74
  %v81 = vadd.f32 %v58, %v74
  %v82 = vadd.f32 %v59, %v74
  %v83 = vadd.f32 %v60, %v74
  %v84 = vadd.f32 %v61, %v74
  %v85 = vadd.f32 %v62, %v74
  %v86 = vadd.f32 %v63, %v74
  %v87 = vadd.f32 %v64, %v74
  %v88 = vadd.f32 %v65, %v74
  %v89 = vadd.f32 %v66, %v74
  %v90 = vadd.f32 %v67, %v74
  %v91 = vadd.f32 %v68, %v74
  %v92 = vmax.f32 %v76, 0.0
  %v93 = vmax.f32 %v77, 0.0
  %v94 = vmax.f32 %v78, 0.0
  %v95 = vmax.f32 %v79, 0.0
  %v96 = vmax.f32 %v80, 0.0
  %v97 = vmax.f32 %v81, 0.0
  %v98 = vmax.f32 %v82, 0.0
  %v99 = vmax.f32 %v83, 0.0
  %v100 = vmax.f32 %v84, 0.0
  %v101 = vmax.f32 %v85, 0.0
  %v102 = vmax.f32 %v86, 0.0
  %v103 = vmax.f32 %v87, 0.0
  %v104 = vmax.f32 %v88, 0.0
  %v105 = vmax.f32 %v89, 0.0
  %v106 = vmax.f32 %v90, 0.0
  %v107 = vmax.f32 %v91, 0.0
  %108 = vst [vmem:[%s3] sm:$0xff] %v92
  %109 = vst [vmem:[%s3 + $0x8] sm:$0xff] %v93
  %110 = vst [vmem:[%s3 + $0x10] sm:$0xff] %v94
  %111 = vst [vmem:[%s3 + $0x18] sm:$0xff] %v95
  %112 = vst [vmem:[%s3 + $0x20] sm:$0xff] %v96
  %113 = vst [vmem:[%s3 + $0x28] sm:$0xff] %v97
  %114 = vst [vmem:[%s3 + $0x30] sm:$0xff] %v98
  %115 = vst [vmem:[%s3 + $0x38] sm:$0xff] %v99
  %116 = vst [vmem:[%s3 + $0x40] sm:$0xff] %v100
  %117 = vst [vmem:[%s3 + $0x48] sm:$0xff] %v101
  %118 = vst [vmem:[%s3 + $0x50] sm:$0xff] %v102
  %119 = vst [vmem:[%s3 + $0x58] sm:$0xff] %v103
  %120 = vst [vmem:[%s3 + $0x60] sm:$0xff] %v104
  %121 = vst [vmem:[%s3 + $0x68] sm:$0xff] %v105
  %122 = vst [vmem:[%s3 + $0x70] sm:$0xff] %v106
  %123 = vst [vmem:[%s3 + $0x78] sm:$0xff] %v107
  // Predicated region
  $region14: #{down_forward.5} parent=0 // pred_check
    _
  $region15: #{down_forward.5} parent=0 // pred_check_branch
    %125 = sbr.rel (0) target = $region17
  $region16: #{down_forward.5} parent=0 // pred_region
    _
  $region17: #{down_forward.5} parent=0 // pred_fallthru
    _
  // Predicated region
  $region18: #{down_forward.5} parent=0 // pred_check
    _
  $region19: #{down_forward.5} parent=0 // pred_check_branch
    %127 = sbr.rel (0) target = $region21
  $region20: #{down_forward.5} parent=0 // pred_region
    _
  $region21: #{down_forward.5} parent=0 // pred_fallthru
    _

// kernel: down_forward.3
$region0: #{down_forward.3}
  #allocation0 [shape = 'u32[]', space=smem, size = 0x4, offset = 0x4, fixed_abs, tag = 'smem constant byte address 0x4 - core index']
  #allocation1 [shape = 'u32[144,128]{1,0:T(1,128)}', space=vmem, size = 0x12000, scoped, tag = 'internal scratch']
  #allocation2 [shape = 'bf16[2,10,10,4]{3,2,1,0:T(8,128)(2,1)}', space=vmem, size = 0x14000, scoped, tag = 'scratch operand']
  #allocation3 [shape = 'bf16[128,128]{1,0:T(16,128)(2,1)}', space=vmem, size = 0x8000, scoped, tag = 'scratch operand']
  %s0 = inlined_call_operand.vmem [shape: bf16[2,8,2,8,8], index: 0, kind: input, shape index: {}]
  %s1 = inlined_call_operand.vmem [shape: bf16[128,128], index: 1, kind: input, shape index: {}]
  %s2 = inlined_call_operand.vmem [shape: bf16[2,8,8,128], index: 2, kind: output, shape index: {0}]
  %s3 = inlined_call_operand.vmem [shape: f32[1,1,128], index: 3, kind: output, shape index: {1}]
  %s4 = inlined_call_operand.vmem [shape: f32[1,1,128], index: 4, kind: output, shape index: {2}]
  %5 = xla_tuple %s2, %s3, %s4
  %s6 = sld [smem:[#allocation0]]
  $region34: #{down_forward.3} parent=0
    _
  %s8 = ssub.s32 1, %s6
  %s9 = scalar_select 0, %s8, %s6
  // Predicated region
  $region2: #{down_forward.3} parent=0 // pred_check
    _
  $region3: #{down_forward.3} parent=0 // pred_check_branch
    %11 = sbr.rel (0) target = $region5
  $region4: #{down_forward.3} parent=0 // pred_region
    _
  $region5: #{down_forward.3} parent=0 // pred_fallthru
    _
  // Predicated region
  $region6: #{down_forward.3} parent=0 // pred_check
    _
  $region7: #{down_forward.3} parent=0 // pred_check_branch
    %13 = sbr.rel (0) target = $region9
  $region8: #{down_forward.3} parent=0 // pred_region
    _
  $region9: #{down_forward.3} parent=0 // pred_fallthru
    _
  %v15 = vld [vmem:[%s0] sm:$0xf]
  %v16 = vld [vmem:[%s0 + $0x4] sm:$0xf]
  %v17 = vld [vmem:[%s0 + $0x8] sm:$0xf]
  %v18 = vld [vmem:[%s0 + $0xc] sm:$0xf]
  %v19 = vld [vmem:[%s0 + $0x10] sm:$0xf]
  %v20 = vld [vmem:[%s0 + $0x14] sm:$0xf]
  %v21 = vld [vmem:[%s0 + $0x18] sm:$0xf]
  %v22 = vld [vmem:[%s0 + $0x1c] sm:$0xf]
  %v23 = vld [vmem:[%s0 + $0x20] sm:$0xf]
  %v24 = vld [vmem:[%s0 + $0x24] sm:$0xf]
  %v25 = vld [vmem:[%s0 + $0x28] sm:$0xf]
  %v26 = vld [vmem:[%s0 + $0x2c] sm:$0xf]
  %v27 = vld [vmem:[%s0 + $0x30] sm:$0xf]
  %v28 = vld [vmem:[%s0 + $0x34] sm:$0xf]
  %v29 = vld [vmem:[%s0 + $0x38] sm:$0xf]
  %v30 = vld [vmem:[%s0 + $0x3c] sm:$0xf]
  %v31 = vld [vmem:[%s0 + $0x40] sm:$0xf]
  %v32 = vld [vmem:[%s0 + $0x44] sm:$0xf]
  %v33 = vld [vmem:[%s0 + $0x48] sm:$0xf]
  %v34 = vld [vmem:[%s0 + $0x4c] sm:$0xf]
  %v35 = vld [vmem:[%s0 + $0x50] sm:$0xf]
  %v36 = vld [vmem:[%s0 + $0x54] sm:$0xf]
  %v37 = vld [vmem:[%s0 + $0x58] sm:$0xf]
  %v38 = vld [vmem:[%s0 + $0x5c] sm:$0xf]
  %v39 = vld [vmem:[%s0 + $0x60] sm:$0xf]
  %v40 = vld [vmem:[%s0 + $0x64] sm:$0xf]
  %v41 = vld [vmem:[%s0 + $0x68] sm:$0xf]
  %v42 = vld [vmem:[%s0 + $0x6c] sm:$0xf]
  %v43 = vld [vmem:[%s0 + $0x70] sm:$0xf]
  %v44 = vld [vmem:[%s0 + $0x74] sm:$0xf]
  %v45 = vld [vmem:[%s0 + $0x78] sm:$0xf]
  %v46 = vld [vmem:[%s0 + $0x7c] sm:$0xf]
  %v47 = vmax.bf16 %v15, %v16
  %v48 = vmax.bf16 %v17, %v18
  %v49 = vmax.bf16 %v19, %v20
  %v50 = vmax.bf16 %v21, %v22
  %v51 = vmax.bf16 %v23, %v24
  %v52 = vmax.bf16 %v25, %v26
  %v53 = vmax.bf16 %v27, %v28
  %v54 = vmax.bf16 %v29, %v30
  %v55 = vmax.bf16 %v31, %v32
  %v56 = vmax.bf16 %v33, %v34
  %v57 = vmax.bf16 %v35, %v36
  %v58 = vmax.bf16 %v37, %v38
  %v59 = vmax.bf16 %v39, %v40
  %v60 = vmax.bf16 %v41, %v42
  %v61 = vmax.bf16 %v43, %v44
  %v62 = vmax.bf16 %v45, %v46
  %79 = vrot.lane.b32.xlu0 %v47, 124
  %v80 = vpop.permute.xlu0 %79
  %81 = vrot.lane.b32.xlu0 %v48, 124
  %v82 = vpop.permute.xlu0 %81
  %83 = vrot.lane.b32.xlu0 %v49, 124
  %v84 = vpop.permute.xlu0 %83
  %85 = vrot.lane.b32.xlu0 %v50, 124
  %v86 = vpop.permute.xlu0 %85
  %87 = vrot.lane.b32.xlu0 %v51, 124
  %v88 = vpop.permute.xlu0 %87
  %89 = vrot.lane.b32.xlu0 %v52, 124
  %v90 = vpop.permute.xlu0 %89
  %91 = vrot.lane.b32.xlu0 %v53, 124
  %v92 = vpop.permute.xlu0 %91
  %93 = vrot.lane.b32.xlu0 %v54, 124
  %v94 = vpop.permute.xlu0 %93
  %95 = vrot.lane.b32.xlu0 %v55, 124
  %v96 = vpop.permute.xlu0 %95
  %97 = vrot.lane.b32.xlu0 %v56, 124
  %v98 = vpop.permute.xlu0 %97
  %99 = vrot.lane.b32.xlu0 %v57, 124
  %v100 = vpop.permute.xlu0 %99
  %101 = vrot.lane.b32.xlu0 %v58, 124
  %v102 = vpop.permute.xlu0 %101
  %103 = vrot.lane.b32.xlu0 %v59, 124
  %v104 = vpop.permute.xlu0 %103
  %105 = vrot.lane.b32.xlu0 %v60, 124
  %v106 = vpop.permute.xlu0 %105
  %107 = vrot.lane.b32.xlu0 %v61, 124
  %v108 = vpop.permute.xlu0 %107
  %109 = vrot.lane.b32.xlu0 %v62, 124
  %v110 = vpop.permute.xlu0 %109
  %v127 = vmax.bf16 %v47, %v80
  %v128 = vmax.bf16 %v48, %v82
  %v129 = vmax.bf16 %v49, %v84
  %v130 = vmax.bf16 %v50, %v86
  %v131 = vmax.bf16 %v51, %v88
  %v132 = vmax.bf16 %v52, %v90
  %v133 = vmax.bf16 %v53, %v92
  %v134 = vmax.bf16 %v54, %v94
  %v135 = vmax.bf16 %v55, %v96
  %v136 = vmax.bf16 %v56, %v98
  %v137 = vmax.bf16 %v57, %v100
  %v138 = vmax.bf16 %v58, %v102
  %v139 = vmax.bf16 %v59, %v104
  %v140 = vmax.bf16 %v60, %v106
  %v141 = vmax.bf16 %v61, %v108
  %v142 = vmax.bf16 %v62, %v110
  %vm143 = vcmask 27648
  %144 = vst.msk [vmem:[#allocation2] sm:$0xf] %vm143, 0
  %vm145 = vcmask 24576
  %146 = vst.msk [vmem:[#allocation2 + $0x4] sm:$0x1] %vm145, 0
  %147 = vst.msk [vmem:[#allocation2 + $0x50] sm:$0xf] %vm143, 0
  %148 = vst.msk [vmem:[#allocation2 + $0x54] sm:$0x1] %vm145, 0
  %s149 = scalar_lea.vmem [#allocation2], 72
  %150 = vst.msk [vmem:[%s149] sm:$0xf] %vm143, 0
  %151 = vst.msk [vmem:[%s149 + $0x4] sm:$0x1] %vm145, 0
  %152 = vst.msk [vmem:[%s149 + $0x50] sm:$0xf] %vm143, 0
  %153 = vst.msk [vmem:[%s149 + $0x54] sm:$0x1] %vm145, 0
  %vm154 = vcmask 24576
  %vm155 = vsmask.f32 256
  %vm156 = vmand %vm154, %vm155
  %v157 = vld [vmem:[#allocation2] sm:$0x1]
  %v158 = vsel %vm156, 0, %v157
  %159 = vst [vmem:[#allocation2] sm:$0x1] %v158
  %v160 = vld [vmem:[#allocation2 + $0x8] sm:$0x1]
  %v161 = vsel %vm156, 0, %v160
  %162 = vst [vmem:[#allocation2 + $0x8] sm:$0x1] %v161
  %v163 = vld [vmem:[#allocation2 + $0x10] sm:$0x1]
  %v164 = vsel %vm156, 0, %v163
  %165 = vst [vmem:[#allocation2 + $0x10] sm:$0x1] %v164
  %v166 = vld [vmem:[#allocation2 + $0x18] sm:$0x1]
  %v167 = vsel %vm156, 0, %v166
  %168 = vst [vmem:[#allocation2 + $0x18] sm:$0x1] %v167
  %v169 = vld [vmem:[#allocation2 + $0x20] sm:$0x1]
  %v170 = vsel %vm156, 0, %v169
  %171 = vst [vmem:[#allocation2 + $0x20] sm:$0x1] %v170
  %v172 = vld [vmem:[#allocation2 + $0x28] sm:$0x1]
  %v173 = vsel %vm156, 0, %v172
  %174 = vst [vmem:[#allocation2 + $0x28] sm:$0x1] %v173
  %v175 = vld [vmem:[#allocation2 + $0x30] sm:$0x1]
  %v176 = vsel %vm156, 0, %v175
  %177 = vst [vmem:[#allocation2 + $0x30] sm:$0x1] %v176
  %v178 = vld [vmem:[#allocation2 + $0x38] sm:$0x1]
  %v179 = vsel %vm156, 0, %v178
  %180 = vst [vmem:[#allocation2 + $0x38] sm:$0x1] %v179
  %v181 = vld [vmem:[#allocation2 + $0x40] sm:$0x1]
  %v182 = vsel %vm156, 0, %v181
  %183 = vst [vmem:[#allocation2 + $0x40] sm:$0x1] %v182
  %v184 = vld [vmem:[#allocation2 + $0x48] sm:$0x1]
  %v185 = vsel %vm156, 0, %v184
  %186 = vst [vmem:[#allocation2 + $0x48] sm:$0x1] %v185
  %v187 = vld [vmem:[#allocation2 + $0x50] sm:$0x1]
  %v188 = vsel %vm156, 0, %v187
  %189 = vst [vmem:[#allocation2 + $0x50] sm:$0x1] %v188
  %v190 = vld [vmem:[#allocation2 + $0x58] sm:$0x1]
  %v191 = vsel %vm156, 0, %v190
  %192 = vst [vmem:[#allocation2 + $0x58] sm:$0x1] %v191
  %v193 = vld [vmem:[#allocation2 + $0x60] sm:$0x1]
  %v194 = vsel %vm156, 0, %v193
  %195 = vst [vmem:[#allocation2 + $0x60] sm:$0x1] %v194
  %v196 = vld [vmem:[#allocation2 + $0x68] sm:$0x1]
  %v197 = vsel %vm156, 0, %v196
  %198 = vst [vmem:[#allocation2 + $0x68] sm:$0x1] %v197
  %v199 = vld [vmem:[#allocation2 + $0x70] sm:$0x1]
  %v200 = vsel %vm156, 0, %v199
  %201 = vst [vmem:[#allocation2 + $0x70] sm:$0x1] %v200
  %v202 = vld [vmem:[#allocation2 + $0x78] sm:$0x1]
  %v203 = vsel %vm156, 0, %v202
  %204 = vst [vmem:[#allocation2 + $0x78] sm:$0x1] %v203
  %v205 = vld [vmem:[#allocation2 + $0x80] sm:$0x1]
  %v206 = vsel %vm156, 0, %v205
  %207 = vst [vmem:[#allocation2 + $0x80] sm:$0x1] %v206
  %v208 = vld [vmem:[#allocation2 + $0x88] sm:$0x1]
  %v209 = vsel %vm156, 0, %v208
  %210 = vst [vmem:[#allocation2 + $0x88] sm:$0x1] %v209
  %v211 = vld [vmem:[#allocation2 + $0x90] sm:$0x1]
  %v212 = vsel %vm156, 0, %v211
  %213 = vst [vmem:[#allocation2 + $0x90] sm:$0x1] %v212
  %v214 = vld [vmem:[#allocation2 + $0x98] sm:$0x1]
  %v215 = vsel %vm156, 0, %v214
  %216 = vst [vmem:[#allocation2 + $0x98] sm:$0x1] %v215
  %vm217 = vsmask.f32 7938
  %vm218 = vmand %vm154, %vm217
  %v219 = vld [vmem:[#allocation2 + $0x4] sm:$0x1]
  %v220 = vsel %vm218, 0, %v219
  %221 = vst [vmem:[#allocation2 + $0x4] sm:$0x1] %v220
  %v222 = vld [vmem:[#allocation2 + $0xc] sm:$0x1]
  %v223 = vsel %vm218, 0, %v222
  %224 = vst [vmem:[#allocation2 + $0xc] sm:$0x1] %v223
  %v225 = vld [vmem:[#allocation2 + $0x14] sm:$0x1]
  %v226 = vsel %vm218, 0, %v225
  %227 = vst [vmem:[#allocation2 + $0x14] sm:$0x1] %v226
  %v228 = vld [vmem:[#allocation2 + $0x1c] sm:$0x1]
  %v229 = vsel %vm218, 0, %v228
  %230 = vst [vmem:[#allocation2 + $0x1c] sm:$0x1] %v229
  %v231 = vld [vmem:[#allocation2 + $0x24] sm:$0x1]
  %v232 = vsel %vm218, 0, %v231
  %233 = vst [vmem:[#allocation2 + $0x24] sm:$0x1] %v232
  %v234 = vld [vmem:[#allocation2 + $0x2c] sm:$0x1]
  %v235 = vsel %vm218, 0, %v234
  %236 = vst [vmem:[#allocation2 + $0x2c] sm:$0x1] %v235
  %v237 = vld [vmem:[#allocation2 + $0x34] sm:$0x1]
  %v238 = vsel %vm218, 0, %v237
  %239 = vst [vmem:[#allocation2 + $0x34] sm:$0x1] %v238
  %v240 = vld [vmem:[#allocation2 + $0x3c] sm:$0x1]
  %v241 = vsel %vm218, 0, %v240
  %242 = vst [vmem:[#allocation2 + $0x3c] sm:$0x1] %v241
  %v243 = vld [vmem:[#allocation2 + $0x44] sm:$0x1]
  %v244 = vsel %vm218, 0, %v243
  %245 = vst [vmem:[#allocation2 + $0x44] sm:$0x1] %v244
  %v246 = vld [vmem:[#allocation2 + $0x4c] sm:$0x1]
  %v247 = vsel %vm218, 0, %v246
  %248 = vst [vmem:[#allocation2 + $0x4c] sm:$0x1] %v247
  %v249 = vld [vmem:[#allocation2 + $0x54] sm:$0x1]
  %v250 = vsel %vm218, 0, %v249
  %251 = vst [vmem:[#allocation2 + $0x54] sm:$0x1] %v250
  %v252 = vld [vmem:[#allocation2 + $0x5c] sm:$0x1]
  %v253 = vsel %vm218, 0, %v252
  %254 = vst [vmem:[#allocation2 + $0x5c] sm:$0x1] %v253
  %v255 = vld [vmem:[#allocation2 + $0x64] sm:$0x1]
  %v256 = vsel %vm218, 0, %v255
  %257 = vst [vmem:[#allocation2 + $0x64] sm:$0x1] %v256
  %v258 = vld [vmem:[#allocation2 + $0x6c] sm:$0x1]
  %v259 = vsel %vm218, 0, %v258
  %260 = vst [vmem:[#allocation2 + $0x6c] sm:$0x1] %v259
  %v261 = vld [vmem:[#allocation2 + $0x74] sm:$0x1]
  %v262 = vsel %vm218, 0, %v261
  %263 = vst [vmem:[#allocation2 + $0x74] sm:$0x1] %v262
  %v264 = vld [vmem:[#allocation2 + $0x7c] sm:$0x1]
  %v265 = vsel %vm218, 0, %v264
  %266 = vst [vmem:[#allocation2 + $0x7c] sm:$0x1] %v265
  %v267 = vld [vmem:[#allocation2 + $0x84] sm:$0x1]
  %v268 = vsel %vm218, 0, %v267
  %269 = vst [vmem:[#allocation2 + $0x84] sm:$0x1] %v268
  %v270 = vld [vmem:[#allocation2 + $0x8c] sm:$0x1]
  %v271 = vsel %vm218, 0, %v270
  %272 = vst [vmem:[#allocation2 + $0x8c] sm:$0x1] %v271
  %v273 = vld [vmem:[#allocation2 + $0x94] sm:$0x1]
  %v274 = vsel %vm218, 0, %v273
  %275 = vst [vmem:[#allocation2 + $0x94] sm:$0x1] %v274
  %v276 = vld [vmem:[#allocation2 + $0x9c] sm:$0x1]
  %v277 = vsel %vm218, 0, %v276
  %278 = vst [vmem:[#allocation2 + $0x9c] sm:$0x1] %v277
  %v280 = vshrl.u32 %v127, 16
  %v282 = vrot.slane %v280, 7
  %v283 = vshll.u32 %v127, 16
  %v285 = vor.u32 %v282, %v283
  %v286 = vrot.slane %v282, 4
  %v288 = vshrl.u32 %v128, 16
  %v290 = vrot.slane %v288, 7
  %v291 = vshll.u32 %v128, 16
  %v293 = vor.u32 %v290, %v291
  %v294 = vrot.slane %v290, 4
  %v296 = vshrl.u32 %v129, 16
  %v298 = vrot.slane %v296, 7
  %v299 = vshll.u32 %v129, 16
  %v301 = vor.u32 %v298, %v299
  %v302 = vrot.slane %v298, 4
  %v304 = vshrl.u32 %v130, 16
  %v306 = vrot.slane %v304, 7
  %v307 = vshll.u32 %v130, 16
  %v309 = vor.u32 %v306, %v307
  %v310 = vrot.slane %v306, 4
  %v312 = vshrl.u32 %v131, 16
  %v314 = vrot.slane %v312, 7
  %v315 = vshll.u32 %v131, 16
  %v317 = vor.u32 %v314, %v315
  %v318 = vrot.slane %v314, 4
  %v320 = vshrl.u32 %v132, 16
  %v322 = vrot.slane %v320, 7
  %v323 = vshll.u32 %v132, 16
  %v325 = vor.u32 %v322, %v323
  %v326 = vrot.slane %v322, 4
  %v328 = vshrl.u32 %v133, 16
  %v330 = vrot.slane %v328, 7
  %v331 = vshll.u32 %v133, 16
  %v333 = vor.u32 %v330, %v331
  %v334 = vrot.slane %v330, 4
  %v336 = vshrl.u32 %v134, 16
  %v338 = vrot.slane %v336, 7
  %v339 = vshll.u32 %v134, 16
  %v341 = vor.u32 %v338, %v339
  %v342 = vrot.slane %v338, 4
  %v344 = vshrl.u32 %v135, 16
  %v346 = vrot.slane %v344, 7
  %v347 = vshll.u32 %v135, 16
  %v349 = vor.u32 %v346, %v347
  %v350 = vrot.slane %v346, 4
  %v352 = vshrl.u32 %v136, 16
  %v354 = vrot.slane %v352, 7
  %v355 = vshll.u32 %v136, 16
  %v357 = vor.u32 %v354, %v355
  %v358 = vrot.slane %v354, 4
  %v360 = vshrl.u32 %v137, 16
  %v362 = vrot.slane %v360, 7
  %v363 = vshll.u32 %v137, 16
  %v365 = vor.u32 %v362, %v363
  %v366 = vrot.slane %v362, 4
  %v368 = vshrl.u32 %v138, 16
  %v370 = vrot.slane %v368, 7
  %v371 = vshll.u32 %v138, 16
  %v373 = vor.u32 %v370, %v371
  %v374 = vrot.slane %v370, 4
  %v376 = vshrl.u32 %v139, 16
  %v378 = vrot.slane %v376, 7
  %v379 = vshll.u32 %v139, 16
  %v381 = vor.u32 %v378, %v379
  %v382 = vrot.slane %v378, 4
  %v384 = vshrl.u32 %v140, 16
  %v386 = vrot.slane %v384, 7
  %v387 = vshll.u32 %v140, 16
  %v389 = vor.u32 %v386, %v387
  %v390 = vrot.slane %v386, 4
  %v392 = vshrl.u32 %v141, 16
  %v394 = vrot.slane %v392, 7
  %v395 = vshll.u32 %v141, 16
  %v397 = vor.u32 %v394, %v395
  %v398 = vrot.slane %v394, 4
  %v400 = vshrl.u32 %v142, 16
  %v402 = vrot.slane %v400, 7
  %v403 = vshll.u32 %v142, 16
  %v405 = vor.u32 %v402, %v403
  %v406 = vrot.slane %v402, 4
  %s439 = scalar_lea.vmem [#allocation2], 8
  %vm440 = vcmask 27648
  %vm441 = vmand %vm440, %vm217
  %v442 = vld [vmem:[%s439] sm:$0xf]
  %v443 = vsel %vm441, %v285, %v442
  %444 = vst [vmem:[%s439] sm:$0xf] %v443
  %v445 = vld [vmem:[%s439 + $0x4] sm:$0x1]
  %v446 = vsel %vm156, %v286, %v445
  %447 = vst [vmem:[%s439 + $0x4] sm:$0x1] %v446
  %v448 = vld [vmem:[%s439 + $0x8] sm:$0xf]
  %v449 = vsel %vm441, %v293, %v448
  %450 = vst [vmem:[%s439 + $0x8] sm:$0xf] %v449
  %v451 = vld [vmem:[%s439 + $0xc] sm:$0x1]
  %v452 = vsel %vm156, %v294, %v451
  %453 = vst [vmem:[%s439 + $0xc] sm:$0x1] %v452
  %v454 = vld [vmem:[%s439 + $0x10] sm:$0xf]
  %v455 = vsel %vm441, %v301, %v454
  %456 = vst [vmem:[%s439 + $0x10] sm:$0xf] %v455
  %v457 = vld [vmem:[%s439 + $0x14] sm:$0x1]
  %v458 = vsel %vm156, %v302, %v457
  %459 = vst [vmem:[%s439 + $0x14] sm:$0x1] %v458
  %v460 = vld [vmem:[%s439 + $0x18] sm:$0xf]
  %v461 = vsel %vm441, %v309, %v460
  %462 = vst [vmem:[%s439 + $0x18] sm:$0xf] %v461
  %v463 = vld [vmem:[%s439 + $0x1c] sm:$0x1]
  %v464 = vsel %vm156, %v310, %v463
  %465 = vst [vmem:[%s439 + $0x1c] sm:$0x1] %v464
  %v466 = vld [vmem:[%s439 + $0x20] sm:$0xf]
  %v467 = vsel %vm441, %v317, %v466
  %468 = vst [vmem:[%s439 + $0x20] sm:$0xf] %v467
  %v469 = vld [vmem:[%s439 + $0x24] sm:$0x1]
  %v470 = vsel %vm156, %v318, %v469
  %471 = vst [vmem:[%s439 + $0x24] sm:$0x1] %v470
  %v472 = vld [vmem:[%s439 + $0x28] sm:$0xf]
  %v473 = vsel %vm441, %v325, %v472
  %474 = vst [vmem:[%s439 + $0x28] sm:$0xf] %v473
  %v475 = vld [vmem:[%s439 + $0x2c] sm:$0x1]
  %v476 = vsel %vm156, %v326, %v475
  %477 = vst [vmem:[%s439 + $0x2c] sm:$0x1] %v476
  %v478 = vld [vmem:[%s439 + $0x30] sm:$0xf]
  %v479 = vsel %vm441, %v333, %v478
  %480 = vst [vmem:[%s439 + $0x30] sm:$0xf] %v479
  %v481 = vld [vmem:[%s439 + $0x34] sm:$0x1]
  %v482 = vsel %vm156, %v334, %v481
  %483 = vst [vmem:[%s439 + $0x34] sm:$0x1] %v482
  %v484 = vld [vmem:[%s439 + $0x38] sm:$0xf]
  %v485 = vsel %vm441, %v341, %v484
  %486 = vst [vmem:[%s439 + $0x38] sm:$0xf] %v485
  %v487 = vld [vmem:[%s439 + $0x3c] sm:$0x1]
  %v488 = vsel %vm156, %v342, %v487
  %489 = vst [vmem:[%s439 + $0x3c] sm:$0x1] %v488
  %v490 = vld [vmem:[%s439 + $0x50] sm:$0xf]
  %v491 = vsel %vm441, %v349, %v490
  %492 = vst [vmem:[%s439 + $0x50] sm:$0xf] %v491
  %v493 = vld [vmem:[%s439 + $0x54] sm:$0x1]
  %v494 = vsel %vm156, %v350, %v493
  %495 = vst [vmem:[%s439 + $0x54] sm:$0x1] %v494
  %v496 = vld [vmem:[%s439 + $0x58] sm:$0xf]
  %v497 = vsel %vm441, %v357, %v496
  %498 = vst [vmem:[%s439 + $0x58] sm:$0xf] %v497
  %v499 = vld [vmem:[%s439 + $0x5c] sm:$0x1]
  %v500 = vsel %vm156, %v358, %v499
  %501 = vst [vmem:[%s439 + $0x5c] sm:$0x1] %v500
  %v502 = vld [vmem:[%s439 + $0x60] sm:$0xf]
  %v503 = vsel %vm441, %v365, %v502
  %504 = vst [vmem:[%s439 + $0x60] sm:$0xf] %v503
  %v505 = vld [vmem:[%s439 + $0x64] sm:$0x1]
  %v506 = vsel %vm156, %v366, %v505
  %507 = vst [vmem:[%s439 + $0x64] sm:$0x1] %v506
  %v508 = vld [vmem:[%s439 + $0x68] sm:$0xf]
  %v509 = vsel %vm441, %v373, %v508
  %510 = vst [vmem:[%s439 + $0x68] sm:$0xf] %v509
  %v511 = vld [vmem:[%s439 + $0x6c] sm:$0x1]
  %v512 = vsel %vm156, %v374, %v511
  %513 = vst [vmem:[%s439 + $0x6c] sm:$0x1] %v512
  %v514 = vld [vmem:[%s439 + $0x70] sm:$0xf]
  %v515 = vsel %vm441, %v381, %v514
  %516 = vst [vmem:[%s439 + $0x70] sm:$0xf] %v515
  %v517 = vld [vmem:[%s439 + $0x74] sm:$0x1]
  %v518 = vsel %vm156, %v382, %v517
  %519 = vst [vmem:[%s439 + $0x74] sm:$0x1] %v518
  %v520 = vld [vmem:[%s439 + $0x78] sm:$0xf]
  %v521 = vsel %vm441, %v389, %v520
  %522 = vst [vmem:[%s439 + $0x78] sm:$0xf] %v521
  %v523 = vld [vmem:[%s439 + $0x7c] sm:$0x1]
  %v524 = vsel %vm156, %v390, %v523
  %525 = vst [vmem:[%s439 + $0x7c] sm:$0x1] %v524
  %v526 = vld [vmem:[%s439 + $0x80] sm:$0xf]
  %v527 = vsel %vm441, %v397, %v526
  %528 = vst [vmem:[%s439 + $0x80] sm:$0xf] %v527
  %v529 = vld [vmem:[%s439 + $0x84] sm:$0x1]
  %v530 = vsel %vm156, %v398, %v529
  %531 = vst [vmem:[%s439 + $0x84] sm:$0x1] %v530
  %v532 = vld [vmem:[%s439 + $0x88] sm:$0xf]
  %v533 = vsel %vm441, %v405, %v532
  %534 = vst [vmem:[%s439 + $0x88] sm:$0xf] %v533
  %v535 = vld [vmem:[%s439 + $0x8c] sm:$0x1]
  %v536 = vsel %vm156, %v406, %v535
  %537 = vst [vmem:[%s439 + $0x8c] sm:$0x1] %v536
  %v538 = vld [vmem:[#allocation2] sm:$0xf]
  %v539 = vld [vmem:[#allocation2 + $0x8] sm:$0xf]
  %v540 = vld [vmem:[#allocation2 + $0x10] sm:$0xf]
  %v541 = vld [vmem:[#allocation2 + $0x18] sm:$0xf]
  %v542 = vld [vmem:[#allocation2 + $0x20] sm:$0xf]
  %v543 = vld [vmem:[#allocation2 + $0x28] sm:$0xf]
  %v544 = vld [vmem:[#allocation2 + $0x30] sm:$0xf]
  %v545 = vld [vmem:[#allocation2 + $0x38] sm:$0xf]
  %v546 = vld [vmem:[#allocation2 + $0x50] sm:$0xf]
  %v547 = vld [vmem:[#allocation2 + $0x58] sm:$0xf]
  %v548 = vld [vmem:[#allocation2 + $0x60] sm:$0xf]
  %v549 = vld [vmem:[#allocation2 + $0x68] sm:$0xf]
  %v550 = vld [vmem:[#allocation2 + $0x70] sm:$0xf]
  %v551 = vld [vmem:[#allocation2 + $0x78] sm:$0xf]
  %v552 = vld [vmem:[#allocation2 + $0x80] sm:$0xf]
  %v553 = vld [vmem:[#allocation2 + $0x88] sm:$0xf]
  %v570 = vunpack.c.l.b16 %v538
  %v571 = vunpack.c.l.b16 %v539
  %v572 = vunpack.c.l.b16 %v540
  %v573 = vunpack.c.l.b16 %v541
  %v574 = vunpack.c.l.b16 %v542
  %v575 = vunpack.c.l.b16 %v543
  %v576 = vunpack.c.l.b16 %v544
  %v577 = vunpack.c.l.b16 %v545
  %v578 = vunpack.c.l.b16 %v546
  %v579 = vunpack.c.l.b16 %v547
  %v580 = vunpack.c.l.b16 %v548
  %v581 = vunpack.c.l.b16 %v549
  %v582 = vunpack.c.l.b16 %v550
  %v583 = vunpack.c.l.b16 %v551
  %v584 = vunpack.c.l.b16 %v552
  %v585 = vunpack.c.l.b16 %v553
  %v586 = vpack.c.b16 %v571, %v570
  %v587 = vpack.c.b16 %v573, %v572
  %v588 = vpack.c.b16 %v575, %v574
  %v589 = vpack.c.b16 %v577, %v576
  %v590 = vpack.c.b16 %v579, %v578
  %v591 = vpack.c.b16 %v581, %v580
  %v592 = vpack.c.b16 %v583, %v582
  %v593 = vpack.c.b16 %v585, %v584
  %vm602 = vcmask 31744
  %603 = vst.msk [vmem:[#allocation3] sm:$0xff] %vm602, %v586
  %604 = vst.msk [vmem:[#allocation3 + $0x8] sm:$0xff] %vm602, %v587
  %605 = vst.msk [vmem:[#allocation3 + $0x10] sm:$0xff] %vm602, %v588
  %606 = vst.msk [vmem:[#allocation3 + $0x18] sm:$0xff] %vm602, %v589
  %607 = vst.msk [vmem:[#allocation3 + $0x20] sm:$0xff] %vm602, %v590
  %608 = vst.msk [vmem:[#allocation3 + $0x28] sm:$0xff] %vm602, %v591
  %609 = vst.msk [vmem:[#allocation3 + $0x30] sm:$0xff] %vm602, %v592
  %610 = vst.msk [vmem:[#allocation3 + $0x38] sm:$0xff] %vm602, %v593
  %v611 = vld [vmem:[#allocation2] sm:$0xf]
  %v612 = vld [vmem:[#allocation2 + $0x4] sm:$0x1]
  %v613 = vld [vmem:[#allocation2 + $0x8] sm:$0xf]
  %v614 = vld [vmem:[#allocation2 + $0xc] sm:$0x1]
  %v615 = vld [vmem:[#allocation2 + $0x10] sm:$0xf]
  %v616 = vld [vmem:[#allocation2 + $0x14] sm:$0x1]
  %v617 = vld [vmem:[#allocation2 + $0x18] sm:$0xf]
  %v618 = vld [vmem:[#allocation2 + $0x1c] sm:$0x1]
  %v619 = vld [vmem:[#allocation2 + $0x20] sm:$0xf]
  %v620 = vld [vmem:[#allocation2 + $0x24] sm:$0x1]
  %v621 = vld [vmem:[#allocation2 + $0x28] sm:$0xf]
  %v622 = vld [vmem:[#allocation2 + $0x2c] sm:$0x1]
  %v623 = vld [vmem:[#allocation2 + $0x30] sm:$0xf]
  %v624 = vld [vmem:[#allocation2 + $0x34] sm:$0x1]
  %v625 = vld [vmem:[#allocation2 + $0x38] sm:$0xf]
  %v626 = vld [vmem:[#allocation2 + $0x3c] sm:$0x1]
  %v627 = vld [vmem:[#allocation2 + $0x50] sm:$0xf]
  %v628 = vld [vmem:[#allocation2 + $0x54] sm:$0x1]
  %v629 = vld [vmem:[#allocation2 + $0x58] sm:$0xf]
  %v630 = vld [vmem:[#allocation2 + $0x5c] sm:$0x1]
  %v631 = vld [vmem:[#allocation2 + $0x60] sm:$0xf]
  %v632 = vld [vmem:[#allocation2 + $0x64] sm:$0x1]
  %v633 = vld [vmem:[#allocation2 + $0x68] sm:$0xf]
  %v634 = vld [vmem:[#allocation2 + $0x6c] sm:$0x1]
  %v635 = vld [vmem:[#allocation2 + $0x70] sm:$0xf]
  %v636 = vld [vmem:[#allocation2 + $0x74] sm:$0x1]
  %v637 = vld [vmem:[#allocation2 + $0x78] sm:$0xf]
  %v638 = vld [vmem:[#allocation2 + $0x7c] sm:$0x1]
  %v639 = vld [vmem:[#allocation2 + $0x80] sm:$0xf]
  %v640 = vld [vmem:[#allocation2 + $0x84] sm:$0x1]
  %v641 = vld [vmem:[#allocation2 + $0x88] sm:$0xf]
  %v642 = vld [vmem:[#allocation2 + $0x8c] sm:$0x1]
  %vm643 = vsmask.f32 3328
  %vm644 = vsmask.f32 7440
  %vm645 = vmor %vm643, %vm644
  %v647 = vshrl.u32 %v611, 16
  %v649 = vrot.slane %v647, 4
  %v650 = vshll.u32 %v611, 16
  %v652 = vrot.slane %v650, 5
  %v653 = vor.u32 %v649, %v652
  %v654 = vrot.slane %v653, 4
  %v656 = vshll.u32 %v612, 16
  %v658 = vrot.slane %v656, 5
  %v659 = vsel %vm645, %v654, %v658
  %v661 = vshrl.u32 %v613, 16
  %v663 = vrot.slane %v661, 4
  %v664 = vshll.u32 %v613, 16
  %v666 = vrot.slane %v664, 5
  %v667 = vor.u32 %v663, %v666
  %v668 = vrot.slane %v667, 4
  %v670 = vshll.u32 %v614, 16
  %v672 = vrot.slane %v670, 5
  %v673 = vsel %vm645, %v668, %v672
  %v675 = vshrl.u32 %v615, 16
  %v677 = vrot.slane %v675, 4
  %v678 = vshll.u32 %v615, 16
  %v680 = vrot.slane %v678, 5
  %v681 = vor.u32 %v677, %v680
  %v682 = vrot.slane %v681, 4
  %v684 = vshll.u32 %v616, 16
  %v686 = vrot.slane %v684, 5
  %v687 = vsel %vm645, %v682, %v686
  %v689 = vshrl.u32 %v617, 16
  %v691 = vrot.slane %v689, 4
  %v692 = vshll.u32 %v617, 16
  %v694 = vrot.slane %v692, 5
  %v695 = vor.u32 %v691, %v694
  %v696 = vrot.slane %v695, 4
  %v698 = vshll.u32 %v618, 16
  %v700 = vrot.slane %v698, 5
  %v701 = vsel %vm645, %v696, %v700
  %v703 = vshrl.u32 %v619, 16
  %v705 = vrot.slane %v703, 4
  %v706 = vshll.u32 %v619, 16
  %v708 = vrot.slane %v706, 5
  %v709 = vor.u32 %v705, %v708
  %v710 = vrot.slane %v709, 4
  %v712 = vshll.u32 %v620, 16
  %v714 = vrot.slane %v712, 5
  %v715 = vsel %vm645, %v710, %v714
  %v717 = vshrl.u32 %v621, 16
  %v719 = vrot.slane %v717, 4
  %v720 = vshll.u32 %v621, 16
  %v722 = vrot.slane %v720, 5
  %v723 = vor.u32 %v719, %v722
  %v724 = vrot.slane %v723, 4
  %v726 = vshll.u32 %v622, 16
  %v728 = vrot.slane %v726, 5
  %v729 = vsel %vm645, %v724, %v728
  %v731 = vshrl.u32 %v623, 16
  %v733 = vrot.slane %v731, 4
  %v734 = vshll.u32 %v623, 16
  %v736 = vrot.slane %v734, 5
  %v737 = vor.u32 %v733, %v736
  %v738 = vrot.slane %v737, 4
  %v740 = vshll.u32 %v624, 16
  %v742 = vrot.slane %v740, 5
  %v743 = vsel %vm645, %v738, %v742
  %v745 = vshrl.u32 %v625, 16
  %v747 = vrot.slane %v745, 4
  %v748 = vshll.u32 %v625, 16
  %v750 = vrot.slane %v748, 5
  %v751 = vor.u32 %v747, %v750
  %v752 = vrot.slane %v751, 4
  %v754 = vshll.u32 %v626, 16
  %v756 = vrot.slane %v754, 5
  %v757 = vsel %vm645, %v752, %v756
  %v759 = vshrl.u32 %v627, 16
  %v761 = vrot.slane %v759, 4
  %v762 = vshll.u32 %v627, 16
  %v764 = vrot.slane %v762, 5
  %v765 = vor.u32 %v761, %v764
  %v766 = vrot.slane %v765, 4
  %v768 = vshll.u32 %v628, 16
  %v770 = vrot.slane %v768, 5
  %v771 = vsel %vm645, %v766, %v770
  %v773 = vshrl.u32 %v629, 16
  %v775 = vrot.slane %v773, 4
  %v776 = vshll.u32 %v629, 16
  %v778 = vrot.slane %v776, 5
  %v779 = vor.u32 %v775, %v778
  %v780 = vrot.slane %v779, 4
  %v782 = vshll.u32 %v630, 16
  %v784 = vrot.slane %v782, 5
  %v785 = vsel %vm645, %v780, %v784
  %v787 = vshrl.u32 %v631, 16
  %v789 = vrot.slane %v787, 4
  %v790 = vshll.u32 %v631, 16
  %v792 = vrot.slane %v790, 5
  %v793 = vor.u32 %v789, %v792
  %v794 = vrot.slane %v793, 4
  %v796 = vshll.u32 %v632, 16
  %v798 = vrot.slane %v796, 5
  %v799 = vsel %vm645, %v794, %v798
  %v801 = vshrl.u32 %v633, 16
  %v803 = vrot.slane %v801, 4
  %v804 = vshll.u32 %v633, 16
  %v806 = vrot.slane %v804, 5
  %v807 = vor.u32 %v803, %v806
  %v808 = vrot.slane %v807, 4
  %v810 = vshll.u32 %v634, 16
  %v812 = vrot.slane %v810, 5
  %v813 = vsel %vm645, %v808, %v812
  %v815 = vshrl.u32 %v635, 16
  %v817 = vrot.slane %v815, 4
  %v818 = vshll.u32 %v635, 16
  %v820 = vrot.slane %v818, 5
  %v821 = vor.u32 %v817, %v820
  %v822 = vrot.slane %v821, 4
  %v824 = vshll.u32 %v636, 16
  %v826 = vrot.slane %v824, 5
  %v827 = vsel %vm645, %v822, %v826
  %v829 = vshrl.u32 %v637, 16
  %v831 = vrot.slane %v829, 4
  %v832 = vshll.u32 %v637, 16
  %v834 = vrot.slane %v832, 5
  %v835 = vor.u32 %v831, %v834
  %v836 = vrot.slane %v835, 4
  %v838 = vshll.u32 %v638, 16
  %v840 = vrot.slane %v838, 5
  %v841 = vsel %vm645, %v836, %v840
  %v843 = vshrl.u32 %v639, 16
  %v845 = vrot.slane %v843, 4
  %v846 = vshll.u32 %v639, 16
  %v848 = vrot.slane %v846, 5
  %v849 = vor.u32 %v845, %v848
  %v850 = vrot.slane %v849, 4
  %v852 = vshll.u32 %v640, 16
  %v854 = vrot.slane %v852, 5
  %v855 = vsel %vm645, %v850, %v854
  %v857 = vshrl.u32 %v641, 16
  %v859 = vrot.slane %v857, 4
  %v860 = vshll.u32 %v641, 16
  %v862 = vrot.slane %v860, 5
  %v863 = vor.u32 %v859, %v862
  %v864 = vrot.slane %v863, 4
  %v866 = vshll.u32 %v642, 16
  %v868 = vrot.slane %v866, 5
  %v869 = vsel %vm645, %v864, %v868
  %v870 = vunpack.c.l.b16 %v659
  %v871 = vunpack.c.l.b16 %v673
  %v872 = vunpack.c.l.b16 %v687
  %v873 = vunpack.c.l.b16 %v701
  %v874 = vunpack.c.l.b16 %v715
  %v875 = vunpack.c.l.b16 %v729
  %v876 = vunpack.c.l.b16 %v743
  %v877 = vunpack.c.l.b16 %v757
  %v878 = vunpack.c.l.b16 %v771
  %v879 = vunpack.c.l.b16 %v785
  %v880 = vunpack.c.l.b16 %v799
  %v881 = vunpack.c.l.b16 %v813
  %v882 = vunpack.c.l.b16 %v827
  %v883 = vunpack.c.l.b16 %v841
  %v884 = vunpack.c.l.b16 %v855
  %v885 = vunpack.c.l.b16 %v869
  %v886 = vpack.c.b16 %v871, %v870
  %v887 = vpack.c.b16 %v873, %v872
  %v888 = vpack.c.b16 %v875, %v874
  %v889 = vpack.c.b16 %v877, %v876
  %v890 = vpack.c.b16 %v879, %v878
  %v891 = vpack.c.b16 %v881, %v880
  %v892 = vpack.c.b16 %v883, %v882
  %v893 = vpack.c.b16 %v885, %v884
  %894 = vrot.lane.b32.xlu0 %v886, 4
  %v895 = vpop.permute.xlu0 %894
  %896 = vrot.lane.b32.xlu0 %v887, 4
  %v897 = vpop.permute.xlu0 %896
  %898 = vrot.lane.b32.xlu0 %v888, 4
  %v899 = vpop.permute.xlu0 %898
  %900 = vrot.lane.b32.xlu0 %v889, 4
  %v901 = vpop.permute.xlu0 %900
  %902 = vrot.lane.b32.xlu0 %v890, 4
  %v903 = vpop.permute.xlu0 %902
  %904 = vrot.lane.b32.xlu0 %v891, 4
  %v905 = vpop.permute.xlu0 %904
  %906 = vrot.lane.b32.xlu0 %v892, 4
  %v907 = vpop.permute.xlu0 %906
  %908 = vrot.lane.b32.xlu0 %v893, 4
  %v909 = vpop.permute.xlu0 %908
  %vm918 = vcmask 64544
  %919 = vst.msk [vmem:[#allocation3] sm:$0xff] %vm918, %v895
  %920 = vst.msk [vmem:[#allocation3 + $0x8] sm:$0xff] %vm918, %v897
  %921 = vst.msk [vmem:[#allocation3 + $0x10] sm:$0xff] %vm918, %v899
  %922 = vst.msk [vmem:[#allocation3 + $0x18] sm:$0xff] %vm918, %v901
  %923 = vst.msk [vmem:[#allocation3 + $0x20] sm:$0xff] %vm918, %v903
  %924 = vst.msk [vmem:[#allocation3 + $0x28] sm:$0xff] %vm918, %v905
  %925 = vst.msk [vmem:[#allocation3 + $0x30] sm:$0xff] %vm918, %v907
  %926 = vst.msk [vmem:[#allocation3 + $0x38] sm:$0xff] %vm918, %v909
  %v927 = vld [vmem:[#allocation2] sm:$0xe]
  %v928 = vld [vmem:[#allocation2 + $0x4] sm:$0x1]
  %v929 = vld [vmem:[#allocation2 + $0x8] sm:$0xe]
  %v930 = vld [vmem:[#allocation2 + $0xc] sm:$0x1]
  %v931 = vld [vmem:[#allocation2 + $0x10] sm:$0xe]
  %v932 = vld [vmem:[#allocation2 + $0x14] sm:$0x1]
  %v933 = vld [vmem:[#allocation2 + $0x18] sm:$0xe]
  %v934 = vld [vmem:[#allocation2 + $0x1c] sm:$0x1]
  %v935 = vld [vmem:[#allocation2 + $0x20] sm:$0xe]
  %v936 = vld [vmem:[#allocation2 + $0x24] sm:$0x1]
  %v937 = vld [vmem:[#allocation2 + $0x28] sm:$0xe]
  %v938 = vld [vmem:[#allocation2 + $0x2c] sm:$0x1]
  %v939 = vld [vmem:[#allocation2 + $0x30] sm:$0xe]
  %v940 = vld [vmem:[#allocation2 + $0x34] sm:$0x1]
  %v941 = vld [vmem:[#allocation2 + $0x38] sm:$0xe]
  %v942 = vld [vmem:[#allocation2 + $0x3c] sm:$0x1]
  %v943 = vld [vmem:[#allocation2 + $0x50] sm:$0xe]
  %v944 = vld [vmem:[#allocation2 + $0x54] sm:$0x1]
  %v945 = vld [vmem:[#allocation2 + $0x58] sm:$0xe]
  %v946 = vld [vmem:[#allocation2 + $0x5c] sm:$0x1]
  %v947 = vld [vmem:[#allocation2 + $0x60] sm:$0xe]
  %v948 = vld [vmem:[#allocation2 + $0x64] sm:$0x1]
  %v949 = vld [vmem:[#allocation2 + $0x68] sm:$0xe]
  %v950 = vld [vmem:[#allocation2 + $0x6c] sm:$0x1]
  %v951 = vld [vmem:[#allocation2 + $0x70] sm:$0xe]
  %v952 = vld [vmem:[#allocation2 + $0x74] sm:$0x1]
  %v953 = vld [vmem:[#allocation2 + $0x78] sm:$0xe]
  %v954 = vld [vmem:[#allocation2 + $0x7c] sm:$0x1]
  %v955 = vld [vmem:[#allocation2 + $0x80] sm:$0xe]
  %v956 = vld [vmem:[#allocation2 + $0x84] sm:$0x1]
  %v957 = vld [vmem:[#allocation2 + $0x88] sm:$0xe]
  %v958 = vld [vmem:[#allocation2 + $0x8c] sm:$0x1]
  %vm991 = vcmask 1042432
  %vm992 = vcmask 1046532
  %vm993 = vmor %vm991, %vm992
  %v994 = vrot.slane %v927, 5
  %v995 = vrot.slane %v994, 4
  %v996 = vrot.slane %v928, 5
  %v997 = vsel %vm993, %v995, %v996
  %v998 = vrot.slane %v929, 5
  %v999 = vrot.slane %v998, 4
  %v1000 = vrot.slane %v930, 5
  %v1001 = vsel %vm993, %v999, %v1000
  %v1002 = vrot.slane %v931, 5
  %v1003 = vrot.slane %v1002, 4
  %v1004 = vrot.slane %v932, 5
  %v1005 = vsel %vm993, %v1003, %v1004
  %v1006 = vrot.slane %v933, 5
  %v1007 = vrot.slane %v1006, 4
  %v1008 = vrot.slane %v934, 5
  %v1009 = vsel %vm993, %v1007, %v1008
  %v1010 = vrot.slane %v935, 5
  %v1011 = vrot.slane %v1010, 4
  %v1012 = vrot.slane %v936, 5
  %v1013 = vsel %vm993, %v1011, %v1012
  %v1014 = vrot.slane %v937, 5
  %v1015 = vrot.slane %v1014, 4
  %v1016 = vrot.slane %v938, 5
  %v1017 = vsel %vm993, %v1015, %v1016
  %v1018 = vrot.slane %v939, 5
  %v1019 = vrot.slane %v1018, 4
  %v1020 = vrot.slane %v940, 5
  %v1021 = vsel %vm993, %v1019, %v1020
  %v1022 = vrot.slane %v941, 5
  %v1023 = vrot.slane %v1022, 4
  %v1024 = vrot.slane %v942, 5
  %v1025 = vsel %vm993, %v1023, %v1024
  %v1026 = vrot.slane %v943, 5
  %v1027 = vrot.slane %v1026, 4
  %v1028 = vrot.slane %v944, 5
  %v1029 = vsel %vm993, %v1027, %v1028
  %v1030 = vrot.slane %v945, 5
  %v1031 = vrot.slane %v1030, 4
  %v1032 = vrot.slane %v946, 5
  %v1033 = vsel %vm993, %v1031, %v1032
  %v1034 = vrot.slane %v947, 5
  %v1035 = vrot.slane %v1034, 4
  %v1036 = vrot.slane %v948, 5
  %v1037 = vsel %vm993, %v1035, %v1036
  %v1038 = vrot.slane %v949, 5
  %v1039 = vrot.slane %v1038, 4
  %v1040 = vrot.slane %v950, 5
  %v1041 = vsel %vm993, %v1039, %v1040
  %v1042 = vrot.slane %v951, 5
  %v1043 = vrot.slane %v1042, 4
  %v1044 = vrot.slane %v952, 5
  %v1045 = vsel %vm993, %v1043, %v1044
  %v1046 = vrot.slane %v953, 5
  %v1047 = vrot.slane %v1046, 4
  %v1048 = vrot.slane %v954, 5
  %v1049 = vsel %vm993, %v1047, %v1048
  %v1050 = vrot.slane %v955, 5
  %v1051 = vrot.slane %v1050, 4
  %v1052 = vrot.slane %v956, 5
  %v1053 = vsel %vm993, %v1051, %v1052
  %v1054 = vrot.slane %v957, 5
  %v1055 = vrot.slane %v1054, 4
  %v1056 = vrot.slane %v958, 5
  %v1057 = vsel %vm993, %v1055, %v1056
  %v1058 = vunpack.c.l.b16 %v997
  %v1059 = vunpack.c.l.b16 %v1001
  %v1060 = vunpack.c.l.b16 %v1005
  %v1061 = vunpack.c.l.b16 %v1009
  %v1062 = vunpack.c.l.b16 %v1013
  %v1063 = vunpack.c.l.b16 %v1017
  %v1064 = vunpack.c.l.b16 %v1021
  %v1065 = vunpack.c.l.b16 %v1025
  %v1066 = vunpack.c.l.b16 %v1029
  %v1067 = vunpack.c.l.b16 %v1033
  %v1068 = vunpack.c.l.b16 %v1037
  %v1069 = vunpack.c.l.b16 %v1041
  %v1070 = vunpack.c.l.b16 %v1045
  %v1071 = vunpack.c.l.b16 %v1049
  %v1072 = vunpack.c.l.b16 %v1053
  %v1073 = vunpack.c.l.b16 %v1057
  %v1074 = vpack.c.b16 %v1059, %v1058
  %v1075 = vpack.c.b16 %v1061, %v1060
  %v1076 = vpack.c.b16 %v1063, %v1062
  %v1077 = vpack.c.b16 %v1065, %v1064
  %v1078 = vpack.c.b16 %v1067, %v1066
  %v1079 = vpack.c.b16 %v1069, %v1068
  %v1080 = vpack.c.b16 %v1071, %v1070
  %v1081 = vpack.c.b16 %v1073, %v1072
  %1082 = vrot.lane.b32.xlu0 %v1074, 8
  %v1083 = vpop.permute.xlu0 %1082
  %1084 = vrot.lane.b32.xlu0 %v1075, 8
  %v1085 = vpop.permute.xlu0 %1084
  %1086 = vrot.lane.b32.xlu0 %v1076, 8
  %v1087 = vpop.permute.xlu0 %1086
  %1088 = vrot.lane.b32.xlu0 %v1077, 8
  %v1089 = vpop.permute.xlu0 %1088
  %1090 = vrot.lane.b32.xlu0 %v1078, 8
  %v1091 = vpop.permute.xlu0 %1090
  %1092 = vrot.lane.b32.xlu0 %v1079, 8
  %v1093 = vpop.permute.xlu0 %1092
  %1094 = vrot.lane.b32.xlu0 %v1080, 8
  %v1095 = vpop.permute.xlu0 %1094
  %1096 = vrot.lane.b32.xlu0 %v1081, 8
  %v1097 = vpop.permute.xlu0 %1096
  %vm1106 = vcmask 97344
  %1107 = vst.msk [vmem:[#allocation3] sm:$0xff] %vm1106, %v1083
  %1108 = vst.msk [vmem:[#allocation3 + $0x8] sm:$0xff] %vm1106, %v1085
  %1109 = vst.msk [vmem:[#allocation3 + $0x10] sm:$0xff] %vm1106, %v1087
  %1110 = vst.msk [vmem:[#allocation3 + $0x18] sm:$0xff] %vm1106, %v1089
  %1111 = vst.msk [vmem:[#allocation3 + $0x20] sm:$0xff] %vm1106, %v1091
  %1112 = vst.msk [vmem:[#allocation3 + $0x28] sm:$0xff] %vm1106, %v1093
  %1113 = vst.msk [vmem:[#allocation3 + $0x30] sm:$0xff] %vm1106, %v1095
  %1114 = vst.msk [vmem:[#allocation3 + $0x38] sm:$0xff] %vm1106, %v1097
  %v1115 = vld [vmem:[%s439] sm:$0xf]
  %v1116 = vld [vmem:[%s439 + $0x8] sm:$0xf]
  %v1117 = vld [vmem:[%s439 + $0x10] sm:$0xf]
  %v1118 = vld [vmem:[%s439 + $0x18] sm:$0xf]
  %v1119 = vld [vmem:[%s439 + $0x20] sm:$0xf]
  %v1120 = vld [vmem:[%s439 + $0x28] sm:$0xf]
  %v1121 = vld [vmem:[%s439 + $0x30] sm:$0xf]
  %v1122 = vld [vmem:[%s439 + $0x38] sm:$0xf]
  %v1123 = vld [vmem:[%s439 + $0x50] sm:$0xf]
  %v1124 = vld [vmem:[%s439 + $0x58] sm:$0xf]
  %v1125 = vld [vmem:[%s439 + $0x60] sm:$0xf]
  %v1126 = vld [vmem:[%s439 + $0x68] sm:$0xf]
  %v1127 = vld [vmem:[%s439 + $0x70] sm:$0xf]
  %v1128 = vld [vmem:[%s439 + $0x78] sm:$0xf]
  %v1129 = vld [vmem:[%s439 + $0x80] sm:$0xf]
  %v1130 = vld [vmem:[%s439 + $0x88] sm:$0xf]
  %v1147 = vunpack.c.l.b16 %v1115
  %v1148 = vunpack.c.l.b16 %v1116
  %v1149 = vunpack.c.l.b16 %v1117
  %v1150 = vunpack.c.l.b16 %v1118
  %v1151 = vunpack.c.l.b16 %v1119
  %v1152 = vunpack.c.l.b16 %v1120
  %v1153 = vunpack.c.l.b16 %v1121
  %v1154 = vunpack.c.l.b16 %v1122
  %v1155 = vunpack.c.l.b16 %v1123
  %v1156 = vunpack.c.l.b16 %v1124
  %v1157 = vunpack.c.l.b16 %v1125
  %v1158 = vunpack.c.l.b16 %v1126
  %v1159 = vunpack.c.l.b16 %v1127
  %v1160 = vunpack.c.l.b16 %v1128
  %v1161 = vunpack.c.l.b16 %v1129
  %v1162 = vunpack.c.l.b16 %v1130
  %v1163 = vpack.c.b16 %v1148, %v1147
  %v1164 = vpack.c.b16 %v1150, %v1149
  %v1165 = vpack.c.b16 %v1152, %v1151
  %v1166 = vpack.c.b16 %v1154, %v1153
  %v1167 = vpack.c.b16 %v1156, %v1155
  %v1168 = vpack.c.b16 %v1158, %v1157
  %v1169 = vpack.c.b16 %v1160, %v1159
  %v1170 = vpack.c.b16 %v1162, %v1161
  %1171 = vrot.lane.b32.xlu0 %v1163, 12
  %v1172 = vpop.permute.xlu0 %1171
  %1173 = vrot.lane.b32.xlu0 %v1164, 12
  %v1174 = vpop.permute.xlu0 %1173
  %1175 = vrot.lane.b32.xlu0 %v1165, 12
  %v1176 = vpop.permute.xlu0 %1175
  %1177 = vrot.lane.b32.xlu0 %v1166, 12
  %v1178 = vpop.permute.xlu0 %1177
  %1179 = vrot.lane.b32.xlu0 %v1167, 12
  %v1180 = vpop.permute.xlu0 %1179
  %1181 = vrot.lane.b32.xlu0 %v1168, 12
  %v1182 = vpop.permute.xlu0 %1181
  %1183 = vrot.lane.b32.xlu0 %v1169, 12
  %v1184 = vpop.permute.xlu0 %1183
  %1185 = vrot.lane.b32.xlu0 %v1170, 12
  %v1186 = vpop.permute.xlu0 %1185
  %vm1195 = vcmask 130144
  %1196 = vst.msk [vmem:[#allocation3] sm:$0xff] %vm1195, %v1172
  %1197 = vst.msk [vmem:[#allocation3 + $0x8] sm:$0xff] %vm1195, %v1174
  %1198 = vst.msk [vmem:[#allocation3 + $0x10] sm:$0xff] %vm1195, %v1176
  %1199 = vst.msk [vmem:[#allocation3 + $0x18] sm:$0xff] %vm1195, %v1178
  %1200 = vst.msk [vmem:[#allocation3 + $0x20] sm:$0xff] %vm1195, %v1180
  %1201 = vst.msk [vmem:[#allocation3 + $0x28] sm:$0xff] %vm1195, %v1182
  %1202 = vst.msk [vmem:[#allocation3 + $0x30] sm:$0xff] %vm1195, %v1184
  %1203 = vst.msk [vmem:[#allocation3 + $0x38] sm:$0xff] %vm1195, %v1186
  %v1204 = vld [vmem:[%s439] sm:$0xf]
  %v1205 = vld [vmem:[%s439 + $0x4] sm:$0x1]
  %v1206 = vld [vmem:[%s439 + $0x8] sm:$0xf]
  %v1207 = vld [vmem:[%s439 + $0xc] sm:$0x1]
  %v1208 = vld [vmem:[%s439 + $0x10] sm:$0xf]
  %v1209 = vld [vmem:[%s439 + $0x14] sm:$0x1]
  %v1210 = vld [vmem:[%s439 + $0x18] sm:$0xf]
  %v1211 = vld [vmem:[%s439 + $0x1c] sm:$0x1]
  %v1212 = vld [vmem:[%s439 + $0x20] sm:$0xf]
  %v1213 = vld [vmem:[%s439 + $0x24] sm:$0x1]
  %v1214 = vld [vmem:[%s439 + $0x28] sm:$0xf]
  %v1215 = vld [vmem:[%s439 + $0x2c] sm:$0x1]
  %v1216 = vld [vmem:[%s439 + $0x30] sm:$0xf]
  %v1217 = vld [vmem:[%s439 + $0x34] sm:$0x1]
  %v1218 = vld [vmem:[%s439 + $0x38] sm:$0xf]
  %v1219 = vld [vmem:[%s439 + $0x3c] sm:$0x1]
  %v1220 = vld [vmem:[%s439 + $0x50] sm:$0xf]
  %v1221 = vld [vmem:[%s439 + $0x54] sm:$0x1]
  %v1222 = vld [vmem:[%s439 + $0x58] sm:$0xf]
  %v1223 = vld [vmem:[%s439 + $0x5c] sm:$0x1]
  %v1224 = vld [vmem:[%s439 + $0x60] sm:$0xf]
  %v1225 = vld [vmem:[%s439 + $0x64] sm:$0x1]
  %v1226 = vld [vmem:[%s439 + $0x68] sm:$0xf]
  %v1227 = vld [vmem:[%s439 + $0x6c] sm:$0x1]
  %v1228 = vld [vmem:[%s439 + $0x70] sm:$0xf]
  %v1229 = vld [vmem:[%s439 + $0x74] sm:$0x1]
  %v1230 = vld [vmem:[%s439 + $0x78] sm:$0xf]
  %v1231 = vld [vmem:[%s439 + $0x7c] sm:$0x1]
  %v1232 = vld [vmem:[%s439 + $0x80] sm:$0xf]
  %v1233 = vld [vmem:[%s439 + $0x84] sm:$0x1]
  %v1234 = vld [vmem:[%s439 + $0x88] sm:$0xf]
  %v1235 = vld [vmem:[%s439 + $0x8c] sm:$0x1]
  %v1237 = vshrl.u32 %v1204, 16
  %v1239 = vrot.slane %v1237, 4
  %v1240 = vshll.u32 %v1204, 16
  %v1242 = vrot.slane %v1240, 5
  %v1243 = vor.u32 %v1239, %v1242
  %v1244 = vrot.slane %v1243, 4
  %v1246 = vshll.u32 %v1205, 16
  %v1248 = vrot.slane %v1246, 5
  %v1249 = vsel %vm645, %v1244, %v1248
  %v1251 = vshrl.u32 %v1206, 16
  %v1253 = vrot.slane %v1251, 4
  %v1254 = vshll.u32 %v1206, 16
  %v1256 = vrot.slane %v1254, 5
  %v1257 = vor.u32 %v1253, %v1256
  %v1258 = vrot.slane %v1257, 4
  %v1260 = vshll.u32 %v1207, 16
  %v1262 = vrot.slane %v1260, 5
  %v1263 = vsel %vm645, %v1258, %v1262
  %v1265 = vshrl.u32 %v1208, 16
  %v1267 = vrot.slane %v1265, 4
  %v1268 = vshll.u32 %v1208, 16
  %v1270 = vrot.slane %v1268, 5
  %v1271 = vor.u32 %v1267, %v1270
  %v1272 = vrot.slane %v1271, 4
  %v1274 = vshll.u32 %v1209, 16
  %v1276 = vrot.slane %v1274, 5
  %v1277 = vsel %vm645, %v1272, %v1276
  %v1279 = vshrl.u32 %v1210, 16
  %v1281 = vrot.slane %v1279, 4
  %v1282 = vshll.u32 %v1210, 16
  %v1284 = vrot.slane %v1282, 5
  %v1285 = vor.u32 %v1281, %v1284
  %v1286 = vrot.slane %v1285, 4
  %v1288 = vshll.u32 %v1211, 16
  %v1290 = vrot.slane %v1288, 5
  %v1291 = vsel %vm645, %v1286, %v1290
  %v1293 = vshrl.u32 %v1212, 16
  %v1295 = vrot.slane %v1293, 4
  %v1296 = vshll.u32 %v1212, 16
  %v1298 = vrot.slane %v1296, 5
  %v1299 = vor.u32 %v1295, %v1298
  %v1300 = vrot.slane %v1299, 4
  %v1302 = vshll.u32 %v1213, 16
  %v1304 = vrot.slane %v1302, 5
  %v1305 = vsel %vm645, %v1300, %v1304
  %v1307 = vshrl.u32 %v1214, 16
  %v1309 = vrot.slane %v1307, 4
  %v1310 = vshll.u32 %v1214, 16
  %v1312 = vrot.slane %v1310, 5
  %v1313 = vor.u32 %v1309, %v1312
  %v1314 = vrot.slane %v1313, 4
  %v1316 = vshll.u32 %v1215, 16
  %v1318 = vrot.slane %v1316, 5
  %v1319 = vsel %vm645, %v1314, %v1318
  %v1321 = vshrl.u32 %v1216, 16
  %v1323 = vrot.slane %v1321, 4
  %v1324 = vshll.u32 %v1216, 16
  %v1326 = vrot.slane %v1324, 5
  %v1327 = vor.u32 %v1323, %v1326
  %v1328 = vrot.slane %v1327, 4
  %v1330 = vshll.u32 %v1217, 16
  %v1332 = vrot.slane %v1330, 5
  %v1333 = vsel %vm645, %v1328, %v1332
  %v1335 = vshrl.u32 %v1218, 16
  %v1337 = vrot.slane %v1335, 4
  %v1338 = vshll.u32 %v1218, 16
  %v1340 = vrot.slane %v1338, 5
  %v1341 = vor.u32 %v1337, %v1340
  %v1342 = vrot.slane %v1341, 4
  %v1344 = vshll.u32 %v1219, 16
  %v1346 = vrot.slane %v1344, 5
  %v1347 = vsel %vm645, %v1342, %v1346
  %v1349 = vshrl.u32 %v1220, 16
  %v1351 = vrot.slane %v1349, 4
  %v1352 = vshll.u32 %v1220, 16
  %v1354 = vrot.slane %v1352, 5
  %v1355 = vor.u32 %v1351, %v1354
  %v1356 = vrot.slane %v1355, 4
  %v1358 = vshll.u32 %v1221, 16
  %v1360 = vrot.slane %v1358, 5
  %v1361 = vsel %vm645, %v1356, %v1360
  %v1363 = vshrl.u32 %v1222, 16
  %v1365 = vrot.slane %v1363, 4
  %v1366 = vshll.u32 %v1222, 16
  %v1368 = vrot.slane %v1366, 5
  %v1369 = vor.u32 %v1365, %v1368
  %v1370 = vrot.slane %v1369, 4
  %v1372 = vshll.u32 %v1223, 16
  %v1374 = vrot.slane %v1372, 5
  %v1375 = vsel %vm645, %v1370, %v1374
  %v1377 = vshrl.u32 %v1224, 16
  %v1379 = vrot.slane %v1377, 4
  %v1380 = vshll.u32 %v1224, 16
  %v1382 = vrot.slane %v1380, 5
  %v1383 = vor.u32 %v1379, %v1382
  %v1384 = vrot.slane %v1383, 4
  %v1386 = vshll.u32 %v1225, 16
  %v1388 = vrot.slane %v1386, 5
  %v1389 = vsel %vm645, %v1384, %v1388
  %v1391 = vshrl.u32 %v1226, 16
  %v1393 = vrot.slane %v1391, 4
  %v1394 = vshll.u32 %v1226, 16
  %v1396 = vrot.slane %v1394, 5
  %v1397 = vor.u32 %v1393, %v1396
  %v1398 = vrot.slane %v1397, 4
  %v1400 = vshll.u32 %v1227, 16
  %v1402 = vrot.slane %v1400, 5
  %v1403 = vsel %vm645, %v1398, %v1402
  %v1405 = vshrl.u32 %v1228, 16
  %v1407 = vrot.slane %v1405, 4
  %v1408 = vshll.u32 %v1228, 16
  %v1410 = vrot.slane %v1408, 5
  %v1411 = vor.u32 %v1407, %v1410
  %v1412 = vrot.slane %v1411, 4
  %v1414 = vshll.u32 %v1229, 16
  %v1416 = vrot.slane %v1414, 5
  %v1417 = vsel %vm645, %v1412, %v1416
  %v1419 = vshrl.u32 %v1230, 16
  %v1421 = vrot.slane %v1419, 4
  %v1422 = vshll.u32 %v1230, 16
  %v1424 = vrot.slane %v1422, 5
  %v1425 = vor.u32 %v1421, %v1424
  %v1426 = vrot.slane %v1425, 4
  %v1428 = vshll.u32 %v1231, 16
  %v1430 = vrot.slane %v1428, 5
  %v1431 = vsel %vm645, %v1426, %v1430
  %v1433 = vshrl.u32 %v1232, 16
  %v1435 = vrot.slane %v1433, 4
  %v1436 = vshll.u32 %v1232, 16
  %v1438 = vrot.slane %v1436, 5
  %v1439 = vor.u32 %v1435, %v1438
  %v1440 = vrot.slane %v1439, 4
  %v1442 = vshll.u32 %v1233, 16
  %v1444 = vrot.slane %v1442, 5
  %v1445 = vsel %vm645, %v1440, %v1444
  %v1447 = vshrl.u32 %v1234, 16
  %v1449 = vrot.slane %v1447, 4
  %v1450 = vshll.u32 %v1234, 16
  %v1452 = vrot.slane %v1450, 5
  %v1453 = vor.u32 %v1449, %v1452
  %v1454 = vrot.slane %v1453, 4
  %v1456 = vshll.u32 %v1235, 16
  %v1458 = vrot.slane %v1456, 5
  %v1459 = vsel %vm645, %v1454, %v1458
  %v1460 = vunpack.c.l.b16 %v1249
  %v1461 = vunpack.c.l.b16 %v1263
  %v1462 = vunpack.c.l.b16 %v1277
  %v1463 = vunpack.c.l.b16 %v1291
  %v1464 = vunpack.c.l.b16 %v1305
  %v1465 = vunpack.c.l.b16 %v1319
  %v1466 = vunpack.c.l.b16 %v1333
  %v1467 = vunpack.c.l.b16 %v1347
  %v1468 = vunpack.c.l.b16 %v1361
  %v1469 = vunpack.c.l.b16 %v1375
  %v1470 = vunpack.c.l.b16 %v1389
  %v1471 = vunpack.c.l.b16 %v1403
  %v1472 = vunpack.c.l.b16 %v1417
  %v1473 = vunpack.c.l.b16 %v1431
  %v1474 = vunpack.c.l.b16 %v1445
  %v1475 = vunpack.c.l.b16 %v1459
  %v1476 = vpack.c.b16 %v1461, %v1460
  %v1477 = vpack.c.b16 %v1463, %v1462
  %v1478 = vpack.c.b16 %v1465, %v1464
  %v1479 = vpack.c.b16 %v1467, %v1466
  %v1480 = vpack.c.b16 %v1469, %v1468
  %v1481 = vpack.c.b16 %v1471, %v1470
  %v1482 = vpack.c.b16 %v1473, %v1472
  %v1483 = vpack.c.b16 %v1475, %v1474
  %1484 = vrot.lane.b32.xlu0 %v1476, 16
  %v1485 = vpop.permute.xlu0 %1484
  %1486 = vrot.lane.b32.xlu0 %v1477, 16
  %v1487 = vpop.permute.xlu0 %1486
  %1488 = vrot.lane.b32.xlu0 %v1478, 16
  %v1489 = vpop.permute.xlu0 %1488
  %1490 = vrot.lane.b32.xlu0 %v1479, 16
  %v1491 = vpop.permute.xlu0 %1490
  %1492 = vrot.lane.b32.xlu0 %v1480, 16
  %v1493 = vpop.permute.xlu0 %1492
  %1494 = vrot.lane.b32.xlu0 %v1481, 16
  %v1495 = vpop.permute.xlu0 %1494
  %1496 = vrot.lane.b32.xlu0 %v1482, 16
  %v1497 = vpop.permute.xlu0 %1496
  %1498 = vrot.lane.b32.xlu0 %v1483, 16
  %v1499 = vpop.permute.xlu0 %1498
  %vm1508 = vcmask 162944
  %1509 = vst.msk [vmem:[#allocation3] sm:$0xff] %vm1508, %v1485
  %1510 = vst.msk [vmem:[#allocation3 + $0x8] sm:$0xff] %vm1508, %v1487
  %1511 = vst.msk [vmem:[#allocation3 + $0x10] sm:$0xff] %vm1508, %v1489
  %1512 = vst.msk [vmem:[#allocation3 + $0x18] sm:$0xff] %vm1508, %v1491
  %1513 = vst.msk [vmem:[#allocation3 + $0x20] sm:$0xff] %vm1508, %v1493
  %1514 = vst.msk [vmem:[#allocation3 + $0x28] sm:$0xff] %vm1508, %v1495
  %1515 = vst.msk [vmem:[#allocation3 + $0x30] sm:$0xff] %vm1508, %v1497
  %1516 = vst.msk [vmem:[#allocation3 + $0x38] sm:$0xff] %vm1508, %v1499
  %v1517 = vld [vmem:[%s439] sm:$0xe]
  %v1518 = vld [vmem:[%s439 + $0x4] sm:$0x1]
  %v1519 = vld [vmem:[%s439 + $0x8] sm:$0xe]
  %v1520 = vld [vmem:[%s439 + $0xc] sm:$0x1]
  %v1521 = vld [vmem:[%s439 + $0x10] sm:$0xe]
  %v1522 = vld [vmem:[%s439 + $0x14] sm:$0x1]
  %v1523 = vld [vmem:[%s439 + $0x18] sm:$0xe]
  %v1524 = vld [vmem:[%s439 + $0x1c] sm:$0x1]
  %v1525 = vld [vmem:[%s439 + $0x20] sm:$0xe]
  %v1526 = vld [vmem:[%s439 + $0x24] sm:$0x1]
  %v1527 = vld [vmem:[%s439 + $0x28] sm:$0xe]
  %v1528 = vld [vmem:[%s439 + $0x2c] sm:$0x1]
  %v1529 = vld [vmem:[%s439 + $0x30] sm:$0xe]
  %v1530 = vld [vmem:[%s439 + $0x34] sm:$0x1]
  %v1531 = vld [vmem:[%s439 + $0x38] sm:$0xe]
  %v1532 = vld [vmem:[%s439 + $0x3c] sm:$0x1]
  %v1533 = vld [vmem:[%s439 + $0x50] sm:$0xe]
  %v1534 = vld [vmem:[%s439 + $0x54] sm:$0x1]
  %v1535 = vld [vmem:[%s439 + $0x58] sm:$0xe]
  %v1536 = vld [vmem:[%s439 + $0x5c] sm:$0x1]
  %v1537 = vld [vmem:[%s439 + $0x60] sm:$0xe]
  %v1538 = vld [vmem:[%s439 + $0x64] sm:$0x1]
  %v1539 = vld [vmem:[%s439 + $0x68] sm:$0xe]
  %v1540 = vld [vmem:[%s439 + $0x6c] sm:$0x1]
  %v1541 = vld [vmem:[%s439 + $0x70] sm:$0xe]
  %v1542 = vld [vmem:[%s439 + $0x74] sm:$0x1]
  %v1543 = vld [vmem:[%s439 + $0x78] sm:$0xe]
  %v1544 = vld [vmem:[%s439 + $0x7c] sm:$0x1]
  %v1545 = vld [vmem:[%s439 + $0x80] sm:$0xe]
  %v1546 = vld [vmem:[%s439 + $0x84] sm:$0x1]
  %v1547 = vld [vmem:[%s439 + $0x88] sm:$0xe]
  %v1548 = vld [vmem:[%s439 + $0x8c] sm:$0x1]
  %v1581 = vrot.slane %v1517, 5
  %v1582 = vrot.slane %v1581, 4
  %v1583 = vrot.slane %v1518, 5
  %v1584 = vsel %vm993, %v1582, %v1583
  %v1585 = vrot.slane %v1519, 5
  %v1586 = vrot.slane %v1585, 4
  %v1587 = vrot.slane %v1520, 5
  %v1588 = vsel %vm993, %v1586, %v1587
  %v1589 = vrot.slane %v1521, 5
  %v1590 = vrot.slane %v1589, 4
  %v1591 = vrot.slane %v1522, 5
  %v1592 = vsel %vm993, %v1590, %v1591
  %v1593 = vrot.slane %v1523, 5
  %v1594 = vrot.slane %v1593, 4
  %v1595 = vrot.slane %v1524, 5
  %v1596 = vsel %vm993, %v1594, %v1595
  %v1597 = vrot.slane %v1525, 5
  %v1598 = vrot.slane %v1597, 4
  %v1599 = vrot.slane %v1526, 5
  %v1600 = vsel %vm993, %v1598, %v1599
  %v1601 = vrot.slane %v1527, 5
  %v1602 = vrot.slane %v1601, 4
  %v1603 = vrot.slane %v1528, 5
  %v1604 = vsel %vm993, %v1602, %v1603
  %v1605 = vrot.slane %v1529, 5
  %v1606 = vrot.slane %v1605, 4
  %v1607 = vrot.slane %v1530, 5
  %v1608 = vsel %vm993, %v1606, %v1607
  %v1609 = vrot.slane %v1531, 5
  %v1610 = vrot.slane %v1609, 4
  %v1611 = vrot.slane %v1532, 5
  %v1612 = vsel %vm993, %v1610, %v1611
  %v1613 = vrot.slane %v1533, 5
  %v1614 = vrot.slane %v1613, 4
  %v1615 = vrot.slane %v1534, 5
  %v1616 = vsel %vm993, %v1614, %v1615
  %v1617 = vrot.slane %v1535, 5
  %v1618 = vrot.slane %v1617, 4
  %v1619 = vrot.slane %v1536, 5
  %v1620 = vsel %vm993, %v1618, %v1619
  %v1621 = vrot.slane %v1537, 5
  %v1622 = vrot.slane %v1621, 4
  %v1623 = vrot.slane %v1538, 5
  %v1624 = vsel %vm993, %v1622, %v1623
  %v1625 = vrot.slane %v1539, 5
  %v1626 = vrot.slane %v1625, 4
  %v1627 = vrot.slane %v1540, 5
  %v1628 = vsel %vm993, %v1626, %v1627
  %v1629 = vrot.slane %v1541, 5
  %v1630 = vrot.slane %v1629, 4
  %v1631 = vrot.slane %v1542, 5
  %v1632 = vsel %vm993, %v1630, %v1631
  %v1633 = vrot.slane %v1543, 5
  %v1634 = vrot.slane %v1633, 4
  %v1635 = vrot.slane %v1544, 5
  %v1636 = vsel %vm993, %v1634, %v1635
  %v1637 = vrot.slane %v1545, 5
  %v1638 = vrot.slane %v1637, 4
  %v1639 = vrot.slane %v1546, 5
  %v1640 = vsel %vm993, %v1638, %v1639
  %v1641 = vrot.slane %v1547, 5
  %v1642 = vrot.slane %v1641, 4
  %v1643 = vrot.slane %v1548, 5
  %v1644 = vsel %vm993, %v1642, %v1643
  %v1645 = vunpack.c.l.b16 %v1584
  %v1646 = vunpack.c.l.b16 %v1588
  %v1647 = vunpack.c.l.b16 %v1592
  %v1648 = vunpack.c.l.b16 %v1596
  %v1649 = vunpack.c.l.b16 %v1600
  %v1650 = vunpack.c.l.b16 %v1604
  %v1651 = vunpack.c.l.b16 %v1608
  %v1652 = vunpack.c.l.b16 %v1612
  %v1653 = vunpack.c.l.b16 %v1616
  %v1654 = vunpack.c.l.b16 %v1620
  %v1655 = vunpack.c.l.b16 %v1624
  %v1656 = vunpack.c.l.b16 %v1628
  %v1657 = vunpack.c.l.b16 %v1632
  %v1658 = vunpack.c.l.b16 %v1636
  %v1659 = vunpack.c.l.b16 %v1640
  %v1660 = vunpack.c.l.b16 %v1644
  %v1661 = vpack.c.b16 %v1646, %v1645
  %v1662 = vpack.c.b16 %v1648, %v1647
  %v1663 = vpack.c.b16 %v1650, %v1649
  %v1664 = vpack.c.b16 %v1652, %v1651
  %v1665 = vpack.c.b16 %v1654, %v1653
  %v1666 = vpack.c.b16 %v1656, %v1655
  %v1667 = vpack.c.b16 %v1658, %v1657
  %v1668 = vpack.c.b16 %v1660, %v1659
  %1669 = vrot.lane.b32.xlu0 %v1661, 20
  %v1670 = vpop.permute.xlu0 %1669
  %1671 = vrot.lane.b32.xlu0 %v1662, 20
  %v1672 = vpop.permute.xlu0 %1671
  %1673 = vrot.lane.b32.xlu0 %v1663, 20
  %v1674 = vpop.permute.xlu0 %1673
  %1675 = vrot.lane.b32.xlu0 %v1664, 20
  %v1676 = vpop.permute.xlu0 %1675
  %1677 = vrot.lane.b32.xlu0 %v1665, 20
  %v1678 = vpop.permute.xlu0 %1677
  %1679 = vrot.lane.b32.xlu0 %v1666, 20
  %v1680 = vpop.permute.xlu0 %1679
  %1681 = vrot.lane.b32.xlu0 %v1667, 20
  %v1682 = vpop.permute.xlu0 %1681
  %1683 = vrot.lane.b32.xlu0 %v1668, 20
  %v1684 = vpop.permute.xlu0 %1683
  %vm1693 = vcmask 195744
  %1694 = vst.msk [vmem:[#allocation3] sm:$0xff] %vm1693, %v1670
  %1695 = vst.msk [vmem:[#allocation3 + $0x8] sm:$0xff] %vm1693, %v1672
  %1696 = vst.msk [vmem:[#allocation3 + $0x10] sm:$0xff] %vm1693, %v1674
  %1697 = vst.msk [vmem:[#allocation3 + $0x18] sm:$0xff] %vm1693, %v1676
  %1698 = vst.msk [vmem:[#allocation3 + $0x20] sm:$0xff] %vm1693, %v1678
  %1699 = vst.msk [vmem:[#allocation3 + $0x28] sm:$0xff] %vm1693, %v1680
  %1700 = vst.msk [vmem:[#allocation3 + $0x30] sm:$0xff] %vm1693, %v1682
  %1701 = vst.msk [vmem:[#allocation3 + $0x38] sm:$0xff] %vm1693, %v1684
  %s1702 = scalar_lea.vmem [#allocation2], 16
  %v1703 = vld [vmem:[%s1702] sm:$0xf]
  %v1704 = vld [vmem:[%s1702 + $0x8] sm:$0xf]
  %v1705 = vld [vmem:[%s1702 + $0x10] sm:$0xf]
  %v1706 = vld [vmem:[%s1702 + $0x18] sm:$0xf]
  %v1707 = vld [vmem:[%s1702 + $0x20] sm:$0xf]
  %v1708 = vld [vmem:[%s1702 + $0x28] sm:$0xf]
  %v1709 = vld [vmem:[%s1702 + $0x30] sm:$0xf]
  %v1710 = vld [vmem:[%s1702 + $0x38] sm:$0xf]
  %v1711 = vld [vmem:[%s1702 + $0x50] sm:$0xf]
  %v1712 = vld [vmem:[%s1702 + $0x58] sm:$0xf]
  %v1713 = vld [vmem:[%s1702 + $0x60] sm:$0xf]
  %v1714 = vld [vmem:[%s1702 + $0x68] sm:$0xf]
  %v1715 = vld [vmem:[%s1702 + $0x70] sm:$0xf]
  %v1716 = vld [vmem:[%s1702 + $0x78] sm:$0xf]
  %v1717 = vld [vmem:[%s1702 + $0x80] sm:$0xf]
  %v1718 = vld [vmem:[%s1702 + $0x88] sm:$0xf]
  %v1735 = vunpack.c.l.b16 %v1703
  %v1736 = vunpack.c.l.b16 %v1704
  %v1737 = vunpack.c.l.b16 %v1705
  %v1738 = vunpack.c.l.b16 %v1706
  %v1739 = vunpack.c.l.b16 %v1707
  %v1740 = vunpack.c.l.b16 %v1708
  %v1741 = vunpack.c.l.b16 %v1709
  %v1742 = vunpack.c.l.b16 %v1710
  %v1743 = vunpack.c.l.b16 %v1711
  %v1744 = vunpack.c.l.b16 %v1712
  %v1745 = vunpack.c.l.b16 %v1713
  %v1746 = vunpack.c.l.b16 %v1714
  %v1747 = vunpack.c.l.b16 %v1715
  %v1748 = vunpack.c.l.b16 %v1716
  %v1749 = vunpack.c.l.b16 %v1717
  %v1750 = vunpack.c.l.b16 %v1718
  %v1751 = vpack.c.b16 %v1736, %v1735
  %v1752 = vpack.c.b16 %v1738, %v1737
  %v1753 = vpack.c.b16 %v1740, %v1739
  %v1754 = vpack.c.b16 %v1742, %v1741
  %v1755 = vpack.c.b16 %v1744, %v1743
  %v1756 = vpack.c.b16 %v1746, %v1745
  %v1757 = vpack.c.b16 %v1748, %v1747
  %v1758 = vpack.c.b16 %v1750, %v1749
  %1759 = vrot.lane.b32.xlu0 %v1751, 24
  %v1760 = vpop.permute.xlu0 %1759
  %1761 = vrot.lane.b32.xlu0 %v1752, 24
  %v1762 = vpop.permute.xlu0 %1761
  %1763 = vrot.lane.b32.xlu0 %v1753, 24
  %v1764 = vpop.permute.xlu0 %1763
  %1765 = vrot.lane.b32.xlu0 %v1754, 24
  %v1766 = vpop.permute.xlu0 %1765
  %1767 = vrot.lane.b32.xlu0 %v1755, 24
  %v1768 = vpop.permute.xlu0 %1767
  %1769 = vrot.lane.b32.xlu0 %v1756, 24
  %v1770 = vpop.permute.xlu0 %1769
  %1771 = vrot.lane.b32.xlu0 %v1757, 24
  %v1772 = vpop.permute.xlu0 %1771
  %1773 = vrot.lane.b32.xlu0 %v1758, 24
  %v1774 = vpop.permute.xlu0 %1773
  %vm1783 = vcmask 228544
  %1784 = vst.msk [vmem:[#allocation3] sm:$0xff] %vm1783, %v1760
  %1785 = vst.msk [vmem:[#allocation3 + $0x8] sm:$0xff] %vm1783, %v1762
  %1786 = vst.msk [vmem:[#allocation3 + $0x10] sm:$0xff] %vm1783, %v1764
  %1787 = vst.msk [vmem:[#allocation3 + $0x18] sm:$0xff] %vm1783, %v1766
  %1788 = vst.msk [vmem:[#allocation3 + $0x20] sm:$0xff] %vm1783, %v1768
  %1789 = vst.msk [vmem:[#allocation3 + $0x28] sm:$0xff] %vm1783, %v1770
  %1790 = vst.msk [vmem:[#allocation3 + $0x30] sm:$0xff] %vm1783, %v1772
  %1791 = vst.msk [vmem:[#allocation3 + $0x38] sm:$0xff] %vm1783, %v1774
  %v1792 = vld [vmem:[%s1702] sm:$0xf]
  %v1793 = vld [vmem:[%s1702 + $0x4] sm:$0x1]
  %v1794 = vld [vmem:[%s1702 + $0x8] sm:$0xf]
  %v1795 = vld [vmem:[%s1702 + $0xc] sm:$0x1]
  %v1796 = vld [vmem:[%s1702 + $0x10] sm:$0xf]
  %v1797 = vld [vmem:[%s1702 + $0x14] sm:$0x1]
  %v1798 = vld [vmem:[%s1702 + $0x18] sm:$0xf]
  %v1799 = vld [vmem:[%s1702 + $0x1c] sm:$0x1]
  %v1800 = vld [vmem:[%s1702 + $0x20] sm:$0xf]
  %v1801 = vld [vmem:[%s1702 + $0x24] sm:$0x1]
  %v1802 = vld [vmem:[%s1702 + $0x28] sm:$0xf]
  %v1803 = vld [vmem:[%s1702 + $0x2c] sm:$0x1]
  %v1804 = vld [vmem:[%s1702 + $0x30] sm:$0xf]
  %v1805 = vld [vmem:[%s1702 + $0x34] sm:$0x1]
  %v1806 = vld [vmem:[%s1702 + $0x38] sm:$0xf]
  %v1807 = vld [vmem:[%s1702 + $0x3c] sm:$0x1]
  %v1808 = vld [vmem:[%s1702 + $0x50] sm:$0xf]
  %v1809 = vld [vmem:[%s1702 + $0x54] sm:$0x1]
  %v1810 = vld [vmem:[%s1702 + $0x58] sm:$0xf]
  %v1811 = vld [vmem:[%s1702 + $0x5c] sm:$0x1]
  %v1812 = vld [vmem:[%s1702 + $0x60] sm:$0xf]
  %v1813 = vld [vmem:[%s1702 + $0x64] sm:$0x1]
  %v1814 = vld [vmem:[%s1702 + $0x68] sm:$0xf]
  %v1815 = vld [vmem:[%s1702 + $0x6c] sm:$0x1]
  %v1816 = vld [vmem:[%s1702 + $0x70] sm:$0xf]
  %v1817 = vld [vmem:[%s1702 + $0x74] sm:$0x1]
  %v1818 = vld [vmem:[%s1702 + $0x78] sm:$0xf]
  %v1819 = vld [vmem:[%s1702 + $0x7c] sm:$0x1]
  %v1820 = vld [vmem:[%s1702 + $0x80] sm:$0xf]
  %v1821 = vld [vmem:[%s1702 + $0x84] sm:$0x1]
  %v1822 = vld [vmem:[%s1702 + $0x88] sm:$0xf]
  %v1823 = vld [vmem:[%s1702 + $0x8c] sm:$0x1]
  %v1825 = vshrl.u32 %v1792, 16
  %v1827 = vrot.slane %v1825, 4
  %v1828 = vshll.u32 %v1792, 16
  %v1830 = vrot.slane %v1828, 5
  %v1831 = vor.u32 %v1827, %v1830
  %v1832 = vrot.slane %v1831, 4
  %v1834 = vshll.u32 %v1793, 16
  %v1836 = vrot.slane %v1834, 5
  %v1837 = vsel %vm645, %v1832, %v1836
  %v1839 = vshrl.u32 %v1794, 16
  %v1841 = vrot.slane %v1839, 4
  %v1842 = vshll.u32 %v1794, 16
  %v1844 = vrot.slane %v1842, 5
  %v1845 = vor.u32 %v1841, %v1844
  %v1846 = vrot.slane %v1845, 4
  %v1848 = vshll.u32 %v1795, 16
  %v1850 = vrot.slane %v1848, 5
  %v1851 = vsel %vm645, %v1846, %v1850
  %v1853 = vshrl.u32 %v1796, 16
  %v1855 = vrot.slane %v1853, 4
  %v1856 = vshll.u32 %v1796, 16
  %v1858 = vrot.slane %v1856, 5
  %v1859 = vor.u32 %v1855, %v1858
  %v1860 = vrot.slane %v1859, 4
  %v1862 = vshll.u32 %v1797, 16
  %v1864 = vrot.slane %v1862, 5
  %v1865 = vsel %vm645, %v1860, %v1864
  %v1867 = vshrl.u32 %v1798, 16
  %v1869 = vrot.slane %v1867, 4
  %v1870 = vshll.u32 %v1798, 16
  %v1872 = vrot.slane %v1870, 5
  %v1873 = vor.u32 %v1869, %v1872
  %v1874 = vrot.slane %v1873, 4
  %v1876 = vshll.u32 %v1799, 16
  %v1878 = vrot.slane %v1876, 5
  %v1879 = vsel %vm645, %v1874, %v1878
  %v1881 = vshrl.u32 %v1800, 16
  %v1883 = vrot.slane %v1881, 4
  %v1884 = vshll.u32 %v1800, 16
  %v1886 = vrot.slane %v1884, 5
  %v1887 = vor.u32 %v1883, %v1886
  %v1888 = vrot.slane %v1887, 4
  %v1890 = vshll.u32 %v1801, 16
  %v1892 = vrot.slane %v1890, 5
  %v1893 = vsel %vm645, %v1888, %v1892
  %v1895 = vshrl.u32 %v1802, 16
  %v1897 = vrot.slane %v1895, 4
  %v1898 = vshll.u32 %v1802, 16
  %v1900 = vrot.slane %v1898, 5
  %v1901 = vor.u32 %v1897, %v1900
  %v1902 = vrot.slane %v1901, 4
  %v1904 = vshll.u32 %v1803, 16
  %v1906 = vrot.slane %v1904, 5
  %v1907 = vsel %vm645, %v1902, %v1906
  %v1909 = vshrl.u32 %v1804, 16
  %v1911 = vrot.slane %v1909, 4
  %v1912 = vshll.u32 %v1804, 16
  %v1914 = vrot.slane %v1912, 5
  %v1915 = vor.u32 %v1911, %v1914
  %v1916 = vrot.slane %v1915, 4
  %v1918 = vshll.u32 %v1805, 16
  %v1920 = vrot.slane %v1918, 5
  %v1921 = vsel %vm645, %v1916, %v1920
  %v1923 = vshrl.u32 %v1806, 16
  %v1925 = vrot.slane %v1923, 4
  %v1926 = vshll.u32 %v1806, 16
  %v1928 = vrot.slane %v1926, 5
  %v1929 = vor.u32 %v1925, %v1928
  %v1930 = vrot.slane %v1929, 4
  %v1932 = vshll.u32 %v1807, 16
  %v1934 = vrot.slane %v1932, 5
  %v1935 = vsel %vm645, %v1930, %v1934
  %v1937 = vshrl.u32 %v1808, 16
  %v1939 = vrot.slane %v1937, 4
  %v1940 = vshll.u32 %v1808, 16
  %v1942 = vrot.slane %v1940, 5
  %v1943 = vor.u32 %v1939, %v1942
  %v1944 = vrot.slane %v1943, 4
  %v1946 = vshll.u32 %v1809, 16
  %v1948 = vrot.slane %v1946, 5
  %v1949 = vsel %vm645, %v1944, %v1948
  %v1951 = vshrl.u32 %v1810, 16
  %v1953 = vrot.slane %v1951, 4
  %v1954 = vshll.u32 %v1810, 16
  %v1956 = vrot.slane %v1954, 5
  %v1957 = vor.u32 %v1953, %v1956
  %v1958 = vrot.slane %v1957, 4
  %v1960 = vshll.u32 %v1811, 16
  %v1962 = vrot.slane %v1960, 5
  %v1963 = vsel %vm645, %v1958, %v1962
  %v1965 = vshrl.u32 %v1812, 16
  %v1967 = vrot.slane %v1965, 4
  %v1968 = vshll.u32 %v1812, 16
  %v1970 = vrot.slane %v1968, 5
  %v1971 = vor.u32 %v1967, %v1970
  %v1972 = vrot.slane %v1971, 4
  %v1974 = vshll.u32 %v1813, 16
  %v1976 = vrot.slane %v1974, 5
  %v1977 = vsel %vm645, %v1972, %v1976
  %v1979 = vshrl.u32 %v1814, 16
  %v1981 = vrot.slane %v1979, 4
  %v1982 = vshll.u32 %v1814, 16
  %v1984 = vrot.slane %v1982, 5
  %v1985 = vor.u32 %v1981, %v1984
  %v1986 = vrot.slane %v1985, 4
  %v1988 = vshll.u32 %v1815, 16
  %v1990 = vrot.slane %v1988, 5
  %v1991 = vsel %vm645, %v1986, %v1990
  %v1993 = vshrl.u32 %v1816, 16
  %v1995 = vrot.slane %v1993, 4
  %v1996 = vshll.u32 %v1816, 16
  %v1998 = vrot.slane %v1996, 5
  %v1999 = vor.u32 %v1995, %v1998
  %v2000 = vrot.slane %v1999, 4
  %v2002 = vshll.u32 %v1817, 16
  %v2004 = vrot.slane %v2002, 5
  %v2005 = vsel %vm645, %v2000, %v2004
  %v2007 = vshrl.u32 %v1818, 16
  %v2009 = vrot.slane %v2007, 4
  %v2010 = vshll.u32 %v1818, 16
  %v2012 = vrot.slane %v2010, 5
  %v2013 = vor.u32 %v2009, %v2012
  %v2014 = vrot.slane %v2013, 4
  %v2016 = vshll.u32 %v1819, 16
  %v2018 = vrot.slane %v2016, 5
  %v2019 = vsel %vm645, %v2014, %v2018
  %v2021 = vshrl.u32 %v1820, 16
  %v2023 = vrot.slane %v2021, 4
  %v2024 = vshll.u32 %v1820, 16
  %v2026 = vrot.slane %v2024, 5
  %v2027 = vor.u32 %v2023, %v2026
  %v2028 = vrot.slane %v2027, 4
  %v2030 = vshll.u32 %v1821, 16
  %v2032 = vrot.slane %v2030, 5
  %v2033 = vsel %vm645, %v2028, %v2032
  %v2035 = vshrl.u32 %v1822, 16
  %v2037 = vrot.slane %v2035, 4
  %v2038 = vshll.u32 %v1822, 16
  %v2040 = vrot.slane %v2038, 5
  %v2041 = vor.u32 %v2037, %v2040
  %v2042 = vrot.slane %v2041, 4
  %v2044 = vshll.u32 %v1823, 16
  %v2046 = vrot.slane %v2044, 5
  %v2047 = vsel %vm645, %v2042, %v2046
  %v2048 = vunpack.c.l.b16 %v1837
  %v2049 = vunpack.c.l.b16 %v1851
  %v2050 = vunpack.c.l.b16 %v1865
  %v2051 = vunpack.c.l.b16 %v1879
  %v2052 = vunpack.c.l.b16 %v1893
  %v2053 = vunpack.c.l.b16 %v1907
  %v2054 = vunpack.c.l.b16 %v1921
  %v2055 = vunpack.c.l.b16 %v1935
  %v2056 = vunpack.c.l.b16 %v1949
  %v2057 = vunpack.c.l.b16 %v1963
  %v2058 = vunpack.c.l.b16 %v1977
  %v2059 = vunpack.c.l.b16 %v1991
  %v2060 = vunpack.c.l.b16 %v2005
  %v2061 = vunpack.c.l.b16 %v2019
  %v2062 = vunpack.c.l.b16 %v2033
  %v2063 = vunpack.c.l.b16 %v2047
  %v2064 = vpack.c.b16 %v2049, %v2048
  %v2065 = vpack.c.b16 %v2051, %v2050
  %v2066 = vpack.c.b16 %v2053, %v2052
  %v2067 = vpack.c.b16 %v2055, %v2054
  %v2068 = vpack.c.b16 %v2057, %v2056
  %v2069 = vpack.c.b16 %v2059, %v2058
  %v2070 = vpack.c.b16 %v2061, %v2060
  %v2071 = vpack.c.b16 %v2063, %v2062
  %2072 = vrot.lane.b32.xlu0 %v2064, 28
  %v2073 = vpop.permute.xlu0 %2072
  %2074 = vrot.lane.b32.xlu0 %v2065, 28
  %v2075 = vpop.permute.xlu0 %2074
  %2076 = vrot.lane.b32.xlu0 %v2066, 28
  %v2077 = vpop.permute.xlu0 %2076
  %2078 = vrot.lane.b32.xlu0 %v2067, 28
  %v2079 = vpop.permute.xlu0 %2078
  %2080 = vrot.lane.b32.xlu0 %v2068, 28
  %v2081 = vpop.permute.xlu0 %2080
  %2082 = vrot.lane.b32.xlu0 %v2069, 28
  %v2083 = vpop.permute.xlu0 %2082
  %2084 = vrot.lane.b32.xlu0 %v2070, 28
  %v2085 = vpop.permute.xlu0 %2084
  %2086 = vrot.lane.b32.xlu0 %v2071, 28
  %v2087 = vpop.permute.xlu0 %2086
  %vm2096 = vcmask 261344
  %2097 = vst.msk [vmem:[#allocation3] sm:$0xff] %vm2096, %v2073
  %2098 = vst.msk [vmem:[#allocation3 + $0x8] sm:$0xff] %vm2096, %v2075
  %2099 = vst.msk [vmem:[#allocation3 + $0x10] sm:$0xff] %vm2096, %v2077
  %2100 = vst.msk [vmem:[#allocation3 + $0x18] sm:$0xff] %vm2096, %v2079
  %2101 = vst.msk [vmem:[#allocation3 + $0x20] sm:$0xff] %vm2096, %v2081
  %2102 = vst.msk [vmem:[#allocation3 + $0x28] sm:$0xff] %vm2096, %v2083
  %2103 = vst.msk [vmem:[#allocation3 + $0x30] sm:$0xff] %vm2096, %v2085
  %2104 = vst.msk [vmem:[#allocation3 + $0x38] sm:$0xff] %vm2096, %v2087
  %v2105 = vld [vmem:[%s1702] sm:$0xe]
  %v2106 = vld [vmem:[%s1702 + $0x4] sm:$0x1]
  %v2107 = vld [vmem:[%s1702 + $0x8] sm:$0xe]
  %v2108 = vld [vmem:[%s1702 + $0xc] sm:$0x1]
  %v2109 = vld [vmem:[%s1702 + $0x10] sm:$0xe]
  %v2110 = vld [vmem:[%s1702 + $0x14] sm:$0x1]
  %v2111 = vld [vmem:[%s1702 + $0x18] sm:$0xe]
  %v2112 = vld [vmem:[%s1702 + $0x1c] sm:$0x1]
  %v2113 = vld [vmem:[%s1702 + $0x20] sm:$0xe]
  %v2114 = vld [vmem:[%s1702 + $0x24] sm:$0x1]
  %v2115 = vld [vmem:[%s1702 + $0x28] sm:$0xe]
  %v2116 = vld [vmem:[%s1702 + $0x2c] sm:$0x1]
  %v2117 = vld [vmem:[%s1702 + $0x30] sm:$0xe]
  %v2118 = vld [vmem:[%s1702 + $0x34] sm:$0x1]
  %v2119 = vld [vmem:[%s1702 + $0x38] sm:$0xe]
  %v2120 = vld [vmem:[%s1702 + $0x3c] sm:$0x1]
  %v2121 = vld [vmem:[%s1702 + $0x50] sm:$0xe]
  %v2122 = vld [vmem:[%s1702 + $0x54] sm:$0x1]
  %v2123 = vld [vmem:[%s1702 + $0x58] sm:$0xe]
  %v2124 = vld [vmem:[%s1702 + $0x5c] sm:$0x1]
  %v2125 = vld [vmem:[%s1702 + $0x60] sm:$0xe]
  %v2126 = vld [vmem:[%s1702 + $0x64] sm:$0x1]
  %v2127 = vld [vmem:[%s1702 + $0x68] sm:$0xe]
  %v2128 = vld [vmem:[%s1702 + $0x6c] sm:$0x1]
  %v2129 = vld [vmem:[%s1702 + $0x70] sm:$0xe]
  %v2130 = vld [vmem:[%s1702 + $0x74] sm:$0x1]
  %v2131 = vld [vmem:[%s1702 + $0x78] sm:$0xe]
  %v2132 = vld [vmem:[%s1702 + $0x7c] sm:$0x1]
  %v2133 = vld [vmem:[%s1702 + $0x80] sm:$0xe]
  %v2134 = vld [vmem:[%s1702 + $0x84] sm:$0x1]
  %v2135 = vld [vmem:[%s1702 + $0x88] sm:$0xe]
  %v2136 = vld [vmem:[%s1702 + $0x8c] sm:$0x1]
  %v2169 = vrot.slane %v2105, 5
  %v2170 = vrot.slane %v2169, 4
  %v2171 = vrot.slane %v2106, 5
  %v2172 = vsel %vm993, %v2170, %v2171
  %v2173 = vrot.slane %v2107, 5
  %v2174 = vrot.slane %v2173, 4
  %v2175 = vrot.slane %v2108, 5
  %v2176 = vsel %vm993, %v2174, %v2175
  %v2177 = vrot.slane %v2109, 5
  %v2178 = vrot.slane %v2177, 4
  %v2179 = vrot.slane %v2110, 5
  %v2180 = vsel %vm993, %v2178, %v2179
  %v2181 = vrot.slane %v2111, 5
  %v2182 = vrot.slane %v2181, 4
  %v2183 = vrot.slane %v2112, 5
  %v2184 = vsel %vm993, %v2182, %v2183
  %v2185 = vrot.slane %v2113, 5
  %v2186 = vrot.slane %v2185, 4
  %v2187 = vrot.slane %v2114, 5
  %v2188 = vsel %vm993, %v2186, %v2187
  %v2189 = vrot.slane %v2115, 5
  %v2190 = vrot.slane %v2189, 4
  %v2191 = vrot.slane %v2116, 5
  %v2192 = vsel %vm993, %v2190, %v2191
  %v2193 = vrot.slane %v2117, 5
  %v2194 = vrot.slane %v2193, 4
  %v2195 = vrot.slane %v2118, 5
  %v2196 = vsel %vm993, %v2194, %v2195
  %v2197 = vrot.slane %v2119, 5
  %v2198 = vrot.slane %v2197, 4
  %v2199 = vrot.slane %v2120, 5
  %v2200 = vsel %vm993, %v2198, %v2199
  %v2201 = vrot.slane %v2121, 5
  %v2202 = vrot.slane %v2201, 4
  %v2203 = vrot.slane %v2122, 5
  %v2204 = vsel %vm993, %v2202, %v2203
  %v2205 = vrot.slane %v2123, 5
  %v2206 = vrot.slane %v2205, 4
  %v2207 = vrot.slane %v2124, 5
  %v2208 = vsel %vm993, %v2206, %v2207
  %v2209 = vrot.slane %v2125, 5
  %v2210 = vrot.slane %v2209, 4
  %v2211 = vrot.slane %v2126, 5
  %v2212 = vsel %vm993, %v2210, %v2211
  %v2213 = vrot.slane %v2127, 5
  %v2214 = vrot.slane %v2213, 4
  %v2215 = vrot.slane %v2128, 5
  %v2216 = vsel %vm993, %v2214, %v2215
  %v2217 = vrot.slane %v2129, 5
  %v2218 = vrot.slane %v2217, 4
  %v2219 = vrot.slane %v2130, 5
  %v2220 = vsel %vm993, %v2218, %v2219
  %v2221 = vrot.slane %v2131, 5
  %v2222 = vrot.slane %v2221, 4
  %v2223 = vrot.slane %v2132, 5
  %v2224 = vsel %vm993, %v2222, %v2223
  %v2225 = vrot.slane %v2133, 5
  %v2226 = vrot.slane %v2225, 4
  %v2227 = vrot.slane %v2134, 5
  %v2228 = vsel %vm993, %v2226, %v2227
  %v2229 = vrot.slane %v2135, 5
  %v2230 = vrot.slane %v2229, 4
  %v2231 = vrot.slane %v2136, 5
  %v2232 = vsel %vm993, %v2230, %v2231
  %v2233 = vunpack.c.l.b16 %v2172
  %v2234 = vunpack.c.l.b16 %v2176
  %v2235 = vunpack.c.l.b16 %v2180
  %v2236 = vunpack.c.l.b16 %v2184
  %v2237 = vunpack.c.l.b16 %v2188
  %v2238 = vunpack.c.l.b16 %v2192
  %v2239 = vunpack.c.l.b16 %v2196
  %v2240 = vunpack.c.l.b16 %v2200
  %v2241 = vunpack.c.l.b16 %v2204
  %v2242 = vunpack.c.l.b16 %v2208
  %v2243 = vunpack.c.l.b16 %v2212
  %v2244 = vunpack.c.l.b16 %v2216
  %v2245 = vunpack.c.l.b16 %v2220
  %v2246 = vunpack.c.l.b16 %v2224
  %v2247 = vunpack.c.l.b16 %v2228
  %v2248 = vunpack.c.l.b16 %v2232
  %v2249 = vpack.c.b16 %v2234, %v2233
  %v2250 = vpack.c.b16 %v2236, %v2235
  %v2251 = vpack.c.b16 %v2238, %v2237
  %v2252 = vpack.c.b16 %v2240, %v2239
  %v2253 = vpack.c.b16 %v2242, %v2241
  %v2254 = vpack.c.b16 %v2244, %v2243
  %v2255 = vpack.c.b16 %v2246, %v2245
  %v2256 = vpack.c.b16 %v2248, %v2247
  %2257 = vrot.lane.b32.xlu0 %v2249, 32
  %v2258 = vpop.permute.xlu0 %2257
  %2259 = vrot.lane.b32.xlu0 %v2250, 32
  %v2260 = vpop.permute.xlu0 %2259
  %2261 = vrot.lane.b32.xlu0 %v2251, 32
  %v2262 = vpop.permute.xlu0 %2261
  %2263 = vrot.lane.b32.xlu0 %v2252, 32
  %v2264 = vpop.permute.xlu0 %2263
  %2265 = vrot.lane.b32.xlu0 %v2253, 32
  %v2266 = vpop.permute.xlu0 %2265
  %2267 = vrot.lane.b32.xlu0 %v2254, 32
  %v2268 = vpop.permute.xlu0 %2267
  %2269 = vrot.lane.b32.xlu0 %v2255, 32
  %v2270 = vpop.permute.xlu0 %2269
  %2271 = vrot.lane.b32.xlu0 %v2256, 32
  %v2272 = vpop.permute.xlu0 %2271
  %vm2281 = vcmask 294144
  %2282 = vst.msk [vmem:[#allocation3] sm:$0xff] %vm2281, %v2258
  %2283 = vst.msk [vmem:[#allocation3 + $0x8] sm:$0xff] %vm2281, %v2260
  %2284 = vst.msk [vmem:[#allocation3 + $0x10] sm:$0xff] %vm2281, %v2262
  %2285 = vst.msk [vmem:[#allocation3 + $0x18] sm:$0xff] %vm2281, %v2264
  %2286 = vst.msk [vmem:[#allocation3 + $0x20] sm:$0xff] %vm2281, %v2266
  %2287 = vst.msk [vmem:[#allocation3 + $0x28] sm:$0xff] %vm2281, %v2268
  %2288 = vst.msk [vmem:[#allocation3 + $0x30] sm:$0xff] %vm2281, %v2270
  %2289 = vst.msk [vmem:[#allocation3 + $0x38] sm:$0xff] %vm2281, %v2272
  %vm2290 = vcmask 1047840
  %2291 = vst.msk [vmem:[#allocation3] sm:$0xff] %vm2290, 0
  %2292 = vst.msk [vmem:[#allocation3 + $0x8] sm:$0xff] %vm2290, 0
  %2293 = vst.msk [vmem:[#allocation3 + $0x10] sm:$0xff] %vm2290, 0
  %2294 = vst.msk [vmem:[#allocation3 + $0x18] sm:$0xff] %vm2290, 0
  %2295 = vst.msk [vmem:[#allocation3 + $0x20] sm:$0xff] %vm2290, 0
  %2296 = vst.msk [vmem:[#allocation3 + $0x28] sm:$0xff] %vm2290, 0
  %2297 = vst.msk [vmem:[#allocation3 + $0x30] sm:$0xff] %vm2290, 0
  %2298 = vst.msk [vmem:[#allocation3 + $0x38] sm:$0xff] %vm2290, 0
  %v2299 = vld [vmem:[#allocation3] sm:$0xff]
  %v2300 = vld [vmem:[#allocation3 + $0x8] sm:$0xff]
  %v2301 = vld [vmem:[#allocation3 + $0x10] sm:$0xff]
  %v2302 = vld [vmem:[#allocation3 + $0x18] sm:$0xff]
  %v2303 = vld [vmem:[#allocation3 + $0x20] sm:$0xff]
  %v2304 = vld [vmem:[#allocation3 + $0x28] sm:$0xff]
  %v2305 = vld [vmem:[#allocation3 + $0x30] sm:$0xff]
  %v2306 = vld [vmem:[#allocation3 + $0x38] sm:$0xff]
  %v2307 = vld [vmem:[%s1] sm:$0xf]
  %v2308 = vld [vmem:[%s1 + $0x4] sm:$0xf]
  %v2309 = vld [vmem:[%s1 + $0x8] sm:$0xf]
  %v2310 = vld [vmem:[%s1 + $0xc] sm:$0xf]
  %v2311 = vld [vmem:[%s1 + $0x10] sm:$0xf]
  %v2312 = vld [vmem:[%s1 + $0x14] sm:$0xf]
  %v2313 = vld [vmem:[%s1 + $0x18] sm:$0xf]
  %v2314 = vld [vmem:[%s1 + $0x1c] sm:$0xf]
  %v2315 = vld [vmem:[%s1 + $0x20] sm:$0xf]
  %v2316 = vld [vmem:[%s1 + $0x24] sm:$0xf]
  %v2317 = vld [vmem:[%s1 + $0x28] sm:$0xf]
  %v2318 = vld [vmem:[%s1 + $0x2c] sm:$0xf]
  %v2319 = vld [vmem:[%s1 + $0x30] sm:$0xf]
  %v2320 = vld [vmem:[%s1 + $0x34] sm:$0xf]
  %v2321 = vld [vmem:[%s1 + $0x38] sm:$0xf]
  %v2322 = vld [vmem:[%s1 + $0x3c] sm:$0xf]
  %v2339 = vunpack.c.l.b16 %v2307
  %v2340 = vunpack.c.l.b16 %v2308
  %v2341 = vunpack.c.l.b16 %v2309
  %v2342 = vunpack.c.l.b16 %v2310
  %v2343 = vunpack.c.l.b16 %v2311
  %v2344 = vunpack.c.l.b16 %v2312
  %v2345 = vunpack.c.l.b16 %v2313
  %v2346 = vunpack.c.l.b16 %v2314
  %v2347 = vunpack.c.l.b16 %v2315
  %v2348 = vunpack.c.l.b16 %v2316
  %v2349 = vunpack.c.l.b16 %v2317
  %v2350 = vunpack.c.l.b16 %v2318
  %v2351 = vunpack.c.l.b16 %v2319
  %v2352 = vunpack.c.l.b16 %v2320
  %v2353 = vunpack.c.l.b16 %v2321
  %v2354 = vunpack.c.l.b16 %v2322
  %v2355 = vpack.c.b16 %v2340, %v2339
  %v2356 = vpack.c.b16 %v2342, %v2341
  %v2357 = vpack.c.b16 %v2344, %v2343
  %v2358 = vpack.c.b16 %v2346, %v2345
  %v2359 = vpack.c.b16 %v2348, %v2347
  %v2360 = vpack.c.b16 %v2350, %v2349
  %v2361 = vpack.c.b16 %v2352, %v2351
  %v2362 = vpack.c.b16 %v2354, %v2353
  %2371 = vmatprep.subr.bf16.mxu0 0
  %2372 = vmatpush1.bf16.msra.mxu0 %v2355
  %2373 = vmatprep.subr.bf16.mxu0 0
  %2374 = vmatpush1.bf16.msra.mxu0 %v2356
  %2375 = vmatprep.subr.bf16.mxu0 0
  %2376 = vmatpush1.bf16.msra.mxu0 %v2357
  %2377 = vmatprep.subr.bf16.mxu0 0
  %2378 = vmatpush1.bf16.msra.mxu0 %v2358
  %2379 = vmatprep.subr.bf16.mxu0 0
  %2380 = vmatpush1.bf16.msra.mxu0 %v2359
  %2381 = vmatprep.subr.bf16.mxu0 0
  %2382 = vmatpush1.bf16.msra.mxu0 %v2360
  %2383 = vmatprep.subr.bf16.mxu0 0
  %2384 = vmatpush1.bf16.msra.mxu0 %v2361
  %2385 = vmatprep.subr.bf16.mxu0 0
  %2386 = vmatpush1.bf16.msra.mxu0 %v2362
  %2387 = vmatprep.subr.bf16.mxu0 0
  %2388 = vmatpush1.bf16.msra.mxu0 0
  %2389 = vmatprep.subr.bf16.mxu0 0
  %2390 = vmatpush1.bf16.msra.mxu0 0
  %2391 = vmatprep.subr.bf16.mxu0 0
  %2392 = vmatpush1.bf16.msra.mxu0 0
  %2393 = vmatprep.subr.bf16.mxu0 0
  %2394 = vmatpush1.bf16.msra.mxu0 0
  %2395 = vmatprep.subr.bf16.mxu0 0
  %2396 = vmatpush1.bf16.msra.mxu0 0
  %2397 = vmatprep.subr.bf16.mxu0 0
  %2398 = vmatpush1.bf16.msra.mxu0 0
  %2399 = vmatprep.subr.bf16.mxu0 0
  %2400 = vmatpush1.bf16.msra.mxu0 0
  %2401 = vmatprep.subr.bf16.mxu0 0
  %2402 = vmatpush1.bf16.msra.mxu0 0
  %2403 = vmatprep.mubr.bf16.mxu0 0
  %2404 = vmatmul.mubr.bf16.gmra.mrb[0].mxu0 %v2299
  %v2405 = vpop.f32.mrb[0].mxu0
  %v2406 = vadd.f32 0.0, %v2405
  %v2407 = vpop.f32.mrb[0].mxu0
  %v2408 = vpop.f32.mrb[0].mxu0
  %v2409 = vadd.f32 0.0, %v2408
  %v2410 = vpop.f32.mrb[0].mxu0
  %2411 = vmatprep.mubr.bf16.mxu0 0
  %2412 = vmatmul.mubr.bf16.gmra.mrb[0].mxu0 %v2300
  %v2413 = vpop.f32.mrb[0].mxu0
  %v2414 = vadd.f32 0.0, %v2413
  %v2415 = vpop.f32.mrb[0].mxu0
  %v2416 = vpop.f32.mrb[0].mxu0
  %v2417 = vadd.f32 0.0, %v2416
  %v2418 = vpop.f32.mrb[0].mxu0
  %2419 = vmatprep.mubr.bf16.mxu0 0
  %2420 = vmatmul.mubr.bf16.gmra.mrb[0].mxu0 %v2301
  %v2421 = vpop.f32.mrb[0].mxu0
  %v2422 = vadd.f32 0.0, %v2421
  %v2423 = vpop.f32.mrb[0].mxu0
  %v2424 = vpop.f32.mrb[0].mxu0
  %v2425 = vadd.f32 0.0, %v2424
  %v2426 = vpop.f32.mrb[0].mxu0
  %2427 = vmatprep.mubr.bf16.mxu0 0
  %2428 = vmatmul.mubr.bf16.gmra.mrb[0].mxu0 %v2302
  %v2429 = vpop.f32.mrb[0].mxu0
  %v2430 = vadd.f32 0.0, %v2429
  %v2431 = vpop.f32.mrb[0].mxu0
  %v2432 = vpop.f32.mrb[0].mxu0
  %v2433 = vadd.f32 0.0, %v2432
  %v2434 = vpop.f32.mrb[0].mxu0
  %2435 = vmatprep.mubr.bf16.mxu0 0
  %2436 = vmatmul.mubr.bf16.gmra.mrb[0].mxu0 %v2303
  %v2437 = vpop.f32.mrb[0].mxu0
  %v2438 = vadd.f32 0.0, %v2437
  %v2439 = vpop.f32.mrb[0].mxu0
  %v2440 = vpop.f32.mrb[0].mxu0
  %v2441 = vadd.f32 0.0, %v2440
  %v2442 = vpop.f32.mrb[0].mxu0
  %2443 = vmatprep.mubr.bf16.mxu0 0
  %2444 = vmatmul.mubr.bf16.gmra.mrb[0].mxu0 %v2304
  %v2445 = vpop.f32.mrb[0].mxu0
  %v2446 = vadd.f32 0.0, %v2445
  %v2447 = vpop.f32.mrb[0].mxu0
  %v2448 = vpop.f32.mrb[0].mxu0
  %v2449 = vadd.f32 0.0, %v2448
  %v2450 = vpop.f32.mrb[0].mxu0
  %2451 = vmatprep.mubr.bf16.mxu0 0
  %2452 = vmatmul.mubr.bf16.gmra.mrb[0].mxu0 %v2305
  %v2453 = vpop.f32.mrb[0].mxu0
  %v2454 = vadd.f32 0.0, %v2453
  %v2455 = vpop.f32.mrb[0].mxu0
  %v2456 = vpop.f32.mrb[0].mxu0
  %v2457 = vadd.f32 0.0, %v2456
  %v2458 = vpop.f32.mrb[0].mxu0
  %2459 = vmatprep.mubr.bf16.mxu0 0
  %2460 = vmatmul.mubr.bf16.gmra.mrb[0].mxu0 %v2306
  %v2461 = vpop.f32.mrb[0].mxu0
  %v2462 = vadd.f32 0.0, %v2461
  %v2463 = vpop.f32.mrb[0].mxu0
  %v2464 = vpop.f32.mrb[0].mxu0
  %v2465 = vadd.f32 0.0, %v2464
  %v2466 = vpop.f32.mrb[0].mxu0
  %2467 = vdwg.mxu0
  %v2468 = vadd.f32 %v2406, %v2409
  %v2469 = vadd.f32 %v2468, %v2414
  %v2470 = vadd.f32 %v2469, %v2417
  %v2471 = vadd.f32 %v2470, %v2422
  %v2472 = vadd.f32 %v2471, %v2425
  %v2473 = vadd.f32 %v2472, %v2430
  %v2474 = vadd.f32 %v2473, %v2433
  %v2475 = vadd.f32 %v2474, %v2438
  %v2476 = vadd.f32 %v2475, %v2441
  %v2477 = vadd.f32 %v2476, %v2446
  %v2478 = vadd.f32 %v2477, %v2449
  %v2479 = vadd.f32 %v2478, %v2454
  %v2480 = vadd.f32 %v2479, %v2457
  %v2481 = vadd.f32 %v2480, %v2462
  %v2482 = vadd.f32 %v2481, %v2465
  %v2483 = vrot.slane %v2482, 4
  %v2484 = vadd.f32 %v2482, %v2483
  %v2485 = vrot.slane %v2484, 2
  %v2486 = vadd.f32 %v2484, %v2485
  %v2487 = vrot.slane %v2486, 1
  %v2488 = vadd.f32 %v2486, %v2487
  %v2489 = vmul.f32 %v2488, 0.0078125
  %v2490 = vsub.f32 %v2406, %v2489
  %v2491 = vsub.f32 %v2409, %v2489
  %v2492 = vsub.f32 %v2414, %v2489
  %v2493 = vsub.f32 %v2417, %v2489
  %v2494 = vsub.f32 %v2422, %v2489
  %v2495 = vsub.f32 %v2425, %v2489
  %v2496 = vsub.f32 %v2430, %v2489
  %v2497 = vsub.f32 %v2433, %v2489
  %v2498 = vsub.f32 %v2438, %v2489
  %v2499 = vsub.f32 %v2441, %v2489
  %v2500 = vsub.f32 %v2446, %v2489
  %v2501 = vsub.f32 %v2449, %v2489
  %v2502 = vsub.f32 %v2454, %v2489
  %v2503 = vsub.f32 %v2457, %v2489
  %v2504 = vsub.f32 %v2462, %v2489
  %v2505 = vsub.f32 %v2465, %v2489
  %v2506 = vmul.f32 %v2490, %v2490
  %v2507 = vmul.f32 %v2491, %v2491
  %v2508 = vmul.f32 %v2492, %v2492
  %v2509 = vmul.f32 %v2493, %v2493
  %v2510 = vmul.f32 %v2494, %v2494
  %v2511 = vmul.f32 %v2495, %v2495
  %v2512 = vmul.f32 %v2496, %v2496
  %v2513 = vmul.f32 %v2497, %v2497
  %v2514 = vmul.f32 %v2498, %v2498
  %v2515 = vmul.f32 %v2499, %v2499
  %v2516 = vmul.f32 %v2500, %v2500
  %v2517 = vmul.f32 %v2501, %v2501
  %v2518 = vmul.f32 %v2502, %v2502
  %v2519 = vmul.f32 %v2503, %v2503
  %v2520 = vmul.f32 %v2504, %v2504
  %v2521 = vmul.f32 %v2505, %v2505
  %v2522 = vadd.f32 %v2506, %v2507
  %v2523 = vadd.f32 %v2522, %v2508
  %v2524 = vadd.f32 %v2523, %v2509
  %v2525 = vadd.f32 %v2524, %v2510
  %v2526 = vadd.f32 %v2525, %v2511
  %v2527 = vadd.f32 %v2526, %v2512
  %v2528 = vadd.f32 %v2527, %v2513
  %v2529 = vadd.f32 %v2528, %v2514
  %v2530 = vadd.f32 %v2529, %v2515
  %v2531 = vadd.f32 %v2530, %v2516
  %v2532 = vadd.f32 %v2531, %v2517
  %v2533 = vadd.f32 %v2532, %v2518
  %v2534 = vadd.f32 %v2533, %v2519
  %v2535 = vadd.f32 %v2534, %v2520
  %v2536 = vadd.f32 %v2535, %v2521
  %v2537 = vrot.slane %v2536, 4
  %v2538 = vadd.f32 %v2536, %v2537
  %v2539 = vrot.slane %v2538, 2
  %v2540 = vadd.f32 %v2538, %v2539
  %v2541 = vrot.slane %v2540, 1
  %v2542 = vadd.f32 %v2540, %v2541
  %2543 = vst [vmem:[%s3] sm:$0x1] %v2488
  %2544 = vst [vmem:[%s4] sm:$0x1] %v2542
  %v2545 = vpack.c.bf16 %v2406, %v2406
  %v2546 = vpack.c.bf16 %v2409, %v2409
  %v2547 = vpack.c.bf16 %v2414, %v2414
  %v2548 = vpack.c.bf16 %v2417, %v2417
  %v2549 = vpack.c.bf16 %v2422, %v2422
  %v2550 = vpack.c.bf16 %v2425, %v2425
  %v2551 = vpack.c.bf16 %v2430, %v2430
  %v2552 = vpack.c.bf16 %v2433, %v2433
  %v2553 = vpack.c.bf16 %v2438, %v2438
  %v2554 = vpack.c.bf16 %v2441, %v2441
  %v2555 = vpack.c.bf16 %v2446, %v2446
  %v2556 = vpack.c.bf16 %v2449, %v2449
  %v2557 = vpack.c.bf16 %v2454, %v2454
  %v2558 = vpack.c.bf16 %v2457, %v2457
  %v2559 = vpack.c.bf16 %v2462, %v2462
  %v2560 = vpack.c.bf16 %v2465, %v2465
  %2561 = vst [vmem:[%s2] sm:$0xf] %v2545
  %2562 = vst [vmem:[%s2 + $0x4] sm:$0xf] %v2546
  %2563 = vst [vmem:[%s2 + $0x8] sm:$0xf] %v2547
  %2564 = vst [vmem:[%s2 + $0xc] sm:$0xf] %v2548
  %2565 = vst [vmem:[%s2 + $0x10] sm:$0xf] %v2549
  %2566 = vst [vmem:[%s2 + $0x14] sm:$0xf] %v2550
  %2567 = vst [vmem:[%s2 + $0x18] sm:$0xf] %v2551
  %2568 = vst [vmem:[%s2 + $0x1c] sm:$0xf] %v2552
  %2569 = vst [vmem:[%s2 + $0x20] sm:$0xf] %v2553
  %2570 = vst [vmem:[%s2 + $0x24] sm:$0xf] %v2554
  %2571 = vst [vmem:[%s2 + $0x28] sm:$0xf] %v2555
  %2572 = vst [vmem:[%s2 + $0x2c] sm:$0xf] %v2556
  %2573 = vst [vmem:[%s2 + $0x30] sm:$0xf] %v2557
  %2574 = vst [vmem:[%s2 + $0x34] sm:$0xf] %v2558
  %2575 = vst [vmem:[%s2 + $0x38] sm:$0xf] %v2559
  %2576 = vst [vmem:[%s2 + $0x3c] sm:$0xf] %v2560
  // Predicated region
  $region10: #{down_forward.3} parent=0 // pred_check
    _
  $region11: #{down_forward.3} parent=0 // pred_check_branch
    %2578 = sbr.rel (0) target = $region13
  $region12: #{down_forward.3} parent=0 // pred_region
    _
  $region13: #{down_forward.3} parent=0 // pred_fallthru
    _
  // Predicated region
  $region14: #{down_forward.3} parent=0 // pred_check
    _
  $region15: #{down_forward.3} parent=0 // pred_check_branch
    %2580 = sbr.rel (0) target = $region17
  $region16: #{down_forward.3} parent=0 // pred_region
    _
  $region17: #{down_forward.3} parent=0 // pred_fallthru
    _
  // Predicated region
  $region18: #{down_forward.3} parent=0 // pred_check
    _
  $region19: #{down_forward.3} parent=0 // pred_check_branch
    %2582 = sbr.rel (0) target = $region21
  $region20: #{down_forward.3} parent=0 // pred_region
    _
  $region21: #{down_forward.3} parent=0 // pred_fallthru
    _
  // Predicated region
  $region22: #{down_forward.3} parent=0 // pred_check
    _
  $region23: #{down_forward.3} parent=0 // pred_check_branch
    %2584 = sbr.rel (0) target = $region25
  $region24: #{down_forward.3} parent=0 // pred_region
    _
  $region25: #{down_forward.3} parent=0 // pred_fallthru
    _
  // Predicated region
  $region26: #{down_forward.3} parent=0 // pred_check
    _
  $region27: #{down_forward.3} parent=0 // pred_check_branch
    %2586 = sbr.rel (0) target = $region29
  $region28: #{down_forward.3} parent=0 // pred_region
    _
  $region29: #{down_forward.3} parent=0 // pred_fallthru
    _
  // Predicated region
  $region30: #{down_forward.3} parent=0 // pred_check
    _
  $region31: #{down_forward.3} parent=0 // pred_check_branch
    %2588 = sbr.rel (0) target = $region33
  $region32: #{down_forward.3} parent=0 // pred_region
    _
  $region33: #{down_forward.3} parent=0 // pred_fallthru
    _

// kernel: down_forward.4
$region0: #{down_forward.4}
  #allocation0 [shape = 'u32[]', space=smem, size = 0x4, offset = 0x4, fixed_abs, tag = 'smem constant byte address 0x4 - core index']
  #allocation1 [shape = 'u32[144,128]{1,0:T(1,128)}', space=vmem, size = 0x12000, scoped, tag = 'internal scratch']
  #allocation2 [shape = 'bf16[2,10,10,128]{3,2,1,0:T(8,128)(2,1)}', space=vmem, size = 0x14000, scoped, tag = 'scratch operand']
  #allocation3 [shape = 'bf16[128,1152]{1,0:T(16,128)(2,1)}', space=vmem, size = 0x48000, scoped, tag = 'scratch operand']
  %s0 = inlined_call_operand.vmem [shape: bf16[2,8,8,128], index: 0, kind: input, shape index: {}]
  %s1 = inlined_call_operand.vmem [shape: f32[1,1,128], index: 1, kind: input, shape index: {}]
  %s2 = inlined_call_operand.vmem [shape: f32[1,1,128], index: 2, kind: input, shape index: {}]
  %s3 = inlined_call_operand.vmem [shape: bf16[1152,128], index: 3, kind: input, shape index: {}]
  %s4 = inlined_call_operand.vmem [shape: bf16[2,8,8,128], index: 4, kind: output, shape index: {0}]
  %s5 = inlined_call_operand.vmem [shape: f32[1,1,128], index: 5, kind: output, shape index: {1}]
  %s6 = inlined_call_operand.vmem [shape: f32[1,1,128], index: 6, kind: output, shape index: {2}]
  %7 = xla_tuple %s4, %s5, %s6
  %s8 = sld [smem:[#allocation0]]
  $region42: #{down_forward.4} parent=0
    _
  %s10 = ssub.s32 1, %s8
  %s11 = scalar_select 0, %s10, %s8
  // Predicated region
  $region2: #{down_forward.4} parent=0 // pred_check
    _
  $region3: #{down_forward.4} parent=0 // pred_check_branch
    %13 = sbr.rel (0) target = $region5
  $region4: #{down_forward.4} parent=0 // pred_region
    _
  $region5: #{down_forward.4} parent=0 // pred_fallthru
    _
  // Predicated region
  $region6: #{down_forward.4} parent=0 // pred_check
    _
  $region7: #{down_forward.4} parent=0 // pred_check_branch
    %15 = sbr.rel (0) target = $region9
  $region8: #{down_forward.4} parent=0 // pred_region
    _
  $region9: #{down_forward.4} parent=0 // pred_fallthru
    _
  // Predicated region
  $region10: #{down_forward.4} parent=0 // pred_check
    _
  $region11: #{down_forward.4} parent=0 // pred_check_branch
    %17 = sbr.rel (0) target = $region13
  $region12: #{down_forward.4} parent=0 // pred_region
    _
  $region13: #{down_forward.4} parent=0 // pred_fallthru
    _
  // Predicated region
  $region14: #{down_forward.4} parent=0 // pred_check
    _
  $region15: #{down_forward.4} parent=0 // pred_check_branch
    %19 = sbr.rel (0) target = $region17
  $region16: #{down_forward.4} parent=0 // pred_region
    _
  $region17: #{down_forward.4} parent=0 // pred_fallthru
    _
  %v21 = vld [vmem:[%s0] sm:$0xf]
  %v22 = vld [vmem:[%s0 + $0x4] sm:$0xf]
  %v23 = vld [vmem:[%s0 + $0x8] sm:$0xf]
  %v24 = vld [vmem:[%s0 + $0xc] sm:$0xf]
  %v25 = vld [vmem:[%s0 + $0x10] sm:$0xf]
  %v26 = vld [vmem:[%s0 + $0x14] sm:$0xf]
  %v27 = vld [vmem:[%s0 + $0x18] sm:$0xf]
  %v28 = vld [vmem:[%s0 + $0x1c] sm:$0xf]
  %v29 = vld [vmem:[%s0 + $0x20] sm:$0xf]
  %v30 = vld [vmem:[%s0 + $0x24] sm:$0xf]
  %v31 = vld [vmem:[%s0 + $0x28] sm:$0xf]
  %v32 = vld [vmem:[%s0 + $0x2c] sm:$0xf]
  %v33 = vld [vmem:[%s0 + $0x30] sm:$0xf]
  %v34 = vld [vmem:[%s0 + $0x34] sm:$0xf]
  %v35 = vld [vmem:[%s0 + $0x38] sm:$0xf]
  %v36 = vld [vmem:[%s0 + $0x3c] sm:$0xf]
  %v37 = vunpack.c.l.bf16 %v21
  %v38 = vunpack.c.l.bf16 %v22
  %v39 = vunpack.c.l.bf16 %v23
  %v40 = vunpack.c.l.bf16 %v24
  %v41 = vunpack.c.l.bf16 %v25
  %v42 = vunpack.c.l.bf16 %v26
  %v43 = vunpack.c.l.bf16 %v27
  %v44 = vunpack.c.l.bf16 %v28
  %v45 = vunpack.c.l.bf16 %v29
  %v46 = vunpack.c.l.bf16 %v30
  %v47 = vunpack.c.l.bf16 %v31
  %v48 = vunpack.c.l.bf16 %v32
  %v49 = vunpack.c.l.bf16 %v33
  %v50 = vunpack.c.l.bf16 %v34
  %v51 = vunpack.c.l.bf16 %v35
  %v52 = vunpack.c.l.bf16 %v36
  %v53 = vld [vmem:[%s1] sm:$0x1]
  %v55 = vlaneseq
  %v56 = vshrl.u32 %v55, 7
  %v57 = vsub.s32 0, %v56
  %v58 = vrot.slane %v53, %v57
  %v60 = vmul.f32 %v37, %v58
  %v61 = vmul.f32 %v38, %v58
  %v62 = vmul.f32 %v39, %v58
  %v63 = vmul.f32 %v40, %v58
  %v64 = vmul.f32 %v41, %v58
  %v65 = vmul.f32 %v42, %v58
  %v66 = vmul.f32 %v43, %v58
  %v67 = vmul.f32 %v44, %v58
  %v68 = vmul.f32 %v45, %v58
  %v69 = vmul.f32 %v46, %v58
  %v70 = vmul.f32 %v47, %v58
  %v71 = vmul.f32 %v48, %v58
  %v72 = vmul.f32 %v49, %v58
  %v73 = vmul.f32 %v50, %v58
  %v74 = vmul.f32 %v51, %v58
  %v75 = vmul.f32 %v52, %v58
  %v76 = vld [vmem:[%s2] sm:$0x1]
  %v78 = vlaneseq
  %v79 = vshrl.u32 %v78, 7
  %v80 = vsub.s32 0, %v79
  %v81 = vrot.slane %v76, %v80
  %v83 = vadd.f32 %v60, %v81
  %v84 = vadd.f32 %v61, %v81
  %v85 = vadd.f32 %v62, %v81
  %v86 = vadd.f32 %v63, %v81
  %v87 = vadd.f32 %v64, %v81
  %v88 = vadd.f32 %v65, %v81
  %v89 = vadd.f32 %v66, %v81
  %v90 = vadd.f32 %v67, %v81
  %v91 = vadd.f32 %v68, %v81
  %v92 = vadd.f32 %v69, %v81
  %v93 = vadd.f32 %v70, %v81
  %v94 = vadd.f32 %v71, %v81
  %v95 = vadd.f32 %v72, %v81
  %v96 = vadd.f32 %v73, %v81
  %v97 = vadd.f32 %v74, %v81
  %v98 = vadd.f32 %v75, %v81
  %v99 = vmax.f32 %v83, 0.0
  %v100 = vmax.f32 %v84, 0.0
  %v101 = vmax.f32 %v85, 0.0
  %v102 = vmax.f32 %v86, 0.0
  %v103 = vmax.f32 %v87, 0.0
  %v104 = vmax.f32 %v88, 0.0
  %v105 = vmax.f32 %v89, 0.0
  %v106 = vmax.f32 %v90, 0.0
  %v107 = vmax.f32 %v91, 0.0
  %v108 = vmax.f32 %v92, 0.0
  %v109 = vmax.f32 %v93, 0.0
  %v110 = vmax.f32 %v94, 0.0
  %v111 = vmax.f32 %v95, 0.0
  %v112 = vmax.f32 %v96, 0.0
  %v113 = vmax.f32 %v97, 0.0
  %v114 = vmax.f32 %v98, 0.0
  %115 = vst [vmem:[#allocation2] sm:$0xf] 0
  %116 = vst [vmem:[#allocation2 + $0x4] sm:$0x1] 0
  %117 = vst [vmem:[#allocation2 + $0x50] sm:$0xf] 0
  %118 = vst [vmem:[#allocation2 + $0x54] sm:$0x1] 0
  %s119 = scalar_lea.vmem [#allocation2], 72
  %120 = vst [vmem:[%s119] sm:$0xf] 0
  %121 = vst [vmem:[%s119 + $0x4] sm:$0x1] 0
  %122 = vst [vmem:[%s119 + $0x50] sm:$0xf] 0
  %123 = vst [vmem:[%s119 + $0x54] sm:$0x1] 0
  %vm124 = vcmask 1040384
  %vm125 = vsmask.f32 256
  %vm126 = vmand %vm124, %vm125
  %v127 = vld [vmem:[#allocation2] sm:$0x1]
  %v128 = vsel %vm126, 0, %v127
  %129 = vst [vmem:[#allocation2] sm:$0x1] %v128
  %v130 = vld [vmem:[#allocation2 + $0x8] sm:$0x1]
  %v131 = vsel %vm126, 0, %v130
  %132 = vst [vmem:[#allocation2 + $0x8] sm:$0x1] %v131
  %v133 = vld [vmem:[#allocation2 + $0x10] sm:$0x1]
  %v134 = vsel %vm126, 0, %v133
  %135 = vst [vmem:[#allocation2 + $0x10] sm:$0x1] %v134
  %v136 = vld [vmem:[#allocation2 + $0x18] sm:$0x1]
  %v137 = vsel %vm126, 0, %v136
  %138 = vst [vmem:[#allocation2 + $0x18] sm:$0x1] %v137
  %v139 = vld [vmem:[#allocation2 + $0x20] sm:$0x1]
  %v140 = vsel %vm126, 0, %v139
  %141 = vst [vmem:[#allocation2 + $0x20] sm:$0x1] %v140
  %v142 = vld [vmem:[#allocation2 + $0x28] sm:$0x1]
  %v143 = vsel %vm126, 0, %v142
  %144 = vst [vmem:[#allocation2 + $0x28] sm:$0x1] %v143
  %v145 = vld [vmem:[#allocation2 + $0x30] sm:$0x1]
  %v146 = vsel %vm126, 0, %v145
  %147 = vst [vmem:[#allocation2 + $0x30] sm:$0x1] %v146
  %v148 = vld [vmem:[#allocation2 + $0x38] sm:$0x1]
  %v149 = vsel %vm126, 0, %v148
  %150 = vst [vmem:[#allocation2 + $0x38] sm:$0x1] %v149
  %v151 = vld [vmem:[#allocation2 + $0x40] sm:$0x1]
  %v152 = vsel %vm126, 0, %v151
  %153 = vst [vmem:[#allocation2 + $0x40] sm:$0x1] %v152
  %v154 = vld [vmem:[#allocation2 + $0x48] sm:$0x1]
  %v155 = vsel %vm126, 0, %v154
  %156 = vst [vmem:[#allocation2 + $0x48] sm:$0x1] %v155
  %v157 = vld [vmem:[#allocation2 + $0x50] sm:$0x1]
  %v158 = vsel %vm126, 0, %v157
  %159 = vst [vmem:[#allocation2 + $0x50] sm:$0x1] %v158
  %v160 = vld [vmem:[#allocation2 + $0x58] sm:$0x1]
  %v161 = vsel %vm126, 0, %v160
  %162 = vst [vmem:[#allocation2 + $0x58] sm:$0x1] %v161
  %v163 = vld [vmem:[#allocation2 + $0x60] sm:$0x1]
  %v164 = vsel %vm126, 0, %v163
  %165 = vst [vmem:[#allocation2 + $0x60] sm:$0x1] %v164
  %v166 = vld [vmem:[#allocation2 + $0x68] sm:$0x1]
  %v167 = vsel %vm126, 0, %v166
  %168 = vst [vmem:[#allocation2 + $0x68] sm:$0x1] %v167
  %v169 = vld [vmem:[#allocation2 + $0x70] sm:$0x1]
  %v170 = vsel %vm126, 0, %v169
  %171 = vst [vmem:[#allocation2 + $0x70] sm:$0x1] %v170
  %v172 = vld [vmem:[#allocation2 + $0x78] sm:$0x1]
  %v173 = vsel %vm126, 0, %v172
  %174 = vst [vmem:[#allocation2 + $0x78] sm:$0x1] %v173
  %v175 = vld [vmem:[#allocation2 + $0x80] sm:$0x1]
  %v176 = vsel %vm126, 0, %v175
  %177 = vst [vmem:[#allocation2 + $0x80] sm:$0x1] %v176
  %v178 = vld [vmem:[#allocation2 + $0x88] sm:$0x1]
  %v179 = vsel %vm126, 0, %v178
  %180 = vst [vmem:[#allocation2 + $0x88] sm:$0x1] %v179
  %v181 = vld [vmem:[#allocation2 + $0x90] sm:$0x1]
  %v182 = vsel %vm126, 0, %v181
  %183 = vst [vmem:[#allocation2 + $0x90] sm:$0x1] %v182
  %v184 = vld [vmem:[#allocation2 + $0x98] sm:$0x1]
  %v185 = vsel %vm126, 0, %v184
  %186 = vst [vmem:[#allocation2 + $0x98] sm:$0x1] %v185
  %vm187 = vsmask.f32 7938
  %vm188 = vmand %vm124, %vm187
  %v189 = vld [vmem:[#allocation2 + $0x4] sm:$0x1]
  %v190 = vsel %vm188, 0, %v189
  %191 = vst [vmem:[#allocation2 + $0x4] sm:$0x1] %v190
  %v192 = vld [vmem:[#allocation2 + $0xc] sm:$0x1]
  %v193 = vsel %vm188, 0, %v192
  %194 = vst [vmem:[#allocation2 + $0xc] sm:$0x1] %v193
  %v195 = vld [vmem:[#allocation2 + $0x14] sm:$0x1]
  %v196 = vsel %vm188, 0, %v195
  %197 = vst [vmem:[#allocation2 + $0x14] sm:$0x1] %v196
  %v198 = vld [vmem:[#allocation2 + $0x1c] sm:$0x1]
  %v199 = vsel %vm188, 0, %v198
  %200 = vst [vmem:[#allocation2 + $0x1c] sm:$0x1] %v199
  %v201 = vld [vmem:[#allocation2 + $0x24] sm:$0x1]
  %v202 = vsel %vm188, 0, %v201
  %203 = vst [vmem:[#allocation2 + $0x24] sm:$0x1] %v202
  %v204 = vld [vmem:[#allocation2 + $0x2c] sm:$0x1]
  %v205 = vsel %vm188, 0, %v204
  %206 = vst [vmem:[#allocation2 + $0x2c] sm:$0x1] %v205
  %v207 = vld [vmem:[#allocation2 + $0x34] sm:$0x1]
  %v208 = vsel %vm188, 0, %v207
  %209 = vst [vmem:[#allocation2 + $0x34] sm:$0x1] %v208
  %v210 = vld [vmem:[#allocation2 + $0x3c] sm:$0x1]
  %v211 = vsel %vm188, 0, %v210
  %212 = vst [vmem:[#allocation2 + $0x3c] sm:$0x1] %v211
  %v213 = vld [vmem:[#allocation2 + $0x44] sm:$0x1]
  %v214 = vsel %vm188, 0, %v213
  %215 = vst [vmem:[#allocation2 + $0x44] sm:$0x1] %v214
  %v216 = vld [vmem:[#allocation2 + $0x4c] sm:$0x1]
  %v217 = vsel %vm188, 0, %v216
  %218 = vst [vmem:[#allocation2 + $0x4c] sm:$0x1] %v217
  %v219 = vld [vmem:[#allocation2 + $0x54] sm:$0x1]
  %v220 = vsel %vm188, 0, %v219
  %221 = vst [vmem:[#allocation2 + $0x54] sm:$0x1] %v220
  %v222 = vld [vmem:[#allocation2 + $0x5c] sm:$0x1]
  %v223 = vsel %vm188, 0, %v222
  %224 = vst [vmem:[#allocation2 + $0x5c] sm:$0x1] %v223
  %v225 = vld [vmem:[#allocation2 + $0x64] sm:$0x1]
  %v226 = vsel %vm188, 0, %v225
  %227 = vst [vmem:[#allocation2 + $0x64] sm:$0x1] %v226
  %v228 = vld [vmem:[#allocation2 + $0x6c] sm:$0x1]
  %v229 = vsel %vm188, 0, %v228
  %230 = vst [vmem:[#allocation2 + $0x6c] sm:$0x1] %v229
  %v231 = vld [vmem:[#allocation2 + $0x74] sm:$0x1]
  %v232 = vsel %vm188, 0, %v231
  %233 = vst [vmem:[#allocation2 + $0x74] sm:$0x1] %v232
  %v234 = vld [vmem:[#allocation2 + $0x7c] sm:$0x1]
  %v235 = vsel %vm188, 0, %v234
  %236 = vst [vmem:[#allocation2 + $0x7c] sm:$0x1] %v235
  %v237 = vld [vmem:[#allocation2 + $0x84] sm:$0x1]
  %v238 = vsel %vm188, 0, %v237
  %239 = vst [vmem:[#allocation2 + $0x84] sm:$0x1] %v238
  %v240 = vld [vmem:[#allocation2 + $0x8c] sm:$0x1]
  %v241 = vsel %vm188, 0, %v240
  %242 = vst [vmem:[#allocation2 + $0x8c] sm:$0x1] %v241
  %v243 = vld [vmem:[#allocation2 + $0x94] sm:$0x1]
  %v244 = vsel %vm188, 0, %v243
  %245 = vst [vmem:[#allocation2 + $0x94] sm:$0x1] %v244
  %v246 = vld [vmem:[#allocation2 + $0x9c] sm:$0x1]
  %v247 = vsel %vm188, 0, %v246
  %248 = vst [vmem:[#allocation2 + $0x9c] sm:$0x1] %v247
  %v249 = vpack.c.bf16 %v99, %v99
  %v250 = vpack.c.bf16 %v100, %v100
  %v251 = vpack.c.bf16 %v101, %v101
  %v252 = vpack.c.bf16 %v102, %v102
  %v253 = vpack.c.bf16 %v103, %v103
  %v254 = vpack.c.bf16 %v104, %v104
  %v255 = vpack.c.bf16 %v105, %v105
  %v256 = vpack.c.bf16 %v106, %v106
  %v257 = vpack.c.bf16 %v107, %v107
  %v258 = vpack.c.bf16 %v108, %v108
  %v259 = vpack.c.bf16 %v109, %v109
  %v260 = vpack.c.bf16 %v110, %v110
  %v261 = vpack.c.bf16 %v111, %v111
  %v262 = vpack.c.bf16 %v112, %v112
  %v263 = vpack.c.bf16 %v113, %v113
  %v264 = vpack.c.bf16 %v114, %v114
  %v281 = vunpack.c.l.b16 %v249
  %v282 = vunpack.c.l.b16 %v250
  %v283 = vunpack.c.l.b16 %v251
  %v284 = vunpack.c.l.b16 %v252
  %v285 = vunpack.c.l.b16 %v253
  %v286 = vunpack.c.l.b16 %v254
  %v287 = vunpack.c.l.b16 %v255
  %v288 = vunpack.c.l.b16 %v256
  %v289 = vunpack.c.l.b16 %v257
  %v290 = vunpack.c.l.b16 %v258
  %v291 = vunpack.c.l.b16 %v259
  %v292 = vunpack.c.l.b16 %v260
  %v293 = vunpack.c.l.b16 %v261
  %v294 = vunpack.c.l.b16 %v262
  %v295 = vunpack.c.l.b16 %v263
  %v296 = vunpack.c.l.b16 %v264
  %v297 = vpack.c.b16 %v281, %v281
  %v298 = vpack.c.b16 %v282, %v282
  %v299 = vpack.c.b16 %v283, %v283
  %v300 = vpack.c.b16 %v284, %v284
  %v301 = vpack.c.b16 %v285, %v285
  %v302 = vpack.c.b16 %v286, %v286
  %v303 = vpack.c.b16 %v287, %v287
  %v304 = vpack.c.b16 %v288, %v288
  %v305 = vpack.c.b16 %v289, %v289
  %v306 = vpack.c.b16 %v290, %v290
  %v307 = vpack.c.b16 %v291, %v291
  %v308 = vpack.c.b16 %v292, %v292
  %v309 = vpack.c.b16 %v293, %v293
  %v310 = vpack.c.b16 %v294, %v294
  %v311 = vpack.c.b16 %v295, %v295
  %v312 = vpack.c.b16 %v296, %v296
  %v314 = vshrl.u32 %v297, 16
  %v316 = vrot.slane %v314, 7
  %v317 = vshll.u32 %v297, 16
  %v319 = vor.u32 %v316, %v317
  %v320 = vrot.slane %v316, 4
  %v322 = vshrl.u32 %v298, 16
  %v324 = vrot.slane %v322, 7
  %v325 = vshll.u32 %v298, 16
  %v327 = vor.u32 %v324, %v325
  %v328 = vrot.slane %v324, 4
  %v330 = vshrl.u32 %v299, 16
  %v332 = vrot.slane %v330, 7
  %v333 = vshll.u32 %v299, 16
  %v335 = vor.u32 %v332, %v333
  %v336 = vrot.slane %v332, 4
  %v338 = vshrl.u32 %v300, 16
  %v340 = vrot.slane %v338, 7
  %v341 = vshll.u32 %v300, 16
  %v343 = vor.u32 %v340, %v341
  %v344 = vrot.slane %v340, 4
  %v346 = vshrl.u32 %v301, 16
  %v348 = vrot.slane %v346, 7
  %v349 = vshll.u32 %v301, 16
  %v351 = vor.u32 %v348, %v349
  %v352 = vrot.slane %v348, 4
  %v354 = vshrl.u32 %v302, 16
  %v356 = vrot.slane %v354, 7
  %v357 = vshll.u32 %v302, 16
  %v359 = vor.u32 %v356, %v357
  %v360 = vrot.slane %v356, 4
  %v362 = vshrl.u32 %v303, 16
  %v364 = vrot.slane %v362, 7
  %v365 = vshll.u32 %v303, 16
  %v367 = vor.u32 %v364, %v365
  %v368 = vrot.slane %v364, 4
  %v370 = vshrl.u32 %v304, 16
  %v372 = vrot.slane %v370, 7
  %v373 = vshll.u32 %v304, 16
  %v375 = vor.u32 %v372, %v373
  %v376 = vrot.slane %v372, 4
  %v378 = vshrl.u32 %v305, 16
  %v380 = vrot.slane %v378, 7
  %v381 = vshll.u32 %v305, 16
  %v383 = vor.u32 %v380, %v381
  %v384 = vrot.slane %v380, 4
  %v386 = vshrl.u32 %v306, 16
  %v388 = vrot.slane %v386, 7
  %v389 = vshll.u32 %v306, 16
  %v391 = vor.u32 %v388, %v389
  %v392 = vrot.slane %v388, 4
  %v394 = vshrl.u32 %v307, 16
  %v396 = vrot.slane %v394, 7
  %v397 = vshll.u32 %v307, 16
  %v399 = vor.u32 %v396, %v397
  %v400 = vrot.slane %v396, 4
  %v402 = vshrl.u32 %v308, 16
  %v404 = vrot.slane %v402, 7
  %v405 = vshll.u32 %v308, 16
  %v407 = vor.u32 %v404, %v405
  %v408 = vrot.slane %v404, 4
  %v410 = vshrl.u32 %v309, 16
  %v412 = vrot.slane %v410, 7
  %v413 = vshll.u32 %v309, 16
  %v415 = vor.u32 %v412, %v413
  %v416 = vrot.slane %v412, 4
  %v418 = vshrl.u32 %v310, 16
  %v420 = vrot.slane %v418, 7
  %v421 = vshll.u32 %v310, 16
  %v423 = vor.u32 %v420, %v421
  %v424 = vrot.slane %v420, 4
  %v426 = vshrl.u32 %v311, 16
  %v428 = vrot.slane %v426, 7
  %v429 = vshll.u32 %v311, 16
  %v431 = vor.u32 %v428, %v429
  %v432 = vrot.slane %v428, 4
  %v434 = vshrl.u32 %v312, 16
  %v436 = vrot.slane %v434, 7
  %v437 = vshll.u32 %v312, 16
  %v439 = vor.u32 %v436, %v437
  %v440 = vrot.slane %v436, 4
  %s473 = scalar_lea.vmem [#allocation2], 8
  %vm474 = vcmask 1043456
  %vm475 = vmand %vm474, %vm187
  %v476 = vld [vmem:[%s473] sm:$0xf]
  %v477 = vsel %vm475, %v319, %v476
  %478 = vst [vmem:[%s473] sm:$0xf] %v477
  %v479 = vld [vmem:[%s473 + $0x4] sm:$0x1]
  %v480 = vsel %vm126, %v320, %v479
  %481 = vst [vmem:[%s473 + $0x4] sm:$0x1] %v480
  %v482 = vld [vmem:[%s473 + $0x8] sm:$0xf]
  %v483 = vsel %vm475, %v327, %v482
  %484 = vst [vmem:[%s473 + $0x8] sm:$0xf] %v483
  %v485 = vld [vmem:[%s473 + $0xc] sm:$0x1]
  %v486 = vsel %vm126, %v328, %v485
  %487 = vst [vmem:[%s473 + $0xc] sm:$0x1] %v486
  %v488 = vld [vmem:[%s473 + $0x10] sm:$0xf]
  %v489 = vsel %vm475, %v335, %v488
  %490 = vst [vmem:[%s473 + $0x10] sm:$0xf] %v489
  %v491 = vld [vmem:[%s473 + $0x14] sm:$0x1]
  %v492 = vsel %vm126, %v336, %v491
  %493 = vst [vmem:[%s473 + $0x14] sm:$0x1] %v492
  %v494 = vld [vmem:[%s473 + $0x18] sm:$0xf]
  %v495 = vsel %vm475, %v343, %v494
  %496 = vst [vmem:[%s473 + $0x18] sm:$0xf] %v495
  %v497 = vld [vmem:[%s473 + $0x1c] sm:$0x1]
  %v498 = vsel %vm126, %v344, %v497
  %499 = vst [vmem:[%s473 + $0x1c] sm:$0x1] %v498
  %v500 = vld [vmem:[%s473 + $0x20] sm:$0xf]
  %v501 = vsel %vm475, %v351, %v500
  %502 = vst [vmem:[%s473 + $0x20] sm:$0xf] %v501
  %v503 = vld [vmem:[%s473 + $0x24] sm:$0x1]
  %v504 = vsel %vm126, %v352, %v503
  %505 = vst [vmem:[%s473 + $0x24] sm:$0x1] %v504
  %v506 = vld [vmem:[%s473 + $0x28] sm:$0xf]
  %v507 = vsel %vm475, %v359, %v506
  %508 = vst [vmem:[%s473 + $0x28] sm:$0xf] %v507
  %v509 = vld [vmem:[%s473 + $0x2c] sm:$0x1]
  %v510 = vsel %vm126, %v360, %v509
  %511 = vst [vmem:[%s473 + $0x2c] sm:$0x1] %v510
  %v512 = vld [vmem:[%s473 + $0x30] sm:$0xf]
  %v513 = vsel %vm475, %v367, %v512
  %514 = vst [vmem:[%s473 + $0x30] sm:$0xf] %v513
  %v515 = vld [vmem:[%s473 + $0x34] sm:$0x1]
  %v516 = vsel %vm126, %v368, %v515
  %517 = vst [vmem:[%s473 + $0x34] sm:$0x1] %v516
  %v518 = vld [vmem:[%s473 + $0x38] sm:$0xf]
  %v519 = vsel %vm475, %v375, %v518
  %520 = vst [vmem:[%s473 + $0x38] sm:$0xf] %v519
  %v521 = vld [vmem:[%s473 + $0x3c] sm:$0x1]
  %v522 = vsel %vm126, %v376, %v521
  %523 = vst [vmem:[%s473 + $0x3c] sm:$0x1] %v522
  %v524 = vld [vmem:[%s473 + $0x50] sm:$0xf]
  %v525 = vsel %vm475, %v383, %v524
  %526 = vst [vmem:[%s473 + $0x50] sm:$0xf] %v525
  %v527 = vld [vmem:[%s473 + $0x54] sm:$0x1]
  %v528 = vsel %vm126, %v384, %v527
  %529 = vst [vmem:[%s473 + $0x54] sm:$0x1] %v528
  %v530 = vld [vmem:[%s473 + $0x58] sm:$0xf]
  %v531 = vsel %vm475, %v391, %v530
  %532 = vst [vmem:[%s473 + $0x58] sm:$0xf] %v531
  %v533 = vld [vmem:[%s473 + $0x5c] sm:$0x1]
  %v534 = vsel %vm126, %v392, %v533
  %535 = vst [vmem:[%s473 + $0x5c] sm:$0x1] %v534
  %v536 = vld [vmem:[%s473 + $0x60] sm:$0xf]
  %v537 = vsel %vm475, %v399, %v536
  %538 = vst [vmem:[%s473 + $0x60] sm:$0xf] %v537
  %v539 = vld [vmem:[%s473 + $0x64] sm:$0x1]
  %v540 = vsel %vm126, %v400, %v539
  %541 = vst [vmem:[%s473 + $0x64] sm:$0x1] %v540
  %v542 = vld [vmem:[%s473 + $0x68] sm:$0xf]
  %v543 = vsel %vm475, %v407, %v542
  %544 = vst [vmem:[%s473 + $0x68] sm:$0xf] %v543
  %v545 = vld [vmem:[%s473 + $0x6c] sm:$0x1]
  %v546 = vsel %vm126, %v408, %v545
  %547 = vst [vmem:[%s473 + $0x6c] sm:$0x1] %v546
  %v548 = vld [vmem:[%s473 + $0x70] sm:$0xf]
  %v549 = vsel %vm475, %v415, %v548
  %550 = vst [vmem:[%s473 + $0x70] sm:$0xf] %v549
  %v551 = vld [vmem:[%s473 + $0x74] sm:$0x1]
  %v552 = vsel %vm126, %v416, %v551
  %553 = vst [vmem:[%s473 + $0x74] sm:$0x1] %v552
  %v554 = vld [vmem:[%s473 + $0x78] sm:$0xf]
  %v555 = vsel %vm475, %v423, %v554
  %556 = vst [vmem:[%s473 + $0x78] sm:$0xf] %v555
  %v557 = vld [vmem:[%s473 + $0x7c] sm:$0x1]
  %v558 = vsel %vm126, %v424, %v557
  %559 = vst [vmem:[%s473 + $0x7c] sm:$0x1] %v558
  %v560 = vld [vmem:[%s473 + $0x80] sm:$0xf]
  %v561 = vsel %vm475, %v431, %v560
  %562 = vst [vmem:[%s473 + $0x80] sm:$0xf] %v561
  %v563 = vld [vmem:[%s473 + $0x84] sm:$0x1]
  %v564 = vsel %vm126, %v432, %v563
  %565 = vst [vmem:[%s473 + $0x84] sm:$0x1] %v564
  %v566 = vld [vmem:[%s473 + $0x88] sm:$0xf]
  %v567 = vsel %vm475, %v439, %v566
  %568 = vst [vmem:[%s473 + $0x88] sm:$0xf] %v567
  %v569 = vld [vmem:[%s473 + $0x8c] sm:$0x1]
  %v570 = vsel %vm126, %v440, %v569
  %571 = vst [vmem:[%s473 + $0x8c] sm:$0x1] %v570
  %v572 = vld [vmem:[#allocation2] sm:$0xf]
  %v573 = vld [vmem:[#allocation2 + $0x8] sm:$0xf]
  %v574 = vld [vmem:[#allocation2 + $0x10] sm:$0xf]
  %v575 = vld [vmem:[#allocation2 + $0x18] sm:$0xf]
  %v576 = vld [vmem:[#allocation2 + $0x20] sm:$0xf]
  %v577 = vld [vmem:[#allocation2 + $0x28] sm:$0xf]
  %v578 = vld [vmem:[#allocation2 + $0x30] sm:$0xf]
  %v579 = vld [vmem:[#allocation2 + $0x38] sm:$0xf]
  %v580 = vld [vmem:[#allocation2 + $0x50] sm:$0xf]
  %v581 = vld [vmem:[#allocation2 + $0x58] sm:$0xf]
  %v582 = vld [vmem:[#allocation2 + $0x60] sm:$0xf]
  %v583 = vld [vmem:[#allocation2 + $0x68] sm:$0xf]
  %v584 = vld [vmem:[#allocation2 + $0x70] sm:$0xf]
  %v585 = vld [vmem:[#allocation2 + $0x78] sm:$0xf]
  %v586 = vld [vmem:[#allocation2 + $0x80] sm:$0xf]
  %v587 = vld [vmem:[#allocation2 + $0x88] sm:$0xf]
  %v604 = vunpack.c.l.b16 %v572
  %v605 = vunpack.c.l.b16 %v573
  %v606 = vunpack.c.l.b16 %v574
  %v607 = vunpack.c.l.b16 %v575
  %v608 = vunpack.c.l.b16 %v576
  %v609 = vunpack.c.l.b16 %v577
  %v610 = vunpack.c.l.b16 %v578
  %v611 = vunpack.c.l.b16 %v579
  %v612 = vunpack.c.l.b16 %v580
  %v613 = vunpack.c.l.b16 %v581
  %v614 = vunpack.c.l.b16 %v582
  %v615 = vunpack.c.l.b16 %v583
  %v616 = vunpack.c.l.b16 %v584
  %v617 = vunpack.c.l.b16 %v585
  %v618 = vunpack.c.l.b16 %v586
  %v619 = vunpack.c.l.b16 %v587
  %v620 = vpack.c.b16 %v605, %v604
  %v621 = vpack.c.b16 %v607, %v606
  %v622 = vpack.c.b16 %v609, %v608
  %v623 = vpack.c.b16 %v611, %v610
  %v624 = vpack.c.b16 %v613, %v612
  %v625 = vpack.c.b16 %v615, %v614
  %v626 = vpack.c.b16 %v617, %v616
  %v627 = vpack.c.b16 %v619, %v618
  %636 = vst [vmem:[#allocation3] sm:$0xff] %v620
  %637 = vst [vmem:[#allocation3 + $0x48] sm:$0xff] %v621
  %638 = vst [vmem:[#allocation3 + $0x90] sm:$0xff] %v622
  %639 = vst [vmem:[#allocation3 + $0xd8] sm:$0xff] %v623
  %640 = vst [vmem:[#allocation3 + $0x120] sm:$0xff] %v624
  %641 = vst [vmem:[#allocation3 + $0x168] sm:$0xff] %v625
  %642 = vst [vmem:[#allocation3 + $0x1b0] sm:$0xff] %v626
  %643 = vst [vmem:[#allocation3 + $0x1f8] sm:$0xff] %v627
  %v644 = vld [vmem:[#allocation2] sm:$0xf]
  %v645 = vld [vmem:[#allocation2 + $0x4] sm:$0x1]
  %v646 = vld [vmem:[#allocation2 + $0x8] sm:$0xf]
  %v647 = vld [vmem:[#allocation2 + $0xc] sm:$0x1]
  %v648 = vld [vmem:[#allocation2 + $0x10] sm:$0xf]
  %v649 = vld [vmem:[#allocation2 + $0x14] sm:$0x1]
  %v650 = vld [vmem:[#allocation2 + $0x18] sm:$0xf]
  %v651 = vld [vmem:[#allocation2 + $0x1c] sm:$0x1]
  %v652 = vld [vmem:[#allocation2 + $0x20] sm:$0xf]
  %v653 = vld [vmem:[#allocation2 + $0x24] sm:$0x1]
  %v654 = vld [vmem:[#allocation2 + $0x28] sm:$0xf]
  %v655 = vld [vmem:[#allocation2 + $0x2c] sm:$0x1]
  %v656 = vld [vmem:[#allocation2 + $0x30] sm:$0xf]
  %v657 = vld [vmem:[#allocation2 + $0x34] sm:$0x1]
  %v658 = vld [vmem:[#allocation2 + $0x38] sm:$0xf]
  %v659 = vld [vmem:[#allocation2 + $0x3c] sm:$0x1]
  %v660 = vld [vmem:[#allocation2 + $0x50] sm:$0xf]
  %v661 = vld [vmem:[#allocation2 + $0x54] sm:$0x1]
  %v662 = vld [vmem:[#allocation2 + $0x58] sm:$0xf]
  %v663 = vld [vmem:[#allocation2 + $0x5c] sm:$0x1]
  %v664 = vld [vmem:[#allocation2 + $0x60] sm:$0xf]
  %v665 = vld [vmem:[#allocation2 + $0x64] sm:$0x1]
  %v666 = vld [vmem:[#allocation2 + $0x68] sm:$0xf]
  %v667 = vld [vmem:[#allocation2 + $0x6c] sm:$0x1]
  %v668 = vld [vmem:[#allocation2 + $0x70] sm:$0xf]
  %v669 = vld [vmem:[#allocation2 + $0x74] sm:$0x1]
  %v670 = vld [vmem:[#allocation2 + $0x78] sm:$0xf]
  %v671 = vld [vmem:[#allocation2 + $0x7c] sm:$0x1]
  %v672 = vld [vmem:[#allocation2 + $0x80] sm:$0xf]
  %v673 = vld [vmem:[#allocation2 + $0x84] sm:$0x1]
  %v674 = vld [vmem:[#allocation2 + $0x88] sm:$0xf]
  %v675 = vld [vmem:[#allocation2 + $0x8c] sm:$0x1]
  %vm676 = vsmask.f32 3328
  %vm677 = vsmask.f32 7440
  %vm678 = vmor %vm676, %vm677
  %v680 = vshrl.u32 %v644, 16
  %v682 = vrot.slane %v680, 4
  %v683 = vshll.u32 %v644, 16
  %v685 = vrot.slane %v683, 5
  %v686 = vor.u32 %v682, %v685
  %v687 = vrot.slane %v686, 4
  %v689 = vshll.u32 %v645, 16
  %v691 = vrot.slane %v689, 5
  %v692 = vsel %vm678, %v687, %v691
  %v694 = vshrl.u32 %v646, 16
  %v696 = vrot.slane %v694, 4
  %v697 = vshll.u32 %v646, 16
  %v699 = vrot.slane %v697, 5
  %v700 = vor.u32 %v696, %v699
  %v701 = vrot.slane %v700, 4
  %v703 = vshll.u32 %v647, 16
  %v705 = vrot.slane %v703, 5
  %v706 = vsel %vm678, %v701, %v705
  %v708 = vshrl.u32 %v648, 16
  %v710 = vrot.slane %v708, 4
  %v711 = vshll.u32 %v648, 16
  %v713 = vrot.slane %v711, 5
  %v714 = vor.u32 %v710, %v713
  %v715 = vrot.slane %v714, 4
  %v717 = vshll.u32 %v649, 16
  %v719 = vrot.slane %v717, 5
  %v720 = vsel %vm678, %v715, %v719
  %v722 = vshrl.u32 %v650, 16
  %v724 = vrot.slane %v722, 4
  %v725 = vshll.u32 %v650, 16
  %v727 = vrot.slane %v725, 5
  %v728 = vor.u32 %v724, %v727
  %v729 = vrot.slane %v728, 4
  %v731 = vshll.u32 %v651, 16
  %v733 = vrot.slane %v731, 5
  %v734 = vsel %vm678, %v729, %v733
  %v736 = vshrl.u32 %v652, 16
  %v738 = vrot.slane %v736, 4
  %v739 = vshll.u32 %v652, 16
  %v741 = vrot.slane %v739, 5
  %v742 = vor.u32 %v738, %v741
  %v743 = vrot.slane %v742, 4
  %v745 = vshll.u32 %v653, 16
  %v747 = vrot.slane %v745, 5
  %v748 = vsel %vm678, %v743, %v747
  %v750 = vshrl.u32 %v654, 16
  %v752 = vrot.slane %v750, 4
  %v753 = vshll.u32 %v654, 16
  %v755 = vrot.slane %v753, 5
  %v756 = vor.u32 %v752, %v755
  %v757 = vrot.slane %v756, 4
  %v759 = vshll.u32 %v655, 16
  %v761 = vrot.slane %v759, 5
  %v762 = vsel %vm678, %v757, %v761
  %v764 = vshrl.u32 %v656, 16
  %v766 = vrot.slane %v764, 4
  %v767 = vshll.u32 %v656, 16
  %v769 = vrot.slane %v767, 5
  %v770 = vor.u32 %v766, %v769
  %v771 = vrot.slane %v770, 4
  %v773 = vshll.u32 %v657, 16
  %v775 = vrot.slane %v773, 5
  %v776 = vsel %vm678, %v771, %v775
  %v778 = vshrl.u32 %v658, 16
  %v780 = vrot.slane %v778, 4
  %v781 = vshll.u32 %v658, 16
  %v783 = vrot.slane %v781, 5
  %v784 = vor.u32 %v780, %v783
  %v785 = vrot.slane %v784, 4
  %v787 = vshll.u32 %v659, 16
  %v789 = vrot.slane %v787, 5
  %v790 = vsel %vm678, %v785, %v789
  %v792 = vshrl.u32 %v660, 16
  %v794 = vrot.slane %v792, 4
  %v795 = vshll.u32 %v660, 16
  %v797 = vrot.slane %v795, 5
  %v798 = vor.u32 %v794, %v797
  %v799 = vrot.slane %v798, 4
  %v801 = vshll.u32 %v661, 16
  %v803 = vrot.slane %v801, 5
  %v804 = vsel %vm678, %v799, %v803
  %v806 = vshrl.u32 %v662, 16
  %v808 = vrot.slane %v806, 4
  %v809 = vshll.u32 %v662, 16
  %v811 = vrot.slane %v809, 5
  %v812 = vor.u32 %v808, %v811
  %v813 = vrot.slane %v812, 4
  %v815 = vshll.u32 %v663, 16
  %v817 = vrot.slane %v815, 5
  %v818 = vsel %vm678, %v813, %v817
  %v820 = vshrl.u32 %v664, 16
  %v822 = vrot.slane %v820, 4
  %v823 = vshll.u32 %v664, 16
  %v825 = vrot.slane %v823, 5
  %v826 = vor.u32 %v822, %v825
  %v827 = vrot.slane %v826, 4
  %v829 = vshll.u32 %v665, 16
  %v831 = vrot.slane %v829, 5
  %v832 = vsel %vm678, %v827, %v831
  %v834 = vshrl.u32 %v666, 16
  %v836 = vrot.slane %v834, 4
  %v837 = vshll.u32 %v666, 16
  %v839 = vrot.slane %v837, 5
  %v840 = vor.u32 %v836, %v839
  %v841 = vrot.slane %v840, 4
  %v843 = vshll.u32 %v667, 16
  %v845 = vrot.slane %v843, 5
  %v846 = vsel %vm678, %v841, %v845
  %v848 = vshrl.u32 %v668, 16
  %v850 = vrot.slane %v848, 4
  %v851 = vshll.u32 %v668, 16
  %v853 = vrot.slane %v851, 5
  %v854 = vor.u32 %v850, %v853
  %v855 = vrot.slane %v854, 4
  %v857 = vshll.u32 %v669, 16
  %v859 = vrot.slane %v857, 5
  %v860 = vsel %vm678, %v855, %v859
  %v862 = vshrl.u32 %v670, 16
  %v864 = vrot.slane %v862, 4
  %v865 = vshll.u32 %v670, 16
  %v867 = vrot.slane %v865, 5
  %v868 = vor.u32 %v864, %v867
  %v869 = vrot.slane %v868, 4
  %v871 = vshll.u32 %v671, 16
  %v873 = vrot.slane %v871, 5
  %v874 = vsel %vm678, %v869, %v873
  %v876 = vshrl.u32 %v672, 16
  %v878 = vrot.slane %v876, 4
  %v879 = vshll.u32 %v672, 16
  %v881 = vrot.slane %v879, 5
  %v882 = vor.u32 %v878, %v881
  %v883 = vrot.slane %v882, 4
  %v885 = vshll.u32 %v673, 16
  %v887 = vrot.slane %v885, 5
  %v888 = vsel %vm678, %v883, %v887
  %v890 = vshrl.u32 %v674, 16
  %v892 = vrot.slane %v890, 4
  %v893 = vshll.u32 %v674, 16
  %v895 = vrot.slane %v893, 5
  %v896 = vor.u32 %v892, %v895
  %v897 = vrot.slane %v896, 4
  %v899 = vshll.u32 %v675, 16
  %v901 = vrot.slane %v899, 5
  %v902 = vsel %vm678, %v897, %v901
  %v903 = vunpack.c.l.b16 %v692
  %v904 = vunpack.c.l.b16 %v706
  %v905 = vunpack.c.l.b16 %v720
  %v906 = vunpack.c.l.b16 %v734
  %v907 = vunpack.c.l.b16 %v748
  %v908 = vunpack.c.l.b16 %v762
  %v909 = vunpack.c.l.b16 %v776
  %v910 = vunpack.c.l.b16 %v790
  %v911 = vunpack.c.l.b16 %v804
  %v912 = vunpack.c.l.b16 %v818
  %v913 = vunpack.c.l.b16 %v832
  %v914 = vunpack.c.l.b16 %v846
  %v915 = vunpack.c.l.b16 %v860
  %v916 = vunpack.c.l.b16 %v874
  %v917 = vunpack.c.l.b16 %v888
  %v918 = vunpack.c.l.b16 %v902
  %v919 = vpack.c.b16 %v904, %v903
  %v920 = vpack.c.b16 %v906, %v905
  %v921 = vpack.c.b16 %v908, %v907
  %v922 = vpack.c.b16 %v910, %v909
  %v923 = vpack.c.b16 %v912, %v911
  %v924 = vpack.c.b16 %v914, %v913
  %v925 = vpack.c.b16 %v916, %v915
  %v926 = vpack.c.b16 %v918, %v917
  %935 = vst [vmem:[#allocation3 + $0x8] sm:$0xff] %v919
  %936 = vst [vmem:[#allocation3 + $0x50] sm:$0xff] %v920
  %937 = vst [vmem:[#allocation3 + $0x98] sm:$0xff] %v921
  %938 = vst [vmem:[#allocation3 + $0xe0] sm:$0xff] %v922
  %939 = vst [vmem:[#allocation3 + $0x128] sm:$0xff] %v923
  %940 = vst [vmem:[#allocation3 + $0x170] sm:$0xff] %v924
  %941 = vst [vmem:[#allocation3 + $0x1b8] sm:$0xff] %v925
  %942 = vst [vmem:[#allocation3 + $0x200] sm:$0xff] %v926
  %v943 = vld [vmem:[#allocation2] sm:$0xe]
  %v944 = vld [vmem:[#allocation2 + $0x4] sm:$0x1]
  %v945 = vld [vmem:[#allocation2 + $0x8] sm:$0xe]
  %v946 = vld [vmem:[#allocation2 + $0xc] sm:$0x1]
  %v947 = vld [vmem:[#allocation2 + $0x10] sm:$0xe]
  %v948 = vld [vmem:[#allocation2 + $0x14] sm:$0x1]
  %v949 = vld [vmem:[#allocation2 + $0x18] sm:$0xe]
  %v950 = vld [vmem:[#allocation2 + $0x1c] sm:$0x1]
  %v951 = vld [vmem:[#allocation2 + $0x20] sm:$0xe]
  %v952 = vld [vmem:[#allocation2 + $0x24] sm:$0x1]
  %v953 = vld [vmem:[#allocation2 + $0x28] sm:$0xe]
  %v954 = vld [vmem:[#allocation2 + $0x2c] sm:$0x1]
  %v955 = vld [vmem:[#allocation2 + $0x30] sm:$0xe]
  %v956 = vld [vmem:[#allocation2 + $0x34] sm:$0x1]
  %v957 = vld [vmem:[#allocation2 + $0x38] sm:$0xe]
  %v958 = vld [vmem:[#allocation2 + $0x3c] sm:$0x1]
  %v959 = vld [vmem:[#allocation2 + $0x50] sm:$0xe]
  %v960 = vld [vmem:[#allocation2 + $0x54] sm:$0x1]
  %v961 = vld [vmem:[#allocation2 + $0x58] sm:$0xe]
  %v962 = vld [vmem:[#allocation2 + $0x5c] sm:$0x1]
  %v963 = vld [vmem:[#allocation2 + $0x60] sm:$0xe]
  %v964 = vld [vmem:[#allocation2 + $0x64] sm:$0x1]
  %v965 = vld [vmem:[#allocation2 + $0x68] sm:$0xe]
  %v966 = vld [vmem:[#allocation2 + $0x6c] sm:$0x1]
  %v967 = vld [vmem:[#allocation2 + $0x70] sm:$0xe]
  %v968 = vld [vmem:[#allocation2 + $0x74] sm:$0x1]
  %v969 = vld [vmem:[#allocation2 + $0x78] sm:$0xe]
  %v970 = vld [vmem:[#allocation2 + $0x7c] sm:$0x1]
  %v971 = vld [vmem:[#allocation2 + $0x80] sm:$0xe]
  %v972 = vld [vmem:[#allocation2 + $0x84] sm:$0x1]
  %v973 = vld [vmem:[#allocation2 + $0x88] sm:$0xe]
  %v974 = vld [vmem:[#allocation2 + $0x8c] sm:$0x1]
  %vm1007 = vcmask 1042432
  %vm1008 = vcmask 1046532
  %vm1009 = vmor %vm1007, %vm1008
  %v1010 = vrot.slane %v943, 5
  %v1011 = vrot.slane %v1010, 4
  %v1012 = vrot.slane %v944, 5
  %v1013 = vsel %vm1009, %v1011, %v1012
  %v1014 = vrot.slane %v945, 5
  %v1015 = vrot.slane %v1014, 4
  %v1016 = vrot.slane %v946, 5
  %v1017 = vsel %vm1009, %v1015, %v1016
  %v1018 = vrot.slane %v947, 5
  %v1019 = vrot.slane %v1018, 4
  %v1020 = vrot.slane %v948, 5
  %v1021 = vsel %vm1009, %v1019, %v1020
  %v1022 = vrot.slane %v949, 5
  %v1023 = vrot.slane %v1022, 4
  %v1024 = vrot.slane %v950, 5
  %v1025 = vsel %vm1009, %v1023, %v1024
  %v1026 = vrot.slane %v951, 5
  %v1027 = vrot.slane %v1026, 4
  %v1028 = vrot.slane %v952, 5
  %v1029 = vsel %vm1009, %v1027, %v1028
  %v1030 = vrot.slane %v953, 5
  %v1031 = vrot.slane %v1030, 4
  %v1032 = vrot.slane %v954, 5
  %v1033 = vsel %vm1009, %v1031, %v1032
  %v1034 = vrot.slane %v955, 5
  %v1035 = vrot.slane %v1034, 4
  %v1036 = vrot.slane %v956, 5
  %v1037 = vsel %vm1009, %v1035, %v1036
  %v1038 = vrot.slane %v957, 5
  %v1039 = vrot.slane %v1038, 4
  %v1040 = vrot.slane %v958, 5
  %v1041 = vsel %vm1009, %v1039, %v1040
  %v1042 = vrot.slane %v959, 5
  %v1043 = vrot.slane %v1042, 4
  %v1044 = vrot.slane %v960, 5
  %v1045 = vsel %vm1009, %v1043, %v1044
  %v1046 = vrot.slane %v961, 5
  %v1047 = vrot.slane %v1046, 4
  %v1048 = vrot.slane %v962, 5
  %v1049 = vsel %vm1009, %v1047, %v1048
  %v1050 = vrot.slane %v963, 5
  %v1051 = vrot.slane %v1050, 4
  %v1052 = vrot.slane %v964, 5
  %v1053 = vsel %vm1009, %v1051, %v1052
  %v1054 = vrot.slane %v965, 5
  %v1055 = vrot.slane %v1054, 4
  %v1056 = vrot.slane %v966, 5
  %v1057 = vsel %vm1009, %v1055, %v1056
  %v1058 = vrot.slane %v967, 5
  %v1059 = vrot.slane %v1058, 4
  %v1060 = vrot.slane %v968, 5
  %v1061 = vsel %vm1009, %v1059, %v1060
  %v1062 = vrot.slane %v969, 5
  %v1063 = vrot.slane %v1062, 4
  %v1064 = vrot.slane %v970, 5
  %v1065 = vsel %vm1009, %v1063, %v1064
  %v1066 = vrot.slane %v971, 5
  %v1067 = vrot.slane %v1066, 4
  %v1068 = vrot.slane %v972, 5
  %v1069 = vsel %vm1009, %v1067, %v1068
  %v1070 = vrot.slane %v973, 5
  %v1071 = vrot.slane %v1070, 4
  %v1072 = vrot.slane %v974, 5
  %v1073 = vsel %vm1009, %v1071, %v1072
  %v1074 = vunpack.c.l.b16 %v1013
  %v1075 = vunpack.c.l.b16 %v1017
  %v1076 = vunpack.c.l.b16 %v1021
  %v1077 = vunpack.c.l.b16 %v1025
  %v1078 = vunpack.c.l.b16 %v1029
  %v1079 = vunpack.c.l.b16 %v1033
  %v1080 = vunpack.c.l.b16 %v1037
  %v1081 = vunpack.c.l.b16 %v1041
  %v1082 = vunpack.c.l.b16 %v1045
  %v1083 = vunpack.c.l.b16 %v1049
  %v1084 = vunpack.c.l.b16 %v1053
  %v1085 = vunpack.c.l.b16 %v1057
  %v1086 = vunpack.c.l.b16 %v1061
  %v1087 = vunpack.c.l.b16 %v1065
  %v1088 = vunpack.c.l.b16 %v1069
  %v1089 = vunpack.c.l.b16 %v1073
  %v1090 = vpack.c.b16 %v1075, %v1074
  %v1091 = vpack.c.b16 %v1077, %v1076
  %v1092 = vpack.c.b16 %v1079, %v1078
  %v1093 = vpack.c.b16 %v1081, %v1080
  %v1094 = vpack.c.b16 %v1083, %v1082
  %v1095 = vpack.c.b16 %v1085, %v1084
  %v1096 = vpack.c.b16 %v1087, %v1086
  %v1097 = vpack.c.b16 %v1089, %v1088
  %1106 = vst [vmem:[#allocation3 + $0x10] sm:$0xff] %v1090
  %1107 = vst [vmem:[#allocation3 + $0x58] sm:$0xff] %v1091
  %1108 = vst [vmem:[#allocation3 + $0xa0] sm:$0xff] %v1092
  %1109 = vst [vmem:[#allocation3 + $0xe8] sm:$0xff] %v1093
  %1110 = vst [vmem:[#allocation3 + $0x130] sm:$0xff] %v1094
  %1111 = vst [vmem:[#allocation3 + $0x178] sm:$0xff] %v1095
  %1112 = vst [vmem:[#allocation3 + $0x1c0] sm:$0xff] %v1096
  %1113 = vst [vmem:[#allocation3 + $0x208] sm:$0xff] %v1097
  %v1114 = vld [vmem:[%s473] sm:$0xf]
  %v1115 = vld [vmem:[%s473 + $0x8] sm:$0xf]
  %v1116 = vld [vmem:[%s473 + $0x10] sm:$0xf]
  %v1117 = vld [vmem:[%s473 + $0x18] sm:$0xf]
  %v1118 = vld [vmem:[%s473 + $0x20] sm:$0xf]
  %v1119 = vld [vmem:[%s473 + $0x28] sm:$0xf]
  %v1120 = vld [vmem:[%s473 + $0x30] sm:$0xf]
  %v1121 = vld [vmem:[%s473 + $0x38] sm:$0xf]
  %v1122 = vld [vmem:[%s473 + $0x50] sm:$0xf]
  %v1123 = vld [vmem:[%s473 + $0x58] sm:$0xf]
  %v1124 = vld [vmem:[%s473 + $0x60] sm:$0xf]
  %v1125 = vld [vmem:[%s473 + $0x68] sm:$0xf]
  %v1126 = vld [vmem:[%s473 + $0x70] sm:$0xf]
  %v1127 = vld [vmem:[%s473 + $0x78] sm:$0xf]
  %v1128 = vld [vmem:[%s473 + $0x80] sm:$0xf]
  %v1129 = vld [vmem:[%s473 + $0x88] sm:$0xf]
  %v1146 = vunpack.c.l.b16 %v1114
  %v1147 = vunpack.c.l.b16 %v1115
  %v1148 = vunpack.c.l.b16 %v1116
  %v1149 = vunpack.c.l.b16 %v1117
  %v1150 = vunpack.c.l.b16 %v1118
  %v1151 = vunpack.c.l.b16 %v1119
  %v1152 = vunpack.c.l.b16 %v1120
  %v1153 = vunpack.c.l.b16 %v1121
  %v1154 = vunpack.c.l.b16 %v1122
  %v1155 = vunpack.c.l.b16 %v1123
  %v1156 = vunpack.c.l.b16 %v1124
  %v1157 = vunpack.c.l.b16 %v1125
  %v1158 = vunpack.c.l.b16 %v1126
  %v1159 = vunpack.c.l.b16 %v1127
  %v1160 = vunpack.c.l.b16 %v1128
  %v1161 = vunpack.c.l.b16 %v1129
  %v1162 = vpack.c.b16 %v1147, %v1146
  %v1163 = vpack.c.b16 %v1149, %v1148
  %v1164 = vpack.c.b16 %v1151, %v1150
  %v1165 = vpack.c.b16 %v1153, %v1152
  %v1166 = vpack.c.b16 %v1155, %v1154
  %v1167 = vpack.c.b16 %v1157, %v1156
  %v1168 = vpack.c.b16 %v1159, %v1158
  %v1169 = vpack.c.b16 %v1161, %v1160
  %1178 = vst [vmem:[#allocation3 + $0x18] sm:$0xff] %v1162
  %1179 = vst [vmem:[#allocation3 + $0x60] sm:$0xff] %v1163
  %1180 = vst [vmem:[#allocation3 + $0xa8] sm:$0xff] %v1164
  %1181 = vst [vmem:[#allocation3 + $0xf0] sm:$0xff] %v1165
  %1182 = vst [vmem:[#allocation3 + $0x138] sm:$0xff] %v1166
  %1183 = vst [vmem:[#allocation3 + $0x180] sm:$0xff] %v1167
  %1184 = vst [vmem:[#allocation3 + $0x1c8] sm:$0xff] %v1168
  %1185 = vst [vmem:[#allocation3 + $0x210] sm:$0xff] %v1169
  %v1186 = vld [vmem:[%s473] sm:$0xf]
  %v1187 = vld [vmem:[%s473 + $0x4] sm:$0x1]
  %v1188 = vld [vmem:[%s473 + $0x8] sm:$0xf]
  %v1189 = vld [vmem:[%s473 + $0xc] sm:$0x1]
  %v1190 = vld [vmem:[%s473 + $0x10] sm:$0xf]
  %v1191 = vld [vmem:[%s473 + $0x14] sm:$0x1]
  %v1192 = vld [vmem:[%s473 + $0x18] sm:$0xf]
  %v1193 = vld [vmem:[%s473 + $0x1c] sm:$0x1]
  %v1194 = vld [vmem:[%s473 + $0x20] sm:$0xf]
  %v1195 = vld [vmem:[%s473 + $0x24] sm:$0x1]
  %v1196 = vld [vmem:[%s473 + $0x28] sm:$0xf]
  %v1197 = vld [vmem:[%s473 + $0x2c] sm:$0x1]
  %v1198 = vld [vmem:[%s473 + $0x30] sm:$0xf]
  %v1199 = vld [vmem:[%s473 + $0x34] sm:$0x1]
  %v1200 = vld [vmem:[%s473 + $0x38] sm:$0xf]
  %v1201 = vld [vmem:[%s473 + $0x3c] sm:$0x1]
  %v1202 = vld [vmem:[%s473 + $0x50] sm:$0xf]
  %v1203 = vld [vmem:[%s473 + $0x54] sm:$0x1]
  %v1204 = vld [vmem:[%s473 + $0x58] sm:$0xf]
  %v1205 = vld [vmem:[%s473 + $0x5c] sm:$0x1]
  %v1206 = vld [vmem:[%s473 + $0x60] sm:$0xf]
  %v1207 = vld [vmem:[%s473 + $0x64] sm:$0x1]
  %v1208 = vld [vmem:[%s473 + $0x68] sm:$0xf]
  %v1209 = vld [vmem:[%s473 + $0x6c] sm:$0x1]
  %v1210 = vld [vmem:[%s473 + $0x70] sm:$0xf]
  %v1211 = vld [vmem:[%s473 + $0x74] sm:$0x1]
  %v1212 = vld [vmem:[%s473 + $0x78] sm:$0xf]
  %v1213 = vld [vmem:[%s473 + $0x7c] sm:$0x1]
  %v1214 = vld [vmem:[%s473 + $0x80] sm:$0xf]
  %v1215 = vld [vmem:[%s473 + $0x84] sm:$0x1]
  %v1216 = vld [vmem:[%s473 + $0x88] sm:$0xf]
  %v1217 = vld [vmem:[%s473 + $0x8c] sm:$0x1]
  %v1219 = vshrl.u32 %v1186, 16
  %v1221 = vrot.slane %v1219, 4
  %v1222 = vshll.u32 %v1186, 16
  %v1224 = vrot.slane %v1222, 5
  %v1225 = vor.u32 %v1221, %v1224
  %v1226 = vrot.slane %v1225, 4
  %v1228 = vshll.u32 %v1187, 16
  %v1230 = vrot.slane %v1228, 5
  %v1231 = vsel %vm678, %v1226, %v1230
  %v1233 = vshrl.u32 %v1188, 16
  %v1235 = vrot.slane %v1233, 4
  %v1236 = vshll.u32 %v1188, 16
  %v1238 = vrot.slane %v1236, 5
  %v1239 = vor.u32 %v1235, %v1238
  %v1240 = vrot.slane %v1239, 4
  %v1242 = vshll.u32 %v1189, 16
  %v1244 = vrot.slane %v1242, 5
  %v1245 = vsel %vm678, %v1240, %v1244
  %v1247 = vshrl.u32 %v1190, 16
  %v1249 = vrot.slane %v1247, 4
  %v1250 = vshll.u32 %v1190, 16
  %v1252 = vrot.slane %v1250, 5
  %v1253 = vor.u32 %v1249, %v1252
  %v1254 = vrot.slane %v1253, 4
  %v1256 = vshll.u32 %v1191, 16
  %v1258 = vrot.slane %v1256, 5
  %v1259 = vsel %vm678, %v1254, %v1258
  %v1261 = vshrl.u32 %v1192, 16
  %v1263 = vrot.slane %v1261, 4
  %v1264 = vshll.u32 %v1192, 16
  %v1266 = vrot.slane %v1264, 5
  %v1267 = vor.u32 %v1263, %v1266
  %v1268 = vrot.slane %v1267, 4
  %v1270 = vshll.u32 %v1193, 16
  %v1272 = vrot.slane %v1270, 5
  %v1273 = vsel %vm678, %v1268, %v1272
  %v1275 = vshrl.u32 %v1194, 16
  %v1277 = vrot.slane %v1275, 4
  %v1278 = vshll.u32 %v1194, 16
  %v1280 = vrot.slane %v1278, 5
  %v1281 = vor.u32 %v1277, %v1280
  %v1282 = vrot.slane %v1281, 4
  %v1284 = vshll.u32 %v1195, 16
  %v1286 = vrot.slane %v1284, 5
  %v1287 = vsel %vm678, %v1282, %v1286
  %v1289 = vshrl.u32 %v1196, 16
  %v1291 = vrot.slane %v1289, 4
  %v1292 = vshll.u32 %v1196, 16
  %v1294 = vrot.slane %v1292, 5
  %v1295 = vor.u32 %v1291, %v1294
  %v1296 = vrot.slane %v1295, 4
  %v1298 = vshll.u32 %v1197, 16
  %v1300 = vrot.slane %v1298, 5
  %v1301 = vsel %vm678, %v1296, %v1300
  %v1303 = vshrl.u32 %v1198, 16
  %v1305 = vrot.slane %v1303, 4
  %v1306 = vshll.u32 %v1198, 16
  %v1308 = vrot.slane %v1306, 5
  %v1309 = vor.u32 %v1305, %v1308
  %v1310 = vrot.slane %v1309, 4
  %v1312 = vshll.u32 %v1199, 16
  %v1314 = vrot.slane %v1312, 5
  %v1315 = vsel %vm678, %v1310, %v1314
  %v1317 = vshrl.u32 %v1200, 16
  %v1319 = vrot.slane %v1317, 4
  %v1320 = vshll.u32 %v1200, 16
  %v1322 = vrot.slane %v1320, 5
  %v1323 = vor.u32 %v1319, %v1322
  %v1324 = vrot.slane %v1323, 4
  %v1326 = vshll.u32 %v1201, 16
  %v1328 = vrot.slane %v1326, 5
  %v1329 = vsel %vm678, %v1324, %v1328
  %v1331 = vshrl.u32 %v1202, 16
  %v1333 = vrot.slane %v1331, 4
  %v1334 = vshll.u32 %v1202, 16
  %v1336 = vrot.slane %v1334, 5
  %v1337 = vor.u32 %v1333, %v1336
  %v1338 = vrot.slane %v1337, 4
  %v1340 = vshll.u32 %v1203, 16
  %v1342 = vrot.slane %v1340, 5
  %v1343 = vsel %vm678, %v1338, %v1342
  %v1345 = vshrl.u32 %v1204, 16
  %v1347 = vrot.slane %v1345, 4
  %v1348 = vshll.u32 %v1204, 16
  %v1350 = vrot.slane %v1348, 5
  %v1351 = vor.u32 %v1347, %v1350
  %v1352 = vrot.slane %v1351, 4
  %v1354 = vshll.u32 %v1205, 16
  %v1356 = vrot.slane %v1354, 5
  %v1357 = vsel %vm678, %v1352, %v1356
  %v1359 = vshrl.u32 %v1206, 16
  %v1361 = vrot.slane %v1359, 4
  %v1362 = vshll.u32 %v1206, 16
  %v1364 = vrot.slane %v1362, 5
  %v1365 = vor.u32 %v1361, %v1364
  %v1366 = vrot.slane %v1365, 4
  %v1368 = vshll.u32 %v1207, 16
  %v1370 = vrot.slane %v1368, 5
  %v1371 = vsel %vm678, %v1366, %v1370
  %v1373 = vshrl.u32 %v1208, 16
  %v1375 = vrot.slane %v1373, 4
  %v1376 = vshll.u32 %v1208, 16
  %v1378 = vrot.slane %v1376, 5
  %v1379 = vor.u32 %v1375, %v1378
  %v1380 = vrot.slane %v1379, 4
  %v1382 = vshll.u32 %v1209, 16
  %v1384 = vrot.slane %v1382, 5
  %v1385 = vsel %vm678, %v1380, %v1384
  %v1387 = vshrl.u32 %v1210, 16
  %v1389 = vrot.slane %v1387, 4
  %v1390 = vshll.u32 %v1210, 16
  %v1392 = vrot.slane %v1390, 5
  %v1393 = vor.u32 %v1389, %v1392
  %v1394 = vrot.slane %v1393, 4
  %v1396 = vshll.u32 %v1211, 16
  %v1398 = vrot.slane %v1396, 5
  %v1399 = vsel %vm678, %v1394, %v1398
  %v1401 = vshrl.u32 %v1212, 16
  %v1403 = vrot.slane %v1401, 4
  %v1404 = vshll.u32 %v1212, 16
  %v1406 = vrot.slane %v1404, 5
  %v1407 = vor.u32 %v1403, %v1406
  %v1408 = vrot.slane %v1407, 4
  %v1410 = vshll.u32 %v1213, 16
  %v1412 = vrot.slane %v1410, 5
  %v1413 = vsel %vm678, %v1408, %v1412
  %v1415 = vshrl.u32 %v1214, 16
  %v1417 = vrot.slane %v1415, 4
  %v1418 = vshll.u32 %v1214, 16
  %v1420 = vrot.slane %v1418, 5
  %v1421 = vor.u32 %v1417, %v1420
  %v1422 = vrot.slane %v1421, 4
  %v1424 = vshll.u32 %v1215, 16
  %v1426 = vrot.slane %v1424, 5
  %v1427 = vsel %vm678, %v1422, %v1426
  %v1429 = vshrl.u32 %v1216, 16
  %v1431 = vrot.slane %v1429, 4
  %v1432 = vshll.u32 %v1216, 16
  %v1434 = vrot.slane %v1432, 5
  %v1435 = vor.u32 %v1431, %v1434
  %v1436 = vrot.slane %v1435, 4
  %v1438 = vshll.u32 %v1217, 16
  %v1440 = vrot.slane %v1438, 5
  %v1441 = vsel %vm678, %v1436, %v1440
  %v1442 = vunpack.c.l.b16 %v1231
  %v1443 = vunpack.c.l.b16 %v1245
  %v1444 = vunpack.c.l.b16 %v1259
  %v1445 = vunpack.c.l.b16 %v1273
  %v1446 = vunpack.c.l.b16 %v1287
  %v1447 = vunpack.c.l.b16 %v1301
  %v1448 = vunpack.c.l.b16 %v1315
  %v1449 = vunpack.c.l.b16 %v1329
  %v1450 = vunpack.c.l.b16 %v1343
  %v1451 = vunpack.c.l.b16 %v1357
  %v1452 = vunpack.c.l.b16 %v1371
  %v1453 = vunpack.c.l.b16 %v1385
  %v1454 = vunpack.c.l.b16 %v1399
  %v1455 = vunpack.c.l.b16 %v1413
  %v1456 = vunpack.c.l.b16 %v1427
  %v1457 = vunpack.c.l.b16 %v1441
  %v1458 = vpack.c.b16 %v1443, %v1442
  %v1459 = vpack.c.b16 %v1445, %v1444
  %v1460 = vpack.c.b16 %v1447, %v1446
  %v1461 = vpack.c.b16 %v1449, %v1448
  %v1462 = vpack.c.b16 %v1451, %v1450
  %v1463 = vpack.c.b16 %v1453, %v1452
  %v1464 = vpack.c.b16 %v1455, %v1454
  %v1465 = vpack.c.b16 %v1457, %v1456
  %1474 = vst [vmem:[#allocation3 + $0x20] sm:$0xff] %v1458
  %1475 = vst [vmem:[#allocation3 + $0x68] sm:$0xff] %v1459
  %1476 = vst [vmem:[#allocation3 + $0xb0] sm:$0xff] %v1460
  %1477 = vst [vmem:[#allocation3 + $0xf8] sm:$0xff] %v1461
  %1478 = vst [vmem:[#allocation3 + $0x140] sm:$0xff] %v1462
  %1479 = vst [vmem:[#allocation3 + $0x188] sm:$0xff] %v1463
  %1480 = vst [vmem:[#allocation3 + $0x1d0] sm:$0xff] %v1464
  %1481 = vst [vmem:[#allocation3 + $0x218] sm:$0xff] %v1465
  %v1482 = vld [vmem:[%s473] sm:$0xe]
  %v1483 = vld [vmem:[%s473 + $0x4] sm:$0x1]
  %v1484 = vld [vmem:[%s473 + $0x8] sm:$0xe]
  %v1485 = vld [vmem:[%s473 + $0xc] sm:$0x1]
  %v1486 = vld [vmem:[%s473 + $0x10] sm:$0xe]
  %v1487 = vld [vmem:[%s473 + $0x14] sm:$0x1]
  %v1488 = vld [vmem:[%s473 + $0x18] sm:$0xe]
  %v1489 = vld [vmem:[%s473 + $0x1c] sm:$0x1]
  %v1490 = vld [vmem:[%s473 + $0x20] sm:$0xe]
  %v1491 = vld [vmem:[%s473 + $0x24] sm:$0x1]
  %v1492 = vld [vmem:[%s473 + $0x28] sm:$0xe]
  %v1493 = vld [vmem:[%s473 + $0x2c] sm:$0x1]
  %v1494 = vld [vmem:[%s473 + $0x30] sm:$0xe]
  %v1495 = vld [vmem:[%s473 + $0x34] sm:$0x1]
  %v1496 = vld [vmem:[%s473 + $0x38] sm:$0xe]
  %v1497 = vld [vmem:[%s473 + $0x3c] sm:$0x1]
  %v1498 = vld [vmem:[%s473 + $0x50] sm:$0xe]
  %v1499 = vld [vmem:[%s473 + $0x54] sm:$0x1]
  %v1500 = vld [vmem:[%s473 + $0x58] sm:$0xe]
  %v1501 = vld [vmem:[%s473 + $0x5c] sm:$0x1]
  %v1502 = vld [vmem:[%s473 + $0x60] sm:$0xe]
  %v1503 = vld [vmem:[%s473 + $0x64] sm:$0x1]
  %v1504 = vld [vmem:[%s473 + $0x68] sm:$0xe]
  %v1505 = vld [vmem:[%s473 + $0x6c] sm:$0x1]
  %v1506 = vld [vmem:[%s473 + $0x70] sm:$0xe]
  %v1507 = vld [vmem:[%s473 + $0x74] sm:$0x1]
  %v1508 = vld [vmem:[%s473 + $0x78] sm:$0xe]
  %v1509 = vld [vmem:[%s473 + $0x7c] sm:$0x1]
  %v1510 = vld [vmem:[%s473 + $0x80] sm:$0xe]
  %v1511 = vld [vmem:[%s473 + $0x84] sm:$0x1]
  %v1512 = vld [vmem:[%s473 + $0x88] sm:$0xe]
  %v1513 = vld [vmem:[%s473 + $0x8c] sm:$0x1]
  %v1546 = vrot.slane %v1482, 5
  %v1547 = vrot.slane %v1546, 4
  %v1548 = vrot.slane %v1483, 5
  %v1549 = vsel %vm1009, %v1547, %v1548
  %v1550 = vrot.slane %v1484, 5
  %v1551 = vrot.slane %v1550, 4
  %v1552 = vrot.slane %v1485, 5
  %v1553 = vsel %vm1009, %v1551, %v1552
  %v1554 = vrot.slane %v1486, 5
  %v1555 = vrot.slane %v1554, 4
  %v1556 = vrot.slane %v1487, 5
  %v1557 = vsel %vm1009, %v1555, %v1556
  %v1558 = vrot.slane %v1488, 5
  %v1559 = vrot.slane %v1558, 4
  %v1560 = vrot.slane %v1489, 5
  %v1561 = vsel %vm1009, %v1559, %v1560
  %v1562 = vrot.slane %v1490, 5
  %v1563 = vrot.slane %v1562, 4
  %v1564 = vrot.slane %v1491, 5
  %v1565 = vsel %vm1009, %v1563, %v1564
  %v1566 = vrot.slane %v1492, 5
  %v1567 = vrot.slane %v1566, 4
  %v1568 = vrot.slane %v1493, 5
  %v1569 = vsel %vm1009, %v1567, %v1568
  %v1570 = vrot.slane %v1494, 5
  %v1571 = vrot.slane %v1570, 4
  %v1572 = vrot.slane %v1495, 5
  %v1573 = vsel %vm1009, %v1571, %v1572
  %v1574 = vrot.slane %v1496, 5
  %v1575 = vrot.slane %v1574, 4
  %v1576 = vrot.slane %v1497, 5
  %v1577 = vsel %vm1009, %v1575, %v1576
  %v1578 = vrot.slane %v1498, 5
  %v1579 = vrot.slane %v1578, 4
  %v1580 = vrot.slane %v1499, 5
  %v1581 = vsel %vm1009, %v1579, %v1580
  %v1582 = vrot.slane %v1500, 5
  %v1583 = vrot.slane %v1582, 4
  %v1584 = vrot.slane %v1501, 5
  %v1585 = vsel %vm1009, %v1583, %v1584
  %v1586 = vrot.slane %v1502, 5
  %v1587 = vrot.slane %v1586, 4
  %v1588 = vrot.slane %v1503, 5
  %v1589 = vsel %vm1009, %v1587, %v1588
  %v1590 = vrot.slane %v1504, 5
  %v1591 = vrot.slane %v1590, 4
  %v1592 = vrot.slane %v1505, 5
  %v1593 = vsel %vm1009, %v1591, %v1592
  %v1594 = vrot.slane %v1506, 5
  %v1595 = vrot.slane %v1594, 4
  %v1596 = vrot.slane %v1507, 5
  %v1597 = vsel %vm1009, %v1595, %v1596
  %v1598 = vrot.slane %v1508, 5
  %v1599 = vrot.slane %v1598, 4
  %v1600 = vrot.slane %v1509, 5
  %v1601 = vsel %vm1009, %v1599, %v1600
  %v1602 = vrot.slane %v1510, 5
  %v1603 = vrot.slane %v1602, 4
  %v1604 = vrot.slane %v1511, 5
  %v1605 = vsel %vm1009, %v1603, %v1604
  %v1606 = vrot.slane %v1512, 5
  %v1607 = vrot.slane %v1606, 4
  %v1608 = vrot.slane %v1513, 5
  %v1609 = vsel %vm1009, %v1607, %v1608
  %v1610 = vunpack.c.l.b16 %v1549
  %v1611 = vunpack.c.l.b16 %v1553
  %v1612 = vunpack.c.l.b16 %v1557
  %v1613 = vunpack.c.l.b16 %v1561
  %v1614 = vunpack.c.l.b16 %v1565
  %v1615 = vunpack.c.l.b16 %v1569
  %v1616 = vunpack.c.l.b16 %v1573
  %v1617 = vunpack.c.l.b16 %v1577
  %v1618 = vunpack.c.l.b16 %v1581
  %v1619 = vunpack.c.l.b16 %v1585
  %v1620 = vunpack.c.l.b16 %v1589
  %v1621 = vunpack.c.l.b16 %v1593
  %v1622 = vunpack.c.l.b16 %v1597
  %v1623 = vunpack.c.l.b16 %v1601
  %v1624 = vunpack.c.l.b16 %v1605
  %v1625 = vunpack.c.l.b16 %v1609
  %v1626 = vpack.c.b16 %v1611, %v1610
  %v1627 = vpack.c.b16 %v1613, %v1612
  %v1628 = vpack.c.b16 %v1615, %v1614
  %v1629 = vpack.c.b16 %v1617, %v1616
  %v1630 = vpack.c.b16 %v1619, %v1618
  %v1631 = vpack.c.b16 %v1621, %v1620
  %v1632 = vpack.c.b16 %v1623, %v1622
  %v1633 = vpack.c.b16 %v1625, %v1624
  %1642 = vst [vmem:[#allocation3 + $0x28] sm:$0xff] %v1626
  %1643 = vst [vmem:[#allocation3 + $0x70] sm:$0xff] %v1627
  %1644 = vst [vmem:[#allocation3 + $0xb8] sm:$0xff] %v1628
  %1645 = vst [vmem:[#allocation3 + $0x100] sm:$0xff] %v1629
  %1646 = vst [vmem:[#allocation3 + $0x148] sm:$0xff] %v1630
  %1647 = vst [vmem:[#allocation3 + $0x190] sm:$0xff] %v1631
  %1648 = vst [vmem:[#allocation3 + $0x1d8] sm:$0xff] %v1632
  %1649 = vst [vmem:[#allocation3 + $0x220] sm:$0xff] %v1633
  %s1650 = scalar_lea.vmem [#allocation2], 16
  %v1651 = vld [vmem:[%s1650] sm:$0xf]
  %v1652 = vld [vmem:[%s1650 + $0x8] sm:$0xf]
  %v1653 = vld [vmem:[%s1650 + $0x10] sm:$0xf]
  %v1654 = vld [vmem:[%s1650 + $0x18] sm:$0xf]
  %v1655 = vld [vmem:[%s1650 + $0x20] sm:$0xf]
  %v1656 = vld [vmem:[%s1650 + $0x28] sm:$0xf]
  %v1657 = vld [vmem:[%s1650 + $0x30] sm:$0xf]
  %v1658 = vld [vmem:[%s1650 + $0x38] sm:$0xf]
  %v1659 = vld [vmem:[%s1650 + $0x50] sm:$0xf]
  %v1660 = vld [vmem:[%s1650 + $0x58] sm:$0xf]
  %v1661 = vld [vmem:[%s1650 + $0x60] sm:$0xf]
  %v1662 = vld [vmem:[%s1650 + $0x68] sm:$0xf]
  %v1663 = vld [vmem:[%s1650 + $0x70] sm:$0xf]
  %v1664 = vld [vmem:[%s1650 + $0x78] sm:$0xf]
  %v1665 = vld [vmem:[%s1650 + $0x80] sm:$0xf]
  %v1666 = vld [vmem:[%s1650 + $0x88] sm:$0xf]
  %v1683 = vunpack.c.l.b16 %v1651
  %v1684 = vunpack.c.l.b16 %v1652
  %v1685 = vunpack.c.l.b16 %v1653
  %v1686 = vunpack.c.l.b16 %v1654
  %v1687 = vunpack.c.l.b16 %v1655
  %v1688 = vunpack.c.l.b16 %v1656
  %v1689 = vunpack.c.l.b16 %v1657
  %v1690 = vunpack.c.l.b16 %v1658
  %v1691 = vunpack.c.l.b16 %v1659
  %v1692 = vunpack.c.l.b16 %v1660
  %v1693 = vunpack.c.l.b16 %v1661
  %v1694 = vunpack.c.l.b16 %v1662
  %v1695 = vunpack.c.l.b16 %v1663
  %v1696 = vunpack.c.l.b16 %v1664
  %v1697 = vunpack.c.l.b16 %v1665
  %v1698 = vunpack.c.l.b16 %v1666
  %v1699 = vpack.c.b16 %v1684, %v1683
  %v1700 = vpack.c.b16 %v1686, %v1685
  %v1701 = vpack.c.b16 %v1688, %v1687
  %v1702 = vpack.c.b16 %v1690, %v1689
  %v1703 = vpack.c.b16 %v1692, %v1691
  %v1704 = vpack.c.b16 %v1694, %v1693
  %v1705 = vpack.c.b16 %v1696, %v1695
  %v1706 = vpack.c.b16 %v1698, %v1697
  %1715 = vst [vmem:[#allocation3 + $0x30] sm:$0xff] %v1699
  %1716 = vst [vmem:[#allocation3 + $0x78] sm:$0xff] %v1700
  %1717 = vst [vmem:[#allocation3 + $0xc0] sm:$0xff] %v1701
  %1718 = vst [vmem:[#allocation3 + $0x108] sm:$0xff] %v1702
  %1719 = vst [vmem:[#allocation3 + $0x150] sm:$0xff] %v1703
  %1720 = vst [vmem:[#allocation3 + $0x198] sm:$0xff] %v1704
  %1721 = vst [vmem:[#allocation3 + $0x1e0] sm:$0xff] %v1705
  %1722 = vst [vmem:[#allocation3 + $0x228] sm:$0xff] %v1706
  %v1723 = vld [vmem:[%s1650] sm:$0xf]
  %v1724 = vld [vmem:[%s1650 + $0x4] sm:$0x1]
  %v1725 = vld [vmem:[%s1650 + $0x8] sm:$0xf]
  %v1726 = vld [vmem:[%s1650 + $0xc] sm:$0x1]
  %v1727 = vld [vmem:[%s1650 + $0x10] sm:$0xf]
  %v1728 = vld [vmem:[%s1650 + $0x14] sm:$0x1]
  %v1729 = vld [vmem:[%s1650 + $0x18] sm:$0xf]
  %v1730 = vld [vmem:[%s1650 + $0x1c] sm:$0x1]
  %v1731 = vld [vmem:[%s1650 + $0x20] sm:$0xf]
  %v1732 = vld [vmem:[%s1650 + $0x24] sm:$0x1]
  %v1733 = vld [vmem:[%s1650 + $0x28] sm:$0xf]
  %v1734 = vld [vmem:[%s1650 + $0x2c] sm:$0x1]
  %v1735 = vld [vmem:[%s1650 + $0x30] sm:$0xf]
  %v1736 = vld [vmem:[%s1650 + $0x34] sm:$0x1]
  %v1737 = vld [vmem:[%s1650 + $0x38] sm:$0xf]
  %v1738 = vld [vmem:[%s1650 + $0x3c] sm:$0x1]
  %v1739 = vld [vmem:[%s1650 + $0x50] sm:$0xf]
  %v1740 = vld [vmem:[%s1650 + $0x54] sm:$0x1]
  %v1741 = vld [vmem:[%s1650 + $0x58] sm:$0xf]
  %v1742 = vld [vmem:[%s1650 + $0x5c] sm:$0x1]
  %v1743 = vld [vmem:[%s1650 + $0x60] sm:$0xf]
  %v1744 = vld [vmem:[%s1650 + $0x64] sm:$0x1]
  %v1745 = vld [vmem:[%s1650 + $0x68] sm:$0xf]
  %v1746 = vld [vmem:[%s1650 + $0x6c] sm:$0x1]
  %v1747 = vld [vmem:[%s1650 + $0x70] sm:$0xf]
  %v1748 = vld [vmem:[%s1650 + $0x74] sm:$0x1]
  %v1749 = vld [vmem:[%s1650 + $0x78] sm:$0xf]
  %v1750 = vld [vmem:[%s1650 + $0x7c] sm:$0x1]
  %v1751 = vld [vmem:[%s1650 + $0x80] sm:$0xf]
  %v1752 = vld [vmem:[%s1650 + $0x84] sm:$0x1]
  %v1753 = vld [vmem:[%s1650 + $0x88] sm:$0xf]
  %v1754 = vld [vmem:[%s1650 + $0x8c] sm:$0x1]
  %v1756 = vshrl.u32 %v1723, 16
  %v1758 = vrot.slane %v1756, 4
  %v1759 = vshll.u32 %v1723, 16
  %v1761 = vrot.slane %v1759, 5
  %v1762 = vor.u32 %v1758, %v1761
  %v1763 = vrot.slane %v1762, 4
  %v1765 = vshll.u32 %v1724, 16
  %v1767 = vrot.slane %v1765, 5
  %v1768 = vsel %vm678, %v1763, %v1767
  %v1770 = vshrl.u32 %v1725, 16
  %v1772 = vrot.slane %v1770, 4
  %v1773 = vshll.u32 %v1725, 16
  %v1775 = vrot.slane %v1773, 5
  %v1776 = vor.u32 %v1772, %v1775
  %v1777 = vrot.slane %v1776, 4
  %v1779 = vshll.u32 %v1726, 16
  %v1781 = vrot.slane %v1779, 5
  %v1782 = vsel %vm678, %v1777, %v1781
  %v1784 = vshrl.u32 %v1727, 16
  %v1786 = vrot.slane %v1784, 4
  %v1787 = vshll.u32 %v1727, 16
  %v1789 = vrot.slane %v1787, 5
  %v1790 = vor.u32 %v1786, %v1789
  %v1791 = vrot.slane %v1790, 4
  %v1793 = vshll.u32 %v1728, 16
  %v1795 = vrot.slane %v1793, 5
  %v1796 = vsel %vm678, %v1791, %v1795
  %v1798 = vshrl.u32 %v1729, 16
  %v1800 = vrot.slane %v1798, 4
  %v1801 = vshll.u32 %v1729, 16
  %v1803 = vrot.slane %v1801, 5
  %v1804 = vor.u32 %v1800, %v1803
  %v1805 = vrot.slane %v1804, 4
  %v1807 = vshll.u32 %v1730, 16
  %v1809 = vrot.slane %v1807, 5
  %v1810 = vsel %vm678, %v1805, %v1809
  %v1812 = vshrl.u32 %v1731, 16
  %v1814 = vrot.slane %v1812, 4
  %v1815 = vshll.u32 %v1731, 16
  %v1817 = vrot.slane %v1815, 5
  %v1818 = vor.u32 %v1814, %v1817
  %v1819 = vrot.slane %v1818, 4
  %v1821 = vshll.u32 %v1732, 16
  %v1823 = vrot.slane %v1821, 5
  %v1824 = vsel %vm678, %v1819, %v1823
  %v1826 = vshrl.u32 %v1733, 16
  %v1828 = vrot.slane %v1826, 4
  %v1829 = vshll.u32 %v1733, 16
  %v1831 = vrot.slane %v1829, 5
  %v1832 = vor.u32 %v1828, %v1831
  %v1833 = vrot.slane %v1832, 4
  %v1835 = vshll.u32 %v1734, 16
  %v1837 = vrot.slane %v1835, 5
  %v1838 = vsel %vm678, %v1833, %v1837
  %v1840 = vshrl.u32 %v1735, 16
  %v1842 = vrot.slane %v1840, 4
  %v1843 = vshll.u32 %v1735, 16
  %v1845 = vrot.slane %v1843, 5
  %v1846 = vor.u32 %v1842, %v1845
  %v1847 = vrot.slane %v1846, 4
  %v1849 = vshll.u32 %v1736, 16
  %v1851 = vrot.slane %v1849, 5
  %v1852 = vsel %vm678, %v1847, %v1851
  %v1854 = vshrl.u32 %v1737, 16
  %v1856 = vrot.slane %v1854, 4
  %v1857 = vshll.u32 %v1737, 16
  %v1859 = vrot.slane %v1857, 5
  %v1860 = vor.u32 %v1856, %v1859
  %v1861 = vrot.slane %v1860, 4
  %v1863 = vshll.u32 %v1738, 16
  %v1865 = vrot.slane %v1863, 5
  %v1866 = vsel %vm678, %v1861, %v1865
  %v1868 = vshrl.u32 %v1739, 16
  %v1870 = vrot.slane %v1868, 4
  %v1871 = vshll.u32 %v1739, 16
  %v1873 = vrot.slane %v1871, 5
  %v1874 = vor.u32 %v1870, %v1873
  %v1875 = vrot.slane %v1874, 4
  %v1877 = vshll.u32 %v1740, 16
  %v1879 = vrot.slane %v1877, 5
  %v1880 = vsel %vm678, %v1875, %v1879
  %v1882 = vshrl.u32 %v1741, 16
  %v1884 = vrot.slane %v1882, 4
  %v1885 = vshll.u32 %v1741, 16
  %v1887 = vrot.slane %v1885, 5
  %v1888 = vor.u32 %v1884, %v1887
  %v1889 = vrot.slane %v1888, 4
  %v1891 = vshll.u32 %v1742, 16
  %v1893 = vrot.slane %v1891, 5
  %v1894 = vsel %vm678, %v1889, %v1893
  %v1896 = vshrl.u32 %v1743, 16
  %v1898 = vrot.slane %v1896, 4
  %v1899 = vshll.u32 %v1743, 16
  %v1901 = vrot.slane %v1899, 5
  %v1902 = vor.u32 %v1898, %v1901
  %v1903 = vrot.slane %v1902, 4
  %v1905 = vshll.u32 %v1744, 16
  %v1907 = vrot.slane %v1905, 5
  %v1908 = vsel %vm678, %v1903, %v1907
  %v1910 = vshrl.u32 %v1745, 16
  %v1912 = vrot.slane %v1910, 4
  %v1913 = vshll.u32 %v1745, 16
  %v1915 = vrot.slane %v1913, 5
  %v1916 = vor.u32 %v1912, %v1915
  %v1917 = vrot.slane %v1916, 4
  %v1919 = vshll.u32 %v1746, 16
  %v1921 = vrot.slane %v1919, 5
  %v1922 = vsel %vm678, %v1917, %v1921
  %v1924 = vshrl.u32 %v1747, 16
  %v1926 = vrot.slane %v1924, 4
  %v1927 = vshll.u32 %v1747, 16
  %v1929 = vrot.slane %v1927, 5
  %v1930 = vor.u32 %v1926, %v1929
  %v1931 = vrot.slane %v1930, 4
  %v1933 = vshll.u32 %v1748, 16
  %v1935 = vrot.slane %v1933, 5
  %v1936 = vsel %vm678, %v1931, %v1935
  %v1938 = vshrl.u32 %v1749, 16
  %v1940 = vrot.slane %v1938, 4
  %v1941 = vshll.u32 %v1749, 16
  %v1943 = vrot.slane %v1941, 5
  %v1944 = vor.u32 %v1940, %v1943
  %v1945 = vrot.slane %v1944, 4
  %v1947 = vshll.u32 %v1750, 16
  %v1949 = vrot.slane %v1947, 5
  %v1950 = vsel %vm678, %v1945, %v1949
  %v1952 = vshrl.u32 %v1751, 16
  %v1954 = vrot.slane %v1952, 4
  %v1955 = vshll.u32 %v1751, 16
  %v1957 = vrot.slane %v1955, 5
  %v1958 = vor.u32 %v1954, %v1957
  %v1959 = vrot.slane %v1958, 4
  %v1961 = vshll.u32 %v1752, 16
  %v1963 = vrot.slane %v1961, 5
  %v1964 = vsel %vm678, %v1959, %v1963
  %v1966 = vshrl.u32 %v1753, 16
  %v1968 = vrot.slane %v1966, 4
  %v1969 = vshll.u32 %v1753, 16
  %v1971 = vrot.slane %v1969, 5
  %v1972 = vor.u32 %v1968, %v1971
  %v1973 = vrot.slane %v1972, 4
  %v1975 = vshll.u32 %v1754, 16
  %v1977 = vrot.slane %v1975, 5
  %v1978 = vsel %vm678, %v1973, %v1977
  %v1979 = vunpack.c.l.b16 %v1768
  %v1980 = vunpack.c.l.b16 %v1782
  %v1981 = vunpack.c.l.b16 %v1796
  %v1982 = vunpack.c.l.b16 %v1810
  %v1983 = vunpack.c.l.b16 %v1824
  %v1984 = vunpack.c.l.b16 %v1838
  %v1985 = vunpack.c.l.b16 %v1852
  %v1986 = vunpack.c.l.b16 %v1866
  %v1987 = vunpack.c.l.b16 %v1880
  %v1988 = vunpack.c.l.b16 %v1894
  %v1989 = vunpack.c.l.b16 %v1908
  %v1990 = vunpack.c.l.b16 %v1922
  %v1991 = vunpack.c.l.b16 %v1936
  %v1992 = vunpack.c.l.b16 %v1950
  %v1993 = vunpack.c.l.b16 %v1964
  %v1994 = vunpack.c.l.b16 %v1978
  %v1995 = vpack.c.b16 %v1980, %v1979
  %v1996 = vpack.c.b16 %v1982, %v1981
  %v1997 = vpack.c.b16 %v1984, %v1983
  %v1998 = vpack.c.b16 %v1986, %v1985
  %v1999 = vpack.c.b16 %v1988, %v1987
  %v2000 = vpack.c.b16 %v1990, %v1989
  %v2001 = vpack.c.b16 %v1992, %v1991
  %v2002 = vpack.c.b16 %v1994, %v1993
  %2011 = vst [vmem:[#allocation3 + $0x38] sm:$0xff] %v1995
  %2012 = vst [vmem:[#allocation3 + $0x80] sm:$0xff] %v1996
  %2013 = vst [vmem:[#allocation3 + $0xc8] sm:$0xff] %v1997
  %2014 = vst [vmem:[#allocation3 + $0x110] sm:$0xff] %v1998
  %2015 = vst [vmem:[#allocation3 + $0x158] sm:$0xff] %v1999
  %2016 = vst [vmem:[#allocation3 + $0x1a0] sm:$0xff] %v2000
  %2017 = vst [vmem:[#allocation3 + $0x1e8] sm:$0xff] %v2001
  %2018 = vst [vmem:[#allocation3 + $0x230] sm:$0xff] %v2002
  %v2019 = vld [vmem:[%s1650] sm:$0xe]
  %v2020 = vld [vmem:[%s1650 + $0x4] sm:$0x1]
  %v2021 = vld [vmem:[%s1650 + $0x8] sm:$0xe]
  %v2022 = vld [vmem:[%s1650 + $0xc] sm:$0x1]
  %v2023 = vld [vmem:[%s1650 + $0x10] sm:$0xe]
  %v2024 = vld [vmem:[%s1650 + $0x14] sm:$0x1]
  %v2025 = vld [vmem:[%s1650 + $0x18] sm:$0xe]
  %v2026 = vld [vmem:[%s1650 + $0x1c] sm:$0x1]
  %v2027 = vld [vmem:[%s1650 + $0x20] sm:$0xe]
  %v2028 = vld [vmem:[%s1650 + $0x24] sm:$0x1]
  %v2029 = vld [vmem:[%s1650 + $0x28] sm:$0xe]
  %v2030 = vld [vmem:[%s1650 + $0x2c] sm:$0x1]
  %v2031 = vld [vmem:[%s1650 + $0x30] sm:$0xe]
  %v2032 = vld [vmem:[%s1650 + $0x34] sm:$0x1]
  %v2033 = vld [vmem:[%s1650 + $0x38] sm:$0xe]
  %v2034 = vld [vmem:[%s1650 + $0x3c] sm:$0x1]
  %v2035 = vld [vmem:[%s1650 + $0x50] sm:$0xe]
  %v2036 = vld [vmem:[%s1650 + $0x54] sm:$0x1]
  %v2037 = vld [vmem:[%s1650 + $0x58] sm:$0xe]
  %v2038 = vld [vmem:[%s1650 + $0x5c] sm:$0x1]
  %v2039 = vld [vmem:[%s1650 + $0x60] sm:$0xe]
  %v2040 = vld [vmem:[%s1650 + $0x64] sm:$0x1]
  %v2041 = vld [vmem:[%s1650 + $0x68] sm:$0xe]
  %v2042 = vld [vmem:[%s1650 + $0x6c] sm:$0x1]
  %v2043 = vld [vmem:[%s1650 + $0x70] sm:$0xe]
  %v2044 = vld [vmem:[%s1650 + $0x74] sm:$0x1]
  %v2045 = vld [vmem:[%s1650 + $0x78] sm:$0xe]
  %v2046 = vld [vmem:[%s1650 + $0x7c] sm:$0x1]
  %v2047 = vld [vmem:[%s1650 + $0x80] sm:$0xe]
  %v2048 = vld [vmem:[%s1650 + $0x84] sm:$0x1]
  %v2049 = vld [vmem:[%s1650 + $0x88] sm:$0xe]
  %v2050 = vld [vmem:[%s1650 + $0x8c] sm:$0x1]
  %v2083 = vrot.slane %v2019, 5
  %v2084 = vrot.slane %v2083, 4
  %v2085 = vrot.slane %v2020, 5
  %v2086 = vsel %vm1009, %v2084, %v2085
  %v2087 = vrot.slane %v2021, 5
  %v2088 = vrot.slane %v2087, 4
  %v2089 = vrot.slane %v2022, 5
  %v2090 = vsel %vm1009, %v2088, %v2089
  %v2091 = vrot.slane %v2023, 5
  %v2092 = vrot.slane %v2091, 4
  %v2093 = vrot.slane %v2024, 5
  %v2094 = vsel %vm1009, %v2092, %v2093
  %v2095 = vrot.slane %v2025, 5
  %v2096 = vrot.slane %v2095, 4
  %v2097 = vrot.slane %v2026, 5
  %v2098 = vsel %vm1009, %v2096, %v2097
  %v2099 = vrot.slane %v2027, 5
  %v2100 = vrot.slane %v2099, 4
  %v2101 = vrot.slane %v2028, 5
  %v2102 = vsel %vm1009, %v2100, %v2101
  %v2103 = vrot.slane %v2029, 5
  %v2104 = vrot.slane %v2103, 4
  %v2105 = vrot.slane %v2030, 5
  %v2106 = vsel %vm1009, %v2104, %v2105
  %v2107 = vrot.slane %v2031, 5
  %v2108 = vrot.slane %v2107, 4
  %v2109 = vrot.slane %v2032, 5
  %v2110 = vsel %vm1009, %v2108, %v2109
  %v2111 = vrot.slane %v2033, 5
  %v2112 = vrot.slane %v2111, 4
  %v2113 = vrot.slane %v2034, 5
  %v2114 = vsel %vm1009, %v2112, %v2113
  %v2115 = vrot.slane %v2035, 5
  %v2116 = vrot.slane %v2115, 4
  %v2117 = vrot.slane %v2036, 5
  %v2118 = vsel %vm1009, %v2116, %v2117
  %v2119 = vrot.slane %v2037, 5
  %v2120 = vrot.slane %v2119, 4
  %v2121 = vrot.slane %v2038, 5
  %v2122 = vsel %vm1009, %v2120, %v2121
  %v2123 = vrot.slane %v2039, 5
  %v2124 = vrot.slane %v2123, 4
  %v2125 = vrot.slane %v2040, 5
  %v2126 = vsel %vm1009, %v2124, %v2125
  %v2127 = vrot.slane %v2041, 5
  %v2128 = vrot.slane %v2127, 4
  %v2129 = vrot.slane %v2042, 5
  %v2130 = vsel %vm1009, %v2128, %v2129
  %v2131 = vrot.slane %v2043, 5
  %v2132 = vrot.slane %v2131, 4
  %v2133 = vrot.slane %v2044, 5
  %v2134 = vsel %vm1009, %v2132, %v2133
  %v2135 = vrot.slane %v2045, 5
  %v2136 = vrot.slane %v2135, 4
  %v2137 = vrot.slane %v2046, 5
  %v2138 = vsel %vm1009, %v2136, %v2137
  %v2139 = vrot.slane %v2047, 5
  %v2140 = vrot.slane %v2139, 4
  %v2141 = vrot.slane %v2048, 5
  %v2142 = vsel %vm1009, %v2140, %v2141
  %v2143 = vrot.slane %v2049, 5
  %v2144 = vrot.slane %v2143, 4
  %v2145 = vrot.slane %v2050, 5
  %v2146 = vsel %vm1009, %v2144, %v2145
  %v2147 = vunpack.c.l.b16 %v2086
  %v2148 = vunpack.c.l.b16 %v2090
  %v2149 = vunpack.c.l.b16 %v2094
  %v2150 = vunpack.c.l.b16 %v2098
  %v2151 = vunpack.c.l.b16 %v2102
  %v2152 = vunpack.c.l.b16 %v2106
  %v2153 = vunpack.c.l.b16 %v2110
  %v2154 = vunpack.c.l.b16 %v2114
  %v2155 = vunpack.c.l.b16 %v2118
  %v2156 = vunpack.c.l.b16 %v2122
  %v2157 = vunpack.c.l.b16 %v2126
  %v2158 = vunpack.c.l.b16 %v2130
  %v2159 = vunpack.c.l.b16 %v2134
  %v2160 = vunpack.c.l.b16 %v2138
  %v2161 = vunpack.c.l.b16 %v2142
  %v2162 = vunpack.c.l.b16 %v2146
  %v2163 = vpack.c.b16 %v2148, %v2147
  %v2164 = vpack.c.b16 %v2150, %v2149
  %v2165 = vpack.c.b16 %v2152, %v2151
  %v2166 = vpack.c.b16 %v2154, %v2153
  %v2167 = vpack.c.b16 %v2156, %v2155
  %v2168 = vpack.c.b16 %v2158, %v2157
  %v2169 = vpack.c.b16 %v2160, %v2159
  %v2170 = vpack.c.b16 %v2162, %v2161
  %2179 = vst [vmem:[#allocation3 + $0x40] sm:$0xff] %v2163
  %2180 = vst [vmem:[#allocation3 + $0x88] sm:$0xff] %v2164
  %2181 = vst [vmem:[#allocation3 + $0xd0] sm:$0xff] %v2165
  %2182 = vst [vmem:[#allocation3 + $0x118] sm:$0xff] %v2166
  %2183 = vst [vmem:[#allocation3 + $0x160] sm:$0xff] %v2167
  %2184 = vst [vmem:[#allocation3 + $0x1a8] sm:$0xff] %v2168
  %2185 = vst [vmem:[#allocation3 + $0x1f0] sm:$0xff] %v2169
  %2186 = vst [vmem:[#allocation3 + $0x238] sm:$0xff] %v2170
  %v2187 = vld [vmem:[#allocation3] sm:$0xff]
  %v2188 = vld [vmem:[#allocation3 + $0x8] sm:$0xff]
  %v2189 = vld [vmem:[#allocation3 + $0x10] sm:$0xff]
  %v2190 = vld [vmem:[#allocation3 + $0x18] sm:$0xff]
  %v2191 = vld [vmem:[#allocation3 + $0x20] sm:$0xff]
  %v2192 = vld [vmem:[#allocation3 + $0x28] sm:$0xff]
  %v2193 = vld [vmem:[#allocation3 + $0x30] sm:$0xff]
  %v2194 = vld [vmem:[#allocation3 + $0x38] sm:$0xff]
  %v2195 = vld [vmem:[#allocation3 + $0x40] sm:$0xff]
  %v2196 = vld [vmem:[#allocation3 + $0x48] sm:$0xff]
  %v2197 = vld [vmem:[#allocation3 + $0x50] sm:$0xff]
  %v2198 = vld [vmem:[#allocation3 + $0x58] sm:$0xff]
  %v2199 = vld [vmem:[#allocation3 + $0x60] sm:$0xff]
  %v2200 = vld [vmem:[#allocation3 + $0x68] sm:$0xff]
  %v2201 = vld [vmem:[#allocation3 + $0x70] sm:$0xff]
  %v2202 = vld [vmem:[#allocation3 + $0x78] sm:$0xff]
  %v2203 = vld [vmem:[#allocation3 + $0x80] sm:$0xff]
  %v2204 = vld [vmem:[#allocation3 + $0x88] sm:$0xff]
  %v2205 = vld [vmem:[#allocation3 + $0x90] sm:$0xff]
  %v2206 = vld [vmem:[#allocation3 + $0x98] sm:$0xff]
  %v2207 = vld [vmem:[#allocation3 + $0xa0] sm:$0xff]
  %v2208 = vld [vmem:[#allocation3 + $0xa8] sm:$0xff]
  %v2209 = vld [vmem:[#allocation3 + $0xb0] sm:$0xff]
  %v2210 = vld [vmem:[#allocation3 + $0xb8] sm:$0xff]
  %v2211 = vld [vmem:[#allocation3 + $0xc0] sm:$0xff]
  %v2212 = vld [vmem:[#allocation3 + $0xc8] sm:$0xff]
  %v2213 = vld [vmem:[#allocation3 + $0xd0] sm:$0xff]
  %v2214 = vld [vmem:[#allocation3 + $0xd8] sm:$0xff]
  %v2215 = vld [vmem:[#allocation3 + $0xe0] sm:$0xff]
  %v2216 = vld [vmem:[#allocation3 + $0xe8] sm:$0xff]
  %v2217 = vld [vmem:[#allocation3 + $0xf0] sm:$0xff]
  %v2218 = vld [vmem:[#allocation3 + $0xf8] sm:$0xff]
  %v2219 = vld [vmem:[#allocation3 + $0x100] sm:$0xff]
  %v2220 = vld [vmem:[#allocation3 + $0x108] sm:$0xff]
  %v2221 = vld [vmem:[#allocation3 + $0x110] sm:$0xff]
  %v2222 = vld [vmem:[#allocation3 + $0x118] sm:$0xff]
  %v2223 = vld [vmem:[#allocation3 + $0x120] sm:$0xff]
  %v2224 = vld [vmem:[#allocation3 + $0x128] sm:$0xff]
  %v2225 = vld [vmem:[#allocation3 + $0x130] sm:$0xff]
  %v2226 = vld [vmem:[#allocation3 + $0x138] sm:$0xff]
  %v2227 = vld [vmem:[#allocation3 + $0x140] sm:$0xff]
  %v2228 = vld [vmem:[#allocation3 + $0x148] sm:$0xff]
  %v2229 = vld [vmem:[#allocation3 + $0x150] sm:$0xff]
  %v2230 = vld [vmem:[#allocation3 + $0x158] sm:$0xff]
  %v2231 = vld [vmem:[#allocation3 + $0x160] sm:$0xff]
  %v2232 = vld [vmem:[#allocation3 + $0x168] sm:$0xff]
  %v2233 = vld [vmem:[#allocation3 + $0x170] sm:$0xff]
  %v2234 = vld [vmem:[#allocation3 + $0x178] sm:$0xff]
  %v2235 = vld [vmem:[#allocation3 + $0x180] sm:$0xff]
  %v2236 = vld [vmem:[#allocation3 + $0x188] sm:$0xff]
  %v2237 = vld [vmem:[#allocation3 + $0x190] sm:$0xff]
  %v2238 = vld [vmem:[#allocation3 + $0x198] sm:$0xff]
  %v2239 = vld [vmem:[#allocation3 + $0x1a0] sm:$0xff]
  %v2240 = vld [vmem:[#allocation3 + $0x1a8] sm:$0xff]
  %v2241 = vld [vmem:[#allocation3 + $0x1b0] sm:$0xff]
  %v2242 = vld [vmem:[#allocation3 + $0x1b8] sm:$0xff]
  %v2243 = vld [vmem:[#allocation3 + $0x1c0] sm:$0xff]
  %v2244 = vld [vmem:[#allocation3 + $0x1c8] sm:$0xff]
  %v2245 = vld [vmem:[#allocation3 + $0x1d0] sm:$0xff]
  %v2246 = vld [vmem:[#allocation3 + $0x1d8] sm:$0xff]
  %v2247 = vld [vmem:[#allocation3 + $0x1e0] sm:$0xff]
  %v2248 = vld [vmem:[#allocation3 + $0x1e8] sm:$0xff]
  %v2249 = vld [vmem:[#allocation3 + $0x1f0] sm:$0xff]
  %v2250 = vld [vmem:[#allocation3 + $0x1f8] sm:$0xff]
  %v2251 = vld [vmem:[#allocation3 + $0x200] sm:$0xff]
  %v2252 = vld [vmem:[#allocation3 + $0x208] sm:$0xff]
  %v2253 = vld [vmem:[#allocation3 + $0x210] sm:$0xff]
  %v2254 = vld [vmem:[#allocation3 + $0x218] sm:$0xff]
  %v2255 = vld [vmem:[#allocation3 + $0x220] sm:$0xff]
  %v2256 = vld [vmem:[#allocation3 + $0x228] sm:$0xff]
  %v2257 = vld [vmem:[#allocation3 + $0x230] sm:$0xff]
  %v2258 = vld [vmem:[#allocation3 + $0x238] sm:$0xff]
  %v2259 = vld [vmem:[%s3] sm:$0xf]
  %v2260 = vld [vmem:[%s3 + $0x4] sm:$0xf]
  %v2261 = vld [vmem:[%s3 + $0x8] sm:$0xf]
  %v2262 = vld [vmem:[%s3 + $0xc] sm:$0xf]
  %v2263 = vld [vmem:[%s3 + $0x10] sm:$0xf]
  %v2264 = vld [vmem:[%s3 + $0x14] sm:$0xf]
  %v2265 = vld [vmem:[%s3 + $0x18] sm:$0xf]
  %v2266 = vld [vmem:[%s3 + $0x1c] sm:$0xf]
  %v2267 = vld [vmem:[%s3 + $0x20] sm:$0xf]
  %v2268 = vld [vmem:[%s3 + $0x24] sm:$0xf]
  %v2269 = vld [vmem:[%s3 + $0x28] sm:$0xf]
  %v2270 = vld [vmem:[%s3 + $0x2c] sm:$0xf]
  %v2271 = vld [vmem:[%s3 + $0x30] sm:$0xf]
  %v2272 = vld [vmem:[%s3 + $0x34] sm:$0xf]
  %v2273 = vld [vmem:[%s3 + $0x38] sm:$0xf]
  %v2274 = vld [vmem:[%s3 + $0x3c] sm:$0xf]
  %v2275 = vld [vmem:[%s3 + $0x40] sm:$0xf]
  %v2276 = vld [vmem:[%s3 + $0x44] sm:$0xf]
  %v2277 = vld [vmem:[%s3 + $0x48] sm:$0xf]
  %v2278 = vld [vmem:[%s3 + $0x4c] sm:$0xf]
  %v2279 = vld [vmem:[%s3 + $0x50] sm:$0xf]
  %v2280 = vld [vmem:[%s3 + $0x54] sm:$0xf]
  %v2281 = vld [vmem:[%s3 + $0x58] sm:$0xf]
  %v2282 = vld [vmem:[%s3 + $0x5c] sm:$0xf]
  %v2283 = vld [vmem:[%s3 + $0x60] sm:$0xf]
  %v2284 = vld [vmem:[%s3 + $0x64] sm:$0xf]
  %v2285 = vld [vmem:[%s3 + $0x68] sm:$0xf]
  %v2286 = vld [vmem:[%s3 + $0x6c] sm:$0xf]
  %v2287 = vld [vmem:[%s3 + $0x70] sm:$0xf]
  %v2288 = vld [vmem:[%s3 + $0x74] sm:$0xf]
  %v2289 = vld [vmem:[%s3 + $0x78] sm:$0xf]
  %v2290 = vld [vmem:[%s3 + $0x7c] sm:$0xf]
  %v2291 = vld [vmem:[%s3 + $0x80] sm:$0xf]
  %v2292 = vld [vmem:[%s3 + $0x84] sm:$0xf]
  %v2293 = vld [vmem:[%s3 + $0x88] sm:$0xf]
  %v2294 = vld [vmem:[%s3 + $0x8c] sm:$0xf]
  %v2295 = vld [vmem:[%s3 + $0x90] sm:$0xf]
  %v2296 = vld [vmem:[%s3 + $0x94] sm:$0xf]
  %v2297 = vld [vmem:[%s3 + $0x98] sm:$0xf]
  %v2298 = vld [vmem:[%s3 + $0x9c] sm:$0xf]
  %v2299 = vld [vmem:[%s3 + $0xa0] sm:$0xf]
  %v2300 = vld [vmem:[%s3 + $0xa4] sm:$0xf]
  %v2301 = vld [vmem:[%s3 + $0xa8] sm:$0xf]
  %v2302 = vld [vmem:[%s3 + $0xac] sm:$0xf]
  %v2303 = vld [vmem:[%s3 + $0xb0] sm:$0xf]
  %v2304 = vld [vmem:[%s3 + $0xb4] sm:$0xf]
  %v2305 = vld [vmem:[%s3 + $0xb8] sm:$0xf]
  %v2306 = vld [vmem:[%s3 + $0xbc] sm:$0xf]
  %v2307 = vld [vmem:[%s3 + $0xc0] sm:$0xf]
  %v2308 = vld [vmem:[%s3 + $0xc4] sm:$0xf]
  %v2309 = vld [vmem:[%s3 + $0xc8] sm:$0xf]
  %v2310 = vld [vmem:[%s3 + $0xcc] sm:$0xf]
  %v2311 = vld [vmem:[%s3 + $0xd0] sm:$0xf]
  %v2312 = vld [vmem:[%s3 + $0xd4] sm:$0xf]
  %v2313 = vld [vmem:[%s3 + $0xd8] sm:$0xf]
  %v2314 = vld [vmem:[%s3 + $0xdc] sm:$0xf]
  %v2315 = vld [vmem:[%s3 + $0xe0] sm:$0xf]
  %v2316 = vld [vmem:[%s3 + $0xe4] sm:$0xf]
  %v2317 = vld [vmem:[%s3 + $0xe8] sm:$0xf]
  %v2318 = vld [vmem:[%s3 + $0xec] sm:$0xf]
  %v2319 = vld [vmem:[%s3 + $0xf0] sm:$0xf]
  %v2320 = vld [vmem:[%s3 + $0xf4] sm:$0xf]
  %v2321 = vld [vmem:[%s3 + $0xf8] sm:$0xf]
  %v2322 = vld [vmem:[%s3 + $0xfc] sm:$0xf]
  %v2323 = vld [vmem:[%s3 + $0x100] sm:$0xf]
  %v2324 = vld [vmem:[%s3 + $0x104] sm:$0xf]
  %v2325 = vld [vmem:[%s3 + $0x108] sm:$0xf]
  %v2326 = vld [vmem:[%s3 + $0x10c] sm:$0xf]
  %v2327 = vld [vmem:[%s3 + $0x110] sm:$0xf]
  %v2328 = vld [vmem:[%s3 + $0x114] sm:$0xf]
  %v2329 = vld [vmem:[%s3 + $0x118] sm:$0xf]
  %v2330 = vld [vmem:[%s3 + $0x11c] sm:$0xf]
  %v2331 = vld [vmem:[%s3 + $0x120] sm:$0xf]
  %v2332 = vld [vmem:[%s3 + $0x124] sm:$0xf]
  %v2333 = vld [vmem:[%s3 + $0x128] sm:$0xf]
  %v2334 = vld [vmem:[%s3 + $0x12c] sm:$0xf]
  %v2335 = vld [vmem:[%s3 + $0x130] sm:$0xf]
  %v2336 = vld [vmem:[%s3 + $0x134] sm:$0xf]
  %v2337 = vld [vmem:[%s3 + $0x138] sm:$0xf]
  %v2338 = vld [vmem:[%s3 + $0x13c] sm:$0xf]
  %v2339 = vld [vmem:[%s3 + $0x140] sm:$0xf]
  %v2340 = vld [vmem:[%s3 + $0x144] sm:$0xf]
  %v2341 = vld [vmem:[%s3 + $0x148] sm:$0xf]
  %v2342 = vld [vmem:[%s3 + $0x14c] sm:$0xf]
  %v2343 = vld [vmem:[%s3 + $0x150] sm:$0xf]
  %v2344 = vld [vmem:[%s3 + $0x154] sm:$0xf]
  %v2345 = vld [vmem:[%s3 + $0x158] sm:$0xf]
  %v2346 = vld [vmem:[%s3 + $0x15c] sm:$0xf]
  %v2347 = vld [vmem:[%s3 + $0x160] sm:$0xf]
  %v2348 = vld [vmem:[%s3 + $0x164] sm:$0xf]
  %v2349 = vld [vmem:[%s3 + $0x168] sm:$0xf]
  %v2350 = vld [vmem:[%s3 + $0x16c] sm:$0xf]
  %v2351 = vld [vmem:[%s3 + $0x170] sm:$0xf]
  %v2352 = vld [vmem:[%s3 + $0x174] sm:$0xf]
  %v2353 = vld [vmem:[%s3 + $0x178] sm:$0xf]
  %v2354 = vld [vmem:[%s3 + $0x17c] sm:$0xf]
  %v2355 = vld [vmem:[%s3 + $0x180] sm:$0xf]
  %v2356 = vld [vmem:[%s3 + $0x184] sm:$0xf]
  %v2357 = vld [vmem:[%s3 + $0x188] sm:$0xf]
  %v2358 = vld [vmem:[%s3 + $0x18c] sm:$0xf]
  %v2359 = vld [vmem:[%s3 + $0x190] sm:$0xf]
  %v2360 = vld [vmem:[%s3 + $0x194] sm:$0xf]
  %v2361 = vld [vmem:[%s3 + $0x198] sm:$0xf]
  %v2362 = vld [vmem:[%s3 + $0x19c] sm:$0xf]
  %v2363 = vld [vmem:[%s3 + $0x1a0] sm:$0xf]
  %v2364 = vld [vmem:[%s3 + $0x1a4] sm:$0xf]
  %v2365 = vld [vmem:[%s3 + $0x1a8] sm:$0xf]
  %v2366 = vld [vmem:[%s3 + $0x1ac] sm:$0xf]
  %v2367 = vld [vmem:[%s3 + $0x1b0] sm:$0xf]
  %v2368 = vld [vmem:[%s3 + $0x1b4] sm:$0xf]
  %v2369 = vld [vmem:[%s3 + $0x1b8] sm:$0xf]
  %v2370 = vld [vmem:[%s3 + $0x1bc] sm:$0xf]
  %v2371 = vld [vmem:[%s3 + $0x1c0] sm:$0xf]
  %v2372 = vld [vmem:[%s3 + $0x1c4] sm:$0xf]
  %v2373 = vld [vmem:[%s3 + $0x1c8] sm:$0xf]
  %v2374 = vld [vmem:[%s3 + $0x1cc] sm:$0xf]
  %v2375 = vld [vmem:[%s3 + $0x1d0] sm:$0xf]
  %v2376 = vld [vmem:[%s3 + $0x1d4] sm:$0xf]
  %v2377 = vld [vmem:[%s3 + $0x1d8] sm:$0xf]
  %v2378 = vld [vmem:[%s3 + $0x1dc] sm:$0xf]
  %v2379 = vld [vmem:[%s3 + $0x1e0] sm:$0xf]
  %v2380 = vld [vmem:[%s3 + $0x1e4] sm:$0xf]
  %v2381 = vld [vmem:[%s3 + $0x1e8] sm:$0xf]
  %v2382 = vld [vmem:[%s3 + $0x1ec] sm:$0xf]
  %v2383 = vld [vmem:[%s3 + $0x1f0] sm:$0xf]
  %v2384 = vld [vmem:[%s3 + $0x1f4] sm:$0xf]
  %v2385 = vld [vmem:[%s3 + $0x1f8] sm:$0xf]
  %v2386 = vld [vmem:[%s3 + $0x1fc] sm:$0xf]
  %v2387 = vld [vmem:[%s3 + $0x200] sm:$0xf]
  %v2388 = vld [vmem:[%s3 + $0x204] sm:$0xf]
  %v2389 = vld [vmem:[%s3 + $0x208] sm:$0xf]
  %v2390 = vld [vmem:[%s3 + $0x20c] sm:$0xf]
  %v2391 = vld [vmem:[%s3 + $0x210] sm:$0xf]
  %v2392 = vld [vmem:[%s3 + $0x214] sm:$0xf]
  %v2393 = vld [vmem:[%s3 + $0x218] sm:$0xf]
  %v2394 = vld [vmem:[%s3 + $0x21c] sm:$0xf]
  %v2395 = vld [vmem:[%s3 + $0x220] sm:$0xf]
  %v2396 = vld [vmem:[%s3 + $0x224] sm:$0xf]
  %v2397 = vld [vmem:[%s3 + $0x228] sm:$0xf]
  %v2398 = vld [vmem:[%s3 + $0x22c] sm:$0xf]
  %v2399 = vld [vmem:[%s3 + $0x230] sm:$0xf]
  %v2400 = vld [vmem:[%s3 + $0x234] sm:$0xf]
  %v2401 = vld [vmem:[%s3 + $0x238] sm:$0xf]
  %v2402 = vld [vmem:[%s3 + $0x23c] sm:$0xf]
  %v2547 = vunpack.c.l.b16 %v2259
  %v2548 = vunpack.c.l.b16 %v2260
  %v2549 = vunpack.c.l.b16 %v2261
  %v2550 = vunpack.c.l.b16 %v2262
  %v2551 = vunpack.c.l.b16 %v2263
  %v2552 = vunpack.c.l.b16 %v2264
  %v2553 = vunpack.c.l.b16 %v2265
  %v2554 = vunpack.c.l.b16 %v2266
  %v2555 = vunpack.c.l.b16 %v2267
  %v2556 = vunpack.c.l.b16 %v2268
  %v2557 = vunpack.c.l.b16 %v2269
  %v2558 = vunpack.c.l.b16 %v2270
  %v2559 = vunpack.c.l.b16 %v2271
  %v2560 = vunpack.c.l.b16 %v2272
  %v2561 = vunpack.c.l.b16 %v2273
  %v2562 = vunpack.c.l.b16 %v2274
  %v2563 = vunpack.c.l.b16 %v2275
  %v2564 = vunpack.c.l.b16 %v2276
  %v2565 = vunpack.c.l.b16 %v2277
  %v2566 = vunpack.c.l.b16 %v2278
  %v2567 = vunpack.c.l.b16 %v2279
  %v2568 = vunpack.c.l.b16 %v2280
  %v2569 = vunpack.c.l.b16 %v2281
  %v2570 = vunpack.c.l.b16 %v2282
  %v2571 = vunpack.c.l.b16 %v2283
  %v2572 = vunpack.c.l.b16 %v2284
  %v2573 = vunpack.c.l.b16 %v2285
  %v2574 = vunpack.c.l.b16 %v2286
  %v2575 = vunpack.c.l.b16 %v2287
  %v2576 = vunpack.c.l.b16 %v2288
  %v2577 = vunpack.c.l.b16 %v2289
  %v2578 = vunpack.c.l.b16 %v2290
  %v2579 = vunpack.c.l.b16 %v2291
  %v2580 = vunpack.c.l.b16 %v2292
  %v2581 = vunpack.c.l.b16 %v2293
  %v2582 = vunpack.c.l.b16 %v2294
  %v2583 = vunpack.c.l.b16 %v2295
  %v2584 = vunpack.c.l.b16 %v2296
  %v2585 = vunpack.c.l.b16 %v2297
  %v2586 = vunpack.c.l.b16 %v2298
  %v2587 = vunpack.c.l.b16 %v2299
  %v2588 = vunpack.c.l.b16 %v2300
  %v2589 = vunpack.c.l.b16 %v2301
  %v2590 = vunpack.c.l.b16 %v2302
  %v2591 = vunpack.c.l.b16 %v2303
  %v2592 = vunpack.c.l.b16 %v2304
  %v2593 = vunpack.c.l.b16 %v2305
  %v2594 = vunpack.c.l.b16 %v2306
  %v2595 = vunpack.c.l.b16 %v2307
  %v2596 = vunpack.c.l.b16 %v2308
  %v2597 = vunpack.c.l.b16 %v2309
  %v2598 = vunpack.c.l.b16 %v2310
  %v2599 = vunpack.c.l.b16 %v2311
  %v2600 = vunpack.c.l.b16 %v2312
  %v2601 = vunpack.c.l.b16 %v2313
  %v2602 = vunpack.c.l.b16 %v2314
  %v2603 = vunpack.c.l.b16 %v2315
  %v2604 = vunpack.c.l.b16 %v2316
  %v2605 = vunpack.c.l.b16 %v2317
  %v2606 = vunpack.c.l.b16 %v2318
  %v2607 = vunpack.c.l.b16 %v2319
  %v2608 = vunpack.c.l.b16 %v2320
  %v2609 = vunpack.c.l.b16 %v2321
  %v2610 = vunpack.c.l.b16 %v2322
  %v2611 = vunpack.c.l.b16 %v2323
  %v2612 = vunpack.c.l.b16 %v2324
  %v2613 = vunpack.c.l.b16 %v2325
  %v2614 = vunpack.c.l.b16 %v2326
  %v2615 = vunpack.c.l.b16 %v2327
  %v2616 = vunpack.c.l.b16 %v2328
  %v2617 = vunpack.c.l.b16 %v2329
  %v2618 = vunpack.c.l.b16 %v2330
  %v2619 = vunpack.c.l.b16 %v2331
  %v2620 = vunpack.c.l.b16 %v2332
  %v2621 = vunpack.c.l.b16 %v2333
  %v2622 = vunpack.c.l.b16 %v2334
  %v2623 = vunpack.c.l.b16 %v2335
  %v2624 = vunpack.c.l.b16 %v2336
  %v2625 = vunpack.c.l.b16 %v2337
  %v2626 = vunpack.c.l.b16 %v2338
  %v2627 = vunpack.c.l.b16 %v2339
  %v2628 = vunpack.c.l.b16 %v2340
  %v2629 = vunpack.c.l.b16 %v2341
  %v2630 = vunpack.c.l.b16 %v2342
  %v2631 = vunpack.c.l.b16 %v2343
  %v2632 = vunpack.c.l.b16 %v2344
  %v2633 = vunpack.c.l.b16 %v2345
  %v2634 = vunpack.c.l.b16 %v2346
  %v2635 = vunpack.c.l.b16 %v2347
  %v2636 = vunpack.c.l.b16 %v2348
  %v2637 = vunpack.c.l.b16 %v2349
  %v2638 = vunpack.c.l.b16 %v2350
  %v2639 = vunpack.c.l.b16 %v2351
  %v2640 = vunpack.c.l.b16 %v2352
  %v2641 = vunpack.c.l.b16 %v2353
  %v2642 = vunpack.c.l.b16 %v2354
  %v2643 = vunpack.c.l.b16 %v2355
  %v2644 = vunpack.c.l.b16 %v2356
  %v2645 = vunpack.c.l.b16 %v2357
  %v2646 = vunpack.c.l.b16 %v2358
  %v2647 = vunpack.c.l.b16 %v2359
  %v2648 = vunpack.c.l.b16 %v2360
  %v2649 = vunpack.c.l.b16 %v2361
  %v2650 = vunpack.c.l.b16 %v2362
  %v2651 = vunpack.c.l.b16 %v2363
  %v2652 = vunpack.c.l.b16 %v2364
  %v2653 = vunpack.c.l.b16 %v2365
  %v2654 = vunpack.c.l.b16 %v2366
  %v2655 = vunpack.c.l.b16 %v2367
  %v2656 = vunpack.c.l.b16 %v2368
  %v2657 = vunpack.c.l.b16 %v2369
  %v2658 = vunpack.c.l.b16 %v2370
  %v2659 = vunpack.c.l.b16 %v2371
  %v2660 = vunpack.c.l.b16 %v2372
  %v2661 = vunpack.c.l.b16 %v2373
  %v2662 = vunpack.c.l.b16 %v2374
  %v2663 = vunpack.c.l.b16 %v2375
  %v2664 = vunpack.c.l.b16 %v2376
  %v2665 = vunpack.c.l.b16 %v2377
  %v2666 = vunpack.c.l.b16 %v2378
  %v2667 = vunpack.c.l.b16 %v2379
  %v2668 = vunpack.c.l.b16 %v2380
  %v2669 = vunpack.c.l.b16 %v2381
  %v2670 = vunpack.c.l.b16 %v2382
  %v2671 = vunpack.c.l.b16 %v2383
  %v2672 = vunpack.c.l.b16 %v2384
  %v2673 = vunpack.c.l.b16 %v2385
  %v2674 = vunpack.c.l.b16 %v2386
  %v2675 = vunpack.c.l.b16 %v2387
  %v2676 = vunpack.c.l.b16 %v2388
  %v2677 = vunpack.c.l.b16 %v2389
  %v2678 = vunpack.c.l.b16 %v2390
  %v2679 = vunpack.c.l.b16 %v2391
  %v2680 = vunpack.c.l.b16 %v2392
  %v2681 = vunpack.c.l.b16 %v2393
  %v2682 = vunpack.c.l.b16 %v2394
  %v2683 = vunpack.c.l.b16 %v2395
  %v2684 = vunpack.c.l.b16 %v2396
  %v2685 = vunpack.c.l.b16 %v2397
  %v2686 = vunpack.c.l.b16 %v2398
  %v2687 = vunpack.c.l.b16 %v2399
  %v2688 = vunpack.c.l.b16 %v2400
  %v2689 = vunpack.c.l.b16 %v2401
  %v2690 = vunpack.c.l.b16 %v2402
  %v2691 = vpack.c.b16 %v2548, %v2547
  %v2692 = vpack.c.b16 %v2550, %v2549
  %v2693 = vpack.c.b16 %v2552, %v2551
  %v2694 = vpack.c.b16 %v2554, %v2553
  %v2695 = vpack.c.b16 %v2556, %v2555
  %v2696 = vpack.c.b16 %v2558, %v2557
  %v2697 = vpack.c.b16 %v2560, %v2559
  %v2698 = vpack.c.b16 %v2562, %v2561
  %v2699 = vpack.c.b16 %v2564, %v2563
  %v2700 = vpack.c.b16 %v2566, %v2565
  %v2701 = vpack.c.b16 %v2568, %v2567
  %v2702 = vpack.c.b16 %v2570, %v2569
  %v2703 = vpack.c.b16 %v2572, %v2571
  %v2704 = vpack.c.b16 %v2574, %v2573
  %v2705 = vpack.c.b16 %v2576, %v2575
  %v2706 = vpack.c.b16 %v2578, %v2577
  %v2707 = vpack.c.b16 %v2580, %v2579
  %v2708 = vpack.c.b16 %v2582, %v2581
  %v2709 = vpack.c.b16 %v2584, %v2583
  %v2710 = vpack.c.b16 %v2586, %v2585
  %v2711 = vpack.c.b16 %v2588, %v2587
  %v2712 = vpack.c.b16 %v2590, %v2589
  %v2713 = vpack.c.b16 %v2592, %v2591
  %v2714 = vpack.c.b16 %v2594, %v2593
  %v2715 = vpack.c.b16 %v2596, %v2595
  %v2716 = vpack.c.b16 %v2598, %v2597
  %v2717 = vpack.c.b16 %v2600, %v2599
  %v2718 = vpack.c.b16 %v2602, %v2601
  %v2719 = vpack.c.b16 %v2604, %v2603
  %v2720 = vpack.c.b16 %v2606, %v2605
  %v2721 = vpack.c.b16 %v2608, %v2607
  %v2722 = vpack.c.b16 %v2610, %v2609
  %v2723 = vpack.c.b16 %v2612, %v2611
  %v2724 = vpack.c.b16 %v2614, %v2613
  %v2725 = vpack.c.b16 %v2616, %v2615
  %v2726 = vpack.c.b16 %v2618, %v2617
  %v2727 = vpack.c.b16 %v2620, %v2619
  %v2728 = vpack.c.b16 %v2622, %v2621
  %v2729 = vpack.c.b16 %v2624, %v2623
  %v2730 = vpack.c.b16 %v2626, %v2625
  %v2731 = vpack.c.b16 %v2628, %v2627
  %v2732 = vpack.c.b16 %v2630, %v2629
  %v2733 = vpack.c.b16 %v2632, %v2631
  %v2734 = vpack.c.b16 %v2634, %v2633
  %v2735 = vpack.c.b16 %v2636, %v2635
  %v2736 = vpack.c.b16 %v2638, %v2637
  %v2737 = vpack.c.b16 %v2640, %v2639
  %v2738 = vpack.c.b16 %v2642, %v2641
  %v2739 = vpack.c.b16 %v2644, %v2643
  %v2740 = vpack.c.b16 %v2646, %v2645
  %v2741 = vpack.c.b16 %v2648, %v2647
  %v2742 = vpack.c.b16 %v2650, %v2649
  %v2743 = vpack.c.b16 %v2652, %v2651
  %v2744 = vpack.c.b16 %v2654, %v2653
  %v2745 = vpack.c.b16 %v2656, %v2655
  %v2746 = vpack.c.b16 %v2658, %v2657
  %v2747 = vpack.c.b16 %v2660, %v2659
  %v2748 = vpack.c.b16 %v2662, %v2661
  %v2749 = vpack.c.b16 %v2664, %v2663
  %v2750 = vpack.c.b16 %v2666, %v2665
  %v2751 = vpack.c.b16 %v2668, %v2667
  %v2752 = vpack.c.b16 %v2670, %v2669
  %v2753 = vpack.c.b16 %v2672, %v2671
  %v2754 = vpack.c.b16 %v2674, %v2673
  %v2755 = vpack.c.b16 %v2676, %v2675
  %v2756 = vpack.c.b16 %v2678, %v2677
  %v2757 = vpack.c.b16 %v2680, %v2679
  %v2758 = vpack.c.b16 %v2682, %v2681
  %v2759 = vpack.c.b16 %v2684, %v2683
  %v2760 = vpack.c.b16 %v2686, %v2685
  %v2761 = vpack.c.b16 %v2688, %v2687
  %v2762 = vpack.c.b16 %v2690, %v2689
  %2835 = vmatprep.subr.bf16.mxu0 0
  %2836 = vmatpush1.bf16.msra.mxu0 %v2691
  %2837 = vmatprep.subr.bf16.mxu0 0
  %2838 = vmatpush1.bf16.msra.mxu0 %v2692
  %2839 = vmatprep.subr.bf16.mxu0 0
  %2840 = vmatpush1.bf16.msra.mxu0 %v2693
  %2841 = vmatprep.subr.bf16.mxu0 0
  %2842 = vmatpush1.bf16.msra.mxu0 %v2694
  %2843 = vmatprep.subr.bf16.mxu0 0
  %2844 = vmatpush1.bf16.msra.mxu0 %v2695
  %2845 = vmatprep.subr.bf16.mxu0 0
  %2846 = vmatpush1.bf16.msra.mxu0 %v2696
  %2847 = vmatprep.subr.bf16.mxu0 0
  %2848 = vmatpush1.bf16.msra.mxu0 %v2697
  %2849 = vmatprep.subr.bf16.mxu0 0
  %2850 = vmatpush1.bf16.msra.mxu0 %v2698
  %2851 = vmatprep.subr.bf16.mxu0 0
  %2852 = vmatpush1.bf16.msra.mxu0 %v2699
  %2853 = vmatprep.subr.bf16.mxu0 0
  %2854 = vmatpush1.bf16.msra.mxu0 %v2700
  %2855 = vmatprep.subr.bf16.mxu0 0
  %2856 = vmatpush1.bf16.msra.mxu0 %v2701
  %2857 = vmatprep.subr.bf16.mxu0 0
  %2858 = vmatpush1.bf16.msra.mxu0 %v2702
  %2859 = vmatprep.subr.bf16.mxu0 0
  %2860 = vmatpush1.bf16.msra.mxu0 %v2703
  %2861 = vmatprep.subr.bf16.mxu0 0
  %2862 = vmatpush1.bf16.msra.mxu0 %v2704
  %2863 = vmatprep.subr.bf16.mxu0 0
  %2864 = vmatpush1.bf16.msra.mxu0 %v2705
  %2865 = vmatprep.subr.bf16.mxu0 0
  %2866 = vmatpush1.bf16.msra.mxu0 %v2706
  %2867 = vmatprep.mubr.bf16.mxu0 %v2188
  %2868 = vmatmul.mubr.bf16.gmra.mrb[0].mxu0 %v2187
  %v2869 = vpop.f32.mrb[0].mxu0
  %v2870 = vadd.f32 0.0, %v2869
  %v2871 = vpop.f32.mrb[0].mxu0
  %v2872 = vpop.f32.mrb[0].mxu0
  %v2873 = vadd.f32 0.0, %v2872
  %v2874 = vpop.f32.mrb[0].mxu0
  %2875 = vmatprep.mubr.bf16.mxu0 %v2197
  %2876 = vmatmul.mubr.bf16.gmra.mrb[0].mxu0 %v2196
  %v2877 = vpop.f32.mrb[0].mxu0
  %v2878 = vadd.f32 0.0, %v2877
  %v2879 = vpop.f32.mrb[0].mxu0
  %v2880 = vpop.f32.mrb[0].mxu0
  %v2881 = vadd.f32 0.0, %v2880
  %v2882 = vpop.f32.mrb[0].mxu0
  %2883 = vmatprep.mubr.bf16.mxu0 %v2206
  %2884 = vmatmul.mubr.bf16.gmra.mrb[0].mxu0 %v2205
  %v2885 = vpop.f32.mrb[0].mxu0
  %v2886 = vadd.f32 0.0, %v2885
  %v2887 = vpop.f32.mrb[0].mxu0
  %v2888 = vpop.f32.mrb[0].mxu0
  %v2889 = vadd.f32 0.0, %v2888
  %v2890 = vpop.f32.mrb[0].mxu0
  %2891 = vmatprep.mubr.bf16.mxu0 %v2215
  %2892 = vmatmul.mubr.bf16.gmra.mrb[0].mxu0 %v2214
  %v2893 = vpop.f32.mrb[0].mxu0
  %v2894 = vadd.f32 0.0, %v2893
  %v2895 = vpop.f32.mrb[0].mxu0
  %v2896 = vpop.f32.mrb[0].mxu0
  %v2897 = vadd.f32 0.0, %v2896
  %v2898 = vpop.f32.mrb[0].mxu0
  %2899 = vmatprep.mubr.bf16.mxu0 %v2224
  %2900 = vmatmul.mubr.bf16.gmra.mrb[0].mxu0 %v2223
  %v2901 = vpop.f32.mrb[0].mxu0
  %v2902 = vadd.f32 0.0, %v2901
  %v2903 = vpop.f32.mrb[0].mxu0
  %v2904 = vpop.f32.mrb[0].mxu0
  %v2905 = vadd.f32 0.0, %v2904
  %v2906 = vpop.f32.mrb[0].mxu0
  %2907 = vmatprep.mubr.bf16.mxu0 %v2233
  %2908 = vmatmul.mubr.bf16.gmra.mrb[0].mxu0 %v2232
  %v2909 = vpop.f32.mrb[0].mxu0
  %v2910 = vadd.f32 0.0, %v2909
  %v2911 = vpop.f32.mrb[0].mxu0
  %v2912 = vpop.f32.mrb[0].mxu0
  %v2913 = vadd.f32 0.0, %v2912
  %v2914 = vpop.f32.mrb[0].mxu0
  %2915 = vmatprep.mubr.bf16.mxu0 %v2242
  %2916 = vmatmul.mubr.bf16.gmra.mrb[0].mxu0 %v2241
  %v2917 = vpop.f32.mrb[0].mxu0
  %v2918 = vadd.f32 0.0, %v2917
  %v2919 = vpop.f32.mrb[0].mxu0
  %v2920 = vpop.f32.mrb[0].mxu0
  %v2921 = vadd.f32 0.0, %v2920
  %v2922 = vpop.f32.mrb[0].mxu0
  %2923 = vmatprep.mubr.bf16.mxu0 %v2251
  %2924 = vmatmul.mubr.bf16.gmra.mrb[0].mxu0 %v2250
  %v2925 = vpop.f32.mrb[0].mxu0
  %v2926 = vadd.f32 0.0, %v2925
  %v2927 = vpop.f32.mrb[0].mxu0
  %v2928 = vpop.f32.mrb[0].mxu0
  %v2929 = vadd.f32 0.0, %v2928
  %v2930 = vpop.f32.mrb[0].mxu0
  %2931 = vdwg.mxu0
  %2932 = vmatprep.subr.bf16.mxu0 0
  %2933 = vmatpush1.bf16.msra.mxu0 %v2707
  %2934 = vmatprep.subr.bf16.mxu0 0
  %2935 = vmatpush1.bf16.msra.mxu0 %v2708
  %2936 = vmatprep.subr.bf16.mxu0 0
  %2937 = vmatpush1.bf16.msra.mxu0 %v2709
  %2938 = vmatprep.subr.bf16.mxu0 0
  %2939 = vmatpush1.bf16.msra.mxu0 %v2710
  %2940 = vmatprep.subr.bf16.mxu0 0
  %2941 = vmatpush1.bf16.msra.mxu0 %v2711
  %2942 = vmatprep.subr.bf16.mxu0 0
  %2943 = vmatpush1.bf16.msra.mxu0 %v2712
  %2944 = vmatprep.subr.bf16.mxu0 0
  %2945 = vmatpush1.bf16.msra.mxu0 %v2713
  %2946 = vmatprep.subr.bf16.mxu0 0
  %2947 = vmatpush1.bf16.msra.mxu0 %v2714
  %2948 = vmatprep.subr.bf16.mxu0 0
  %2949 = vmatpush1.bf16.msra.mxu0 %v2715
  %2950 = vmatprep.subr.bf16.mxu0 0
  %2951 = vmatpush1.bf16.msra.mxu0 %v2716
  %2952 = vmatprep.subr.bf16.mxu0 0
  %2953 = vmatpush1.bf16.msra.mxu0 %v2717
  %2954 = vmatprep.subr.bf16.mxu0 0
  %2955 = vmatpush1.bf16.msra.mxu0 %v2718
  %2956 = vmatprep.subr.bf16.mxu0 0
  %2957 = vmatpush1.bf16.msra.mxu0 %v2719
  %2958 = vmatprep.subr.bf16.mxu0 0
  %2959 = vmatpush1.bf16.msra.mxu0 %v2720
  %2960 = vmatprep.subr.bf16.mxu0 0
  %2961 = vmatpush1.bf16.msra.mxu0 %v2721
  %2962 = vmatprep.subr.bf16.mxu0 0
  %2963 = vmatpush1.bf16.msra.mxu0 %v2722
  %2964 = vmatprep.mubr.bf16.mxu0 %v2190
  %2965 = vmatmul.mubr.bf16.gmra.mrb[0].mxu0 %v2189
  %v2966 = vpop.f32.mrb[0].mxu0
  %v2967 = vadd.f32 %v2870, %v2966
  %v2968 = vpop.f32.mrb[0].mxu0
  %v2969 = vpop.f32.mrb[0].mxu0
  %v2970 = vadd.f32 %v2873, %v2969
  %v2971 = vpop.f32.mrb[0].mxu0
  %2972 = vmatprep.mubr.bf16.mxu0 %v2199
  %2973 = vmatmul.mubr.bf16.gmra.mrb[0].mxu0 %v2198
  %v2974 = vpop.f32.mrb[0].mxu0
  %v2975 = vadd.f32 %v2878, %v2974
  %v2976 = vpop.f32.mrb[0].mxu0
  %v2977 = vpop.f32.mrb[0].mxu0
  %v2978 = vadd.f32 %v2881, %v2977
  %v2979 = vpop.f32.mrb[0].mxu0
  %2980 = vmatprep.mubr.bf16.mxu0 %v2208
  %2981 = vmatmul.mubr.bf16.gmra.mrb[0].mxu0 %v2207
  %v2982 = vpop.f32.mrb[0].mxu0
  %v2983 = vadd.f32 %v2886, %v2982
  %v2984 = vpop.f32.mrb[0].mxu0
  %v2985 = vpop.f32.mrb[0].mxu0
  %v2986 = vadd.f32 %v2889, %v2985
  %v2987 = vpop.f32.mrb[0].mxu0
  %2988 = vmatprep.mubr.bf16.mxu0 %v2217
  %2989 = vmatmul.mubr.bf16.gmra.mrb[0].mxu0 %v2216
  %v2990 = vpop.f32.mrb[0].mxu0
  %v2991 = vadd.f32 %v2894, %v2990
  %v2992 = vpop.f32.mrb[0].mxu0
  %v2993 = vpop.f32.mrb[0].mxu0
  %v2994 = vadd.f32 %v2897, %v2993
  %v2995 = vpop.f32.mrb[0].mxu0
  %2996 = vmatprep.mubr.bf16.mxu0 %v2226
  %2997 = vmatmul.mubr.bf16.gmra.mrb[0].mxu0 %v2225
  %v2998 = vpop.f32.mrb[0].mxu0
  %v2999 = vadd.f32 %v2902, %v2998
  %v3000 = vpop.f32.mrb[0].mxu0
  %v3001 = vpop.f32.mrb[0].mxu0
  %v3002 = vadd.f32 %v2905, %v3001
  %v3003 = vpop.f32.mrb[0].mxu0
  %3004 = vmatprep.mubr.bf16.mxu0 %v2235
  %3005 = vmatmul.mubr.bf16.gmra.mrb[0].mxu0 %v2234
  %v3006 = vpop.f32.mrb[0].mxu0
  %v3007 = vadd.f32 %v2910, %v3006
  %v3008 = vpop.f32.mrb[0].mxu0
  %v3009 = vpop.f32.mrb[0].mxu0
  %v3010 = vadd.f32 %v2913, %v3009
  %v3011 = vpop.f32.mrb[0].mxu0
  %3012 = vmatprep.mubr.bf16.mxu0 %v2244
  %3013 = vmatmul.mubr.bf16.gmra.mrb[0].mxu0 %v2243
  %v3014 = vpop.f32.mrb[0].mxu0
  %v3015 = vadd.f32 %v2918, %v3014
  %v3016 = vpop.f32.mrb[0].mxu0
  %v3017 = vpop.f32.mrb[0].mxu0
  %v3018 = vadd.f32 %v2921, %v3017
  %v3019 = vpop.f32.mrb[0].mxu0
  %3020 = vmatprep.mubr.bf16.mxu0 %v2253
  %3021 = vmatmul.mubr.bf16.gmra.mrb[0].mxu0 %v2252
  %v3022 = vpop.f32.mrb[0].mxu0
  %v3023 = vadd.f32 %v2926, %v3022
  %v3024 = vpop.f32.mrb[0].mxu0
  %v3025 = vpop.f32.mrb[0].mxu0
  %v3026 = vadd.f32 %v2929, %v3025
  %v3027 = vpop.f32.mrb[0].mxu0
  %3028 = vdwg.mxu0
  %3029 = vmatprep.subr.bf16.mxu0 0
  %3030 = vmatpush1.bf16.msra.mxu0 %v2723
  %3031 = vmatprep.subr.bf16.mxu0 0
  %3032 = vmatpush1.bf16.msra.mxu0 %v2724
  %3033 = vmatprep.subr.bf16.mxu0 0
  %3034 = vmatpush1.bf16.msra.mxu0 %v2725
  %3035 = vmatprep.subr.bf16.mxu0 0
  %3036 = vmatpush1.bf16.msra.mxu0 %v2726
  %3037 = vmatprep.subr.bf16.mxu0 0
  %3038 = vmatpush1.bf16.msra.mxu0 %v2727
  %3039 = vmatprep.subr.bf16.mxu0 0
  %3040 = vmatpush1.bf16.msra.mxu0 %v2728
  %3041 = vmatprep.subr.bf16.mxu0 0
  %3042 = vmatpush1.bf16.msra.mxu0 %v2729
  %3043 = vmatprep.subr.bf16.mxu0 0
  %3044 = vmatpush1.bf16.msra.mxu0 %v2730
  %3045 = vmatprep.subr.bf16.mxu0 0
  %3046 = vmatpush1.bf16.msra.mxu0 %v2731
  %3047 = vmatprep.subr.bf16.mxu0 0
  %3048 = vmatpush1.bf16.msra.mxu0 %v2732
  %3049 = vmatprep.subr.bf16.mxu0 0
  %3050 = vmatpush1.bf16.msra.mxu0 %v2733
  %3051 = vmatprep.subr.bf16.mxu0 0
  %3052 = vmatpush1.bf16.msra.mxu0 %v2734
  %3053 = vmatprep.subr.bf16.mxu0 0
  %3054 = vmatpush1.bf16.msra.mxu0 %v2735
  %3055 = vmatprep.subr.bf16.mxu0 0
  %3056 = vmatpush1.bf16.msra.mxu0 %v2736
  %3057 = vmatprep.subr.bf16.mxu0 0
  %3058 = vmatpush1.bf16.msra.mxu0 %v2737
  %3059 = vmatprep.subr.bf16.mxu0 0
  %3060 = vmatpush1.bf16.msra.mxu0 %v2738
  %3061 = vmatprep.mubr.bf16.mxu0 %v2192
  %3062 = vmatmul.mubr.bf16.gmra.mrb[0].mxu0 %v2191
  %v3063 = vpop.f32.mrb[0].mxu0
  %v3064 = vadd.f32 %v2967, %v3063
  %v3065 = vpop.f32.mrb[0].mxu0
  %v3066 = vpop.f32.mrb[0].mxu0
  %v3067 = vadd.f32 %v2970, %v3066
  %v3068 = vpop.f32.mrb[0].mxu0
  %3069 = vmatprep.mubr.bf16.mxu0 %v2201
  %3070 = vmatmul.mubr.bf16.gmra.mrb[0].mxu0 %v2200
  %v3071 = vpop.f32.mrb[0].mxu0
  %v3072 = vadd.f32 %v2975, %v3071
  %v3073 = vpop.f32.mrb[0].mxu0
  %v3074 = vpop.f32.mrb[0].mxu0
  %v3075 = vadd.f32 %v2978, %v3074
  %v3076 = vpop.f32.mrb[0].mxu0
  %3077 = vmatprep.mubr.bf16.mxu0 %v2210
  %3078 = vmatmul.mubr.bf16.gmra.mrb[0].mxu0 %v2209
  %v3079 = vpop.f32.mrb[0].mxu0
  %v3080 = vadd.f32 %v2983, %v3079
  %v3081 = vpop.f32.mrb[0].mxu0
  %v3082 = vpop.f32.mrb[0].mxu0
  %v3083 = vadd.f32 %v2986, %v3082
  %v3084 = vpop.f32.mrb[0].mxu0
  %3085 = vmatprep.mubr.bf16.mxu0 %v2219
  %3086 = vmatmul.mubr.bf16.gmra.mrb[0].mxu0 %v2218
  %v3087 = vpop.f32.mrb[0].mxu0
  %v3088 = vadd.f32 %v2991, %v3087
  %v3089 = vpop.f32.mrb[0].mxu0
  %v3090 = vpop.f32.mrb[0].mxu0
  %v3091 = vadd.f32 %v2994, %v3090
  %v3092 = vpop.f32.mrb[0].mxu0
  %3093 = vmatprep.mubr.bf16.mxu0 %v2228
  %3094 = vmatmul.mubr.bf16.gmra.mrb[0].mxu0 %v2227
  %v3095 = vpop.f32.mrb[0].mxu0
  %v3096 = vadd.f32 %v2999, %v3095
  %v3097 = vpop.f32.mrb[0].mxu0
  %v3098 = vpop.f32.mrb[0].mxu0
  %v3099 = vadd.f32 %v3002, %v3098
  %v3100 = vpop.f32.mrb[0].mxu0
  %3101 = vmatprep.mubr.bf16.mxu0 %v2237
  %3102 = vmatmul.mubr.bf16.gmra.mrb[0].mxu0 %v2236
  %v3103 = vpop.f32.mrb[0].mxu0
  %v3104 = vadd.f32 %v3007, %v3103
  %v3105 = vpop.f32.mrb[0].mxu0
  %v3106 = vpop.f32.mrb[0].mxu0
  %v3107 = vadd.f32 %v3010, %v3106
  %v3108 = vpop.f32.mrb[0].mxu0
  %3109 = vmatprep.mubr.bf16.mxu0 %v2246
  %3110 = vmatmul.mubr.bf16.gmra.mrb[0].mxu0 %v2245
  %v3111 = vpop.f32.mrb[0].mxu0
  %v3112 = vadd.f32 %v3015, %v3111
  %v3113 = vpop.f32.mrb[0].mxu0
  %v3114 = vpop.f32.mrb[0].mxu0
  %v3115 = vadd.f32 %v3018, %v3114
  %v3116 = vpop.f32.mrb[0].mxu0
  %3117 = vmatprep.mubr.bf16.mxu0 %v2255
  %3118 = vmatmul.mubr.bf16.gmra.mrb[0].mxu0 %v2254
  %v3119 = vpop.f32.mrb[0].mxu0
  %v3120 = vadd.f32 %v3023, %v3119
  %v3121 = vpop.f32.mrb[0].mxu0
  %v3122 = vpop.f32.mrb[0].mxu0
  %v3123 = vadd.f32 %v3026, %v3122
  %v3124 = vpop.f32.mrb[0].mxu0
  %3125 = vdwg.mxu0
  %3126 = vmatprep.subr.bf16.mxu0 0
  %3127 = vmatpush1.bf16.msra.mxu0 %v2739
  %3128 = vmatprep.subr.bf16.mxu0 0
  %3129 = vmatpush1.bf16.msra.mxu0 %v2740
  %3130 = vmatprep.subr.bf16.mxu0 0
  %3131 = vmatpush1.bf16.msra.mxu0 %v2741
  %3132 = vmatprep.subr.bf16.mxu0 0
  %3133 = vmatpush1.bf16.msra.mxu0 %v2742
  %3134 = vmatprep.subr.bf16.mxu0 0
  %3135 = vmatpush1.bf16.msra.mxu0 %v2743
  %3136 = vmatprep.subr.bf16.mxu0 0
  %3137 = vmatpush1.bf16.msra.mxu0 %v2744
  %3138 = vmatprep.subr.bf16.mxu0 0
  %3139 = vmatpush1.bf16.msra.mxu0 %v2745
  %3140 = vmatprep.subr.bf16.mxu0 0
  %3141 = vmatpush1.bf16.msra.mxu0 %v2746
  %3142 = vmatprep.subr.bf16.mxu0 0
  %3143 = vmatpush1.bf16.msra.mxu0 %v2747
  %3144 = vmatprep.subr.bf16.mxu0 0
  %3145 = vmatpush1.bf16.msra.mxu0 %v2748
  %3146 = vmatprep.subr.bf16.mxu0 0
  %3147 = vmatpush1.bf16.msra.mxu0 %v2749
  %3148 = vmatprep.subr.bf16.mxu0 0
  %3149 = vmatpush1.bf16.msra.mxu0 %v2750
  %3150 = vmatprep.subr.bf16.mxu0 0
  %3151 = vmatpush1.bf16.msra.mxu0 %v2751
  %3152 = vmatprep.subr.bf16.mxu0 0
  %3153 = vmatpush1.bf16.msra.mxu0 %v2752
  %3154 = vmatprep.subr.bf16.mxu0 0
  %3155 = vmatpush1.bf16.msra.mxu0 %v2753
  %3156 = vmatprep.subr.bf16.mxu0 0
  %3157 = vmatpush1.bf16.msra.mxu0 %v2754
  %3158 = vmatprep.mubr.bf16.mxu0 %v2194
  %3159 = vmatmul.mubr.bf16.gmra.mrb[0].mxu0 %v2193
  %v3160 = vpop.f32.mrb[0].mxu0
  %v3161 = vadd.f32 %v3064, %v3160
  %v3162 = vpop.f32.mrb[0].mxu0
  %v3163 = vpop.f32.mrb[0].mxu0
  %v3164 = vadd.f32 %v3067, %v3163
  %v3165 = vpop.f32.mrb[0].mxu0
  %3166 = vmatprep.mubr.bf16.mxu0 %v2203
  %3167 = vmatmul.mubr.bf16.gmra.mrb[0].mxu0 %v2202
  %v3168 = vpop.f32.mrb[0].mxu0
  %v3169 = vadd.f32 %v3072, %v3168
  %v3170 = vpop.f32.mrb[0].mxu0
  %v3171 = vpop.f32.mrb[0].mxu0
  %v3172 = vadd.f32 %v3075, %v3171
  %v3173 = vpop.f32.mrb[0].mxu0
  %3174 = vmatprep.mubr.bf16.mxu0 %v2212
  %3175 = vmatmul.mubr.bf16.gmra.mrb[0].mxu0 %v2211
  %v3176 = vpop.f32.mrb[0].mxu0
  %v3177 = vadd.f32 %v3080, %v3176
  %v3178 = vpop.f32.mrb[0].mxu0
  %v3179 = vpop.f32.mrb[0].mxu0
  %v3180 = vadd.f32 %v3083, %v3179
  %v3181 = vpop.f32.mrb[0].mxu0
  %3182 = vmatprep.mubr.bf16.mxu0 %v2221
  %3183 = vmatmul.mubr.bf16.gmra.mrb[0].mxu0 %v2220
  %v3184 = vpop.f32.mrb[0].mxu0
  %v3185 = vadd.f32 %v3088, %v3184
  %v3186 = vpop.f32.mrb[0].mxu0
  %v3187 = vpop.f32.mrb[0].mxu0
  %v3188 = vadd.f32 %v3091, %v3187
  %v3189 = vpop.f32.mrb[0].mxu0
  %3190 = vmatprep.mubr.bf16.mxu0 %v2230
  %3191 = vmatmul.mubr.bf16.gmra.mrb[0].mxu0 %v2229
  %v3192 = vpop.f32.mrb[0].mxu0
  %v3193 = vadd.f32 %v3096, %v3192
  %v3194 = vpop.f32.mrb[0].mxu0
  %v3195 = vpop.f32.mrb[0].mxu0
  %v3196 = vadd.f32 %v3099, %v3195
  %v3197 = vpop.f32.mrb[0].mxu0
  %3198 = vmatprep.mubr.bf16.mxu0 %v2239
  %3199 = vmatmul.mubr.bf16.gmra.mrb[0].mxu0 %v2238
  %v3200 = vpop.f32.mrb[0].mxu0
  %v3201 = vadd.f32 %v3104, %v3200
  %v3202 = vpop.f32.mrb[0].mxu0
  %v3203 = vpop.f32.mrb[0].mxu0
  %v3204 = vadd.f32 %v3107, %v3203
  %v3205 = vpop.f32.mrb[0].mxu0
  %3206 = vmatprep.mubr.bf16.mxu0 %v2248
  %3207 = vmatmul.mubr.bf16.gmra.mrb[0].mxu0 %v2247
  %v3208 = vpop.f32.mrb[0].mxu0
  %v3209 = vadd.f32 %v3112, %v3208
  %v3210 = vpop.f32.mrb[0].mxu0
  %v3211 = vpop.f32.mrb[0].mxu0
  %v3212 = vadd.f32 %v3115, %v3211
  %v3213 = vpop.f32.mrb[0].mxu0
  %3214 = vmatprep.mubr.bf16.mxu0 %v2257
  %3215 = vmatmul.mubr.bf16.gmra.mrb[0].mxu0 %v2256
  %v3216 = vpop.f32.mrb[0].mxu0
  %v3217 = vadd.f32 %v3120, %v3216
  %v3218 = vpop.f32.mrb[0].mxu0
  %v3219 = vpop.f32.mrb[0].mxu0
  %v3220 = vadd.f32 %v3123, %v3219
  %v3221 = vpop.f32.mrb[0].mxu0
  %3222 = vdwg.mxu0
  %3223 = vmatprep.subr.bf16.mxu0 0
  %3224 = vmatpush1.bf16.msra.mxu0 %v2755
  %3225 = vmatprep.subr.bf16.mxu0 0
  %3226 = vmatpush1.bf16.msra.mxu0 %v2756
  %3227 = vmatprep.subr.bf16.mxu0 0
  %3228 = vmatpush1.bf16.msra.mxu0 %v2757
  %3229 = vmatprep.subr.bf16.mxu0 0
  %3230 = vmatpush1.bf16.msra.mxu0 %v2758
  %3231 = vmatprep.subr.bf16.mxu0 0
  %3232 = vmatpush1.bf16.msra.mxu0 %v2759
  %3233 = vmatprep.subr.bf16.mxu0 0
  %3234 = vmatpush1.bf16.msra.mxu0 %v2760
  %3235 = vmatprep.subr.bf16.mxu0 0
  %3236 = vmatpush1.bf16.msra.mxu0 %v2761
  %3237 = vmatprep.subr.bf16.mxu0 0
  %3238 = vmatpush1.bf16.msra.mxu0 %v2762
  %3239 = vmatprep.subr.bf16.mxu0 0
  %3240 = vmatpush1.bf16.msra.mxu0 0
  %3241 = vmatprep.subr.bf16.mxu0 0
  %3242 = vmatpush1.bf16.msra.mxu0 0
  %3243 = vmatprep.subr.bf16.mxu0 0
  %3244 = vmatpush1.bf16.msra.mxu0 0
  %3245 = vmatprep.subr.bf16.mxu0 0
  %3246 = vmatpush1.bf16.msra.mxu0 0
  %3247 = vmatprep.subr.bf16.mxu0 0
  %3248 = vmatpush1.bf16.msra.mxu0 0
  %3249 = vmatprep.subr.bf16.mxu0 0
  %3250 = vmatpush1.bf16.msra.mxu0 0
  %3251 = vmatprep.subr.bf16.mxu0 0
  %3252 = vmatpush1.bf16.msra.mxu0 0
  %3253 = vmatprep.subr.bf16.mxu0 0
  %3254 = vmatpush1.bf16.msra.mxu0 0
  %3255 = vmatprep.mubr.bf16.mxu0 0
  %3256 = vmatmul.mubr.bf16.gmra.mrb[0].mxu0 %v2195
  %v3257 = vpop.f32.mrb[0].mxu0
  %v3258 = vadd.f32 %v3161, %v3257
  %v3259 = vpop.f32.mrb[0].mxu0
  %v3260 = vpop.f32.mrb[0].mxu0
  %v3261 = vadd.f32 %v3164, %v3260
  %v3262 = vpop.f32.mrb[0].mxu0
  %3263 = vmatprep.mubr.bf16.mxu0 0
  %3264 = vmatmul.mubr.bf16.gmra.mrb[0].mxu0 %v2204
  %v3265 = vpop.f32.mrb[0].mxu0
  %v3266 = vadd.f32 %v3169, %v3265
  %v3267 = vpop.f32.mrb[0].mxu0
  %v3268 = vpop.f32.mrb[0].mxu0
  %v3269 = vadd.f32 %v3172, %v3268
  %v3270 = vpop.f32.mrb[0].mxu0
  %3271 = vmatprep.mubr.bf16.mxu0 0
  %3272 = vmatmul.mubr.bf16.gmra.mrb[0].mxu0 %v2213
  %v3273 = vpop.f32.mrb[0].mxu0
  %v3274 = vadd.f32 %v3177, %v3273
  %v3275 = vpop.f32.mrb[0].mxu0
  %v3276 = vpop.f32.mrb[0].mxu0
  %v3277 = vadd.f32 %v3180, %v3276
  %v3278 = vpop.f32.mrb[0].mxu0
  %3279 = vmatprep.mubr.bf16.mxu0 0
  %3280 = vmatmul.mubr.bf16.gmra.mrb[0].mxu0 %v2222
  %v3281 = vpop.f32.mrb[0].mxu0
  %v3282 = vadd.f32 %v3185, %v3281
  %v3283 = vpop.f32.mrb[0].mxu0
  %v3284 = vpop.f32.mrb[0].mxu0
  %v3285 = vadd.f32 %v3188, %v3284
  %v3286 = vpop.f32.mrb[0].mxu0
  %3287 = vmatprep.mubr.bf16.mxu0 0
  %3288 = vmatmul.mubr.bf16.gmra.mrb[0].mxu0 %v2231
  %v3289 = vpop.f32.mrb[0].mxu0
  %v3290 = vadd.f32 %v3193, %v3289
  %v3291 = vpop.f32.mrb[0].mxu0
  %v3292 = vpop.f32.mrb[0].mxu0
  %v3293 = vadd.f32 %v3196, %v3292
  %v3294 = vpop.f32.mrb[0].mxu0
  %3295 = vmatprep.mubr.bf16.mxu0 0
  %3296 = vmatmul.mubr.bf16.gmra.mrb[0].mxu0 %v2240
  %v3297 = vpop.f32.mrb[0].mxu0
  %v3298 = vadd.f32 %v3201, %v3297
  %v3299 = vpop.f32.mrb[0].mxu0
  %v3300 = vpop.f32.mrb[0].mxu0
  %v3301 = vadd.f32 %v3204, %v3300
  %v3302 = vpop.f32.mrb[0].mxu0
  %3303 = vmatprep.mubr.bf16.mxu0 0
  %3304 = vmatmul.mubr.bf16.gmra.mrb[0].mxu0 %v2249
  %v3305 = vpop.f32.mrb[0].mxu0
  %v3306 = vadd.f32 %v3209, %v3305
  %v3307 = vpop.f32.mrb[0].mxu0
  %v3308 = vpop.f32.mrb[0].mxu0
  %v3309 = vadd.f32 %v3212, %v3308
  %v3310 = vpop.f32.mrb[0].mxu0
  %3311 = vmatprep.mubr.bf16.mxu0 0
  %3312 = vmatmul.mubr.bf16.gmra.mrb[0].mxu0 %v2258
  %v3313 = vpop.f32.mrb[0].mxu0
  %v3314 = vadd.f32 %v3217, %v3313
  %v3315 = vpop.f32.mrb[0].mxu0
  %v3316 = vpop.f32.mrb[0].mxu0
  %v3317 = vadd.f32 %v3220, %v3316
  %v3318 = vpop.f32.mrb[0].mxu0
  %3319 = vdwg.mxu0
  %v3320 = vadd.f32 %v3258, %v3261
  %v3321 = vadd.f32 %v3320, %v3266
  %v3322 = vadd.f32 %v3321, %v3269
  %v3323 = vadd.f32 %v3322, %v3274
  %v3324 = vadd.f32 %v3323, %v3277
  %v3325 = vadd.f32 %v3324, %v3282
  %v3326 = vadd.f32 %v3325, %v3285
  %v3327 = vadd.f32 %v3326, %v3290
  %v3328 = vadd.f32 %v3327, %v3293
  %v3329 = vadd.f32 %v3328, %v3298
  %v3330 = vadd.f32 %v3329, %v3301
  %v3331 = vadd.f32 %v3330, %v3306
  %v3332 = vadd.f32 %v3331, %v3309
  %v3333 = vadd.f32 %v3332, %v3314
  %v3334 = vadd.f32 %v3333, %v3317
  %v3335 = vrot.slane %v3334, 4
  %v3336 = vadd.f32 %v3334, %v3335
  %v3337 = vrot.slane %v3336, 2
  %v3338 = vadd.f32 %v3336, %v3337
  %v3339 = vrot.slane %v3338, 1
  %v3340 = vadd.f32 %v3338, %v3339
  %v3341 = vmul.f32 %v3340, 0.0078125
  %v3342 = vsub.f32 %v3258, %v3341
  %v3343 = vsub.f32 %v3261, %v3341
  %v3344 = vsub.f32 %v3266, %v3341
  %v3345 = vsub.f32 %v3269, %v3341
  %v3346 = vsub.f32 %v3274, %v3341
  %v3347 = vsub.f32 %v3277, %v3341
  %v3348 = vsub.f32 %v3282, %v3341
  %v3349 = vsub.f32 %v3285, %v3341
  %v3350 = vsub.f32 %v3290, %v3341
  %v3351 = vsub.f32 %v3293, %v3341
  %v3352 = vsub.f32 %v3298, %v3341
  %v3353 = vsub.f32 %v3301, %v3341
  %v3354 = vsub.f32 %v3306, %v3341
  %v3355 = vsub.f32 %v3309, %v3341
  %v3356 = vsub.f32 %v3314, %v3341
  %v3357 = vsub.f32 %v3317, %v3341
  %v3358 = vmul.f32 %v3342, %v3342
  %v3359 = vmul.f32 %v3343, %v3343
  %v3360 = vmul.f32 %v3344, %v3344
  %v3361 = vmul.f32 %v3345, %v3345
  %v3362 = vmul.f32 %v3346, %v3346
  %v3363 = vmul.f32 %v3347, %v3347
  %v3364 = vmul.f32 %v3348, %v3348
  %v3365 = vmul.f32 %v3349, %v3349
  %v3366 = vmul.f32 %v3350, %v3350
  %v3367 = vmul.f32 %v3351, %v3351
  %v3368 = vmul.f32 %v3352, %v3352
  %v3369 = vmul.f32 %v3353, %v3353
  %v3370 = vmul.f32 %v3354, %v3354
  %v3371 = vmul.f32 %v3355, %v3355
  %v3372 = vmul.f32 %v3356, %v3356
  %v3373 = vmul.f32 %v3357, %v3357
  %v3374 = vadd.f32 %v3358, %v3359
  %v3375 = vadd.f32 %v3374, %v3360
  %v3376 = vadd.f32 %v3375, %v3361
  %v3377 = vadd.f32 %v3376, %v3362
  %v3378 = vadd.f32 %v3377, %v3363
  %v3379 = vadd.f32 %v3378, %v3364
  %v3380 = vadd.f32 %v3379, %v3365
  %v3381 = vadd.f32 %v3380, %v3366
  %v3382 = vadd.f32 %v3381, %v3367
  %v3383 = vadd.f32 %v3382, %v3368
  %v3384 = vadd.f32 %v3383, %v3369
  %v3385 = vadd.f32 %v3384, %v3370
  %v3386 = vadd.f32 %v3385, %v3371
  %v3387 = vadd.f32 %v3386, %v3372
  %v3388 = vadd.f32 %v3387, %v3373
  %v3389 = vrot.slane %v3388, 4
  %v3390 = vadd.f32 %v3388, %v3389
  %v3391 = vrot.slane %v3390, 2
  %v3392 = vadd.f32 %v3390, %v3391
  %v3393 = vrot.slane %v3392, 1
  %v3394 = vadd.f32 %v3392, %v3393
  %3395 = vst [vmem:[%s5] sm:$0x1] %v3340
  %3396 = vst [vmem:[%s6] sm:$0x1] %v3394
  %v3397 = vpack.c.bf16 %v3258, %v3258
  %v3398 = vpack.c.bf16 %v3261, %v3261
  %v3399 = vpack.c.bf16 %v3266, %v3266
  %v3400 = vpack.c.bf16 %v3269, %v3269
  %v3401 = vpack.c.bf16 %v3274, %v3274
  %v3402 = vpack.c.bf16 %v3277, %v3277
  %v3403 = vpack.c.bf16 %v3282, %v3282
  %v3404 = vpack.c.bf16 %v3285, %v3285
  %v3405 = vpack.c.bf16 %v3290, %v3290
  %v3406 = vpack.c.bf16 %v3293, %v3293
  %v3407 = vpack.c.bf16 %v3298, %v3298
  %v3408 = vpack.c.bf16 %v3301, %v3301
  %v3409 = vpack.c.bf16 %v3306, %v3306
  %v3410 = vpack.c.bf16 %v3309, %v3309
  %v3411 = vpack.c.bf16 %v3314, %v3314
  %v3412 = vpack.c.bf16 %v3317, %v3317
  %3413 = vst [vmem:[%s4] sm:$0xf] %v3397
  %3414 = vst [vmem:[%s4 + $0x4] sm:$0xf] %v3398
  %3415 = vst [vmem:[%s4 + $0x8] sm:$0xf] %v3399
  %3416 = vst [vmem:[%s4 + $0xc] sm:$0xf] %v3400
  %3417 = vst [vmem:[%s4 + $0x10] sm:$0xf] %v3401
  %3418 = vst [vmem:[%s4 + $0x14] sm:$0xf] %v3402
  %3419 = vst [vmem:[%s4 + $0x18] sm:$0xf] %v3403
  %3420 = vst [vmem:[%s4 + $0x1c] sm:$0xf] %v3404
  %3421 = vst [vmem:[%s4 + $0x20] sm:$0xf] %v3405
  %3422 = vst [vmem:[%s4 + $0x24] sm:$0xf] %v3406
  %3423 = vst [vmem:[%s4 + $0x28] sm:$0xf] %v3407
  %3424 = vst [vmem:[%s4 + $0x2c] sm:$0xf] %v3408
  %3425 = vst [vmem:[%s4 + $0x30] sm:$0xf] %v3409
  %3426 = vst [vmem:[%s4 + $0x34] sm:$0xf] %v3410
  %3427 = vst [vmem:[%s4 + $0x38] sm:$0xf] %v3411
  %3428 = vst [vmem:[%s4 + $0x3c] sm:$0xf] %v3412
  // Predicated region
  $region18: #{down_forward.4} parent=0 // pred_check
    _
  $region19: #{down_forward.4} parent=0 // pred_check_branch
    %3430 = sbr.rel (0) target = $region21
  $region20: #{down_forward.4} parent=0 // pred_region
    _
  $region21: #{down_forward.4} parent=0 // pred_fallthru
    _
  // Predicated region
  $region22: #{down_forward.4} parent=0 // pred_check
    _
  $region23: #{down_forward.4} parent=0 // pred_check_branch
    %3432 = sbr.rel (0) target = $region25
  $region24: #{down_forward.4} parent=0 // pred_region
    _
  $region25: #{down_forward.4} parent=0 // pred_fallthru
    _
  // Predicated region
  $region26: #{down_forward.4} parent=0 // pred_check
    _
  $region27: #{down_forward.4} parent=0 // pred_check_branch
    %3434 = sbr.rel (0) target = $region29
  $region28: #{down_forward.4} parent=0 // pred_region
    _
  $region29: #{down_forward.4} parent=0 // pred_fallthru
    _
  // Predicated region
  $region30: #{down_forward.4} parent=0 // pred_check
    _
  $region31: #{down_forward.4} parent=0 // pred_check_branch
    %3436 = sbr.rel (0) target = $region33
  $region32: #{down_forward.4} parent=0 // pred_region
    _
  $region33: #{down_forward.4} parent=0 // pred_fallthru
    _
  // Predicated region
  $region34: #{down_forward.4} parent=0 // pred_check
    _
  $region35: #{down_forward.4} parent=0 // pred_check_branch
    %3438 = sbr.rel (0) target = $region37
  $region36: #{down_forward.4} parent=0 // pred_region
    _
  $region37: #{down_forward.4} parent=0 // pred_fallthru
    _
  // Predicated region
  $region38: #{down_forward.4} parent=0 // pred_check
    _
  $region39: #{down_forward.4} parent=0 // pred_check_branch
    %3440 = sbr.rel (0) target = $region41
  $region40: #{down_forward.4} parent=0 // pred_region
    _
  $region41: #{down_forward.4} parent=0 // pred_fallthru
    _

</llo_original>
